<compile_context>
chip_gen: v7x
topology: tpu7x:2x2x1
jax: 0.10.0
libtpu: 0.0.40
codegen_flags: <defaults>
</compile_context>

<pallas_src>
import math

import numpy as np
import jax
import jax.numpy as jnp
from jax import lax
from jax.experimental import pallas as pl
from jax.experimental.pallas import tpu as pltpu

# ----------------------------- model config -----------------------------
IMAGE_SIZE = 16
IN_CH = 3
BASE_PATCH = 4
SCALE_FACTORS = [1.0, 2.0]
LAYER_CONFIG = [0, 1]          # 0 = AttentionBlock, 1 = SpectralBlock(F_Linear)
NUM_HEADS = 4
HIDDEN = 32
MLP_DIM = 64
NUM_CLASSES = 10
BATCH = 2

PATCH_SIZES = [int(BASE_PATCH * s) for s in SCALE_FACTORS]          # [4, 8]
GRIDS = [IMAGE_SIZE // p for p in PATCH_SIZES]                      # [4, 2]
SEQ_LENGTHS = [g * g for g in GRIDS]                                # [16, 4]
SEQ = sum(SEQ_LENGTHS)                                              # 20
L1 = SEQ_LENGTHS[0]                                                 # 16
HEAD_DIM = HIDDEN // NUM_HEADS                                      # 8
REDUCED_TOKENS = int(math.sqrt(SEQ))                                # 4
REDUCED_DIMS = int(math.sqrt(HIDDEN))                               # 5
LN_EPS = 1e-6
ATTN_SCALE = 1.0 / math.sqrt(HEAD_DIM)

COLS1 = IN_CH * PATCH_SIZES[0] ** 2                                 # 48
COLS2 = IN_CH * PATCH_SIZES[1] ** 2                                 # 192
PATCH_COLS = COLS1 + COLS2                                          # 240

# ---- column offsets inside the packed 32-row weight slab (w32) ----
W32_QKV = 0                        # (32, 96)  in_proj^T
W32_WO = W32_QKV + 3 * HIDDEN      # (32, 32)  out_proj^T
W32_AW1 = W32_WO + HIDDEN          # (32, 64)  attention-MLP up-proj^T
W32_SW1 = W32_AW1 + MLP_DIM        # (32, 64)  spectral-MLP up-proj^T
W32_WC = W32_SW1 + MLP_DIM         # (32,128)  [Wr1|Wi1|Wr2|Wi2] complex channel weights
W32_M = W32_WC + 4 * HIDDEN        # (32, 40)  channel_control folded into head (4 x (32,10))
W32_COLS = W32_M + REDUCED_TOKENS * NUM_CLASSES                     # 424

# ---- rows inside the packed small-vector table (vecs, 128 lanes wide) ----
V_ALN1G, V_ALN1B, V_ALN2G, V_ALN2B = 0, 1, 2, 3
V_SLN1G, V_SLN1B, V_SLN2G, V_SLN2B = 4, 5, 6, 7
V_FLNG, V_FLNB = 8, 9
V_BQKV, V_BO, V_AB1, V_AB2, V_SB1, V_SB2 = 10, 11, 12, 13, 14, 15
V_HEADB, V_WT = 16, 17
V_ROWS = V_WT + REDUCED_TOKENS                                      # 21

# -------------------- rfft2 -> F_Linear -> irfft2 folded to a real matrix --------------------

def _spectral_imag_matrix(hw):
    """Real (L, L) matrix Ai such that, for real x (L, C) and complex channel
    weight Wr + i*Wi (C, C):

        irfft2(rfft2(x.view(H,W,C), norm='ortho') @ (Wr + i*Wi),
               s=(H,W), norm='ortho').view(L, C)  ==  x @ Wr  +  Ai @ x @ Wi

    (the real-path spatial matrix is exactly the identity, so it is dropped).
    Derived numerically from np.fft on unit bases so the non-Hermitian-input
    irfft2 semantics (imaginary parts of DC/Nyquist bins dropped) match
    torch.fft exactly."""
    H = W = hw
    F = W // 2 + 1
    P, Q = H * W, H * F
    eye_p = np.eye(P, dtype=np.float64).reshape(P, H, W)
    fwd = np.fft.rfft2(eye_p, axes=(1, 2), norm='ortho').reshape(P, Q).T
    fwd_r, fwd_i = np.real(fwd), np.imag(fwd)
    eye_q = np.eye(Q, dtype=np.float64).reshape(Q, H, F)
    inv_r = np.fft.irfft2(eye_q.astype(np.complex128), s=(H, W), axes=(1, 2),
                          norm='ortho').reshape(Q, P).T
    inv_i = np.fft.irfft2((1j * eye_q).astype(np.complex128), s=(H, W), axes=(1, 2),
                          norm='ortho').reshape(Q, P).T
    a_r = inv_r @ fwd_r + inv_i @ fwd_i
    assert np.allclose(a_r, np.eye(P), atol=1e-9)   # irfft2∘rfft2 == identity on real input
    return inv_i @ fwd_r - inv_r @ fwd_i

# ----------------------------- fused forward kernel -----------------------------

def _build_kernel(ipb):
    """Build the fused kernel for `ipb` images per grid step (static unroll)."""

    def kernel(x_ref, wpatch_ref, rowadd_ref, aiblk_ref, w32_ref, w64_ref,
               vecs_ref, o_ref):
        f32 = jnp.float32

        def vec(row, width):
            return vecs_ref[row:row + 1, 0:width]                      # (1, width)

        def layer_norm(x, g_row, b_row):
            mu = jnp.mean(x, axis=-1, keepdims=True)
            xc = x - mu
            var = jnp.mean(xc * xc, axis=-1, keepdims=True)
            return xc * lax.rsqrt(var + LN_EPS) * vec(g_row, HIDDEN) + vec(b_row, HIDDEN)

        def gelu(x):
            # exact erf GELU (PyTorch nn.GELU default)
            return 0.5 * x * (1.0 + lax.erf(x * 0.7071067811865476))

        def mlp(y, w1, b1_row, w2, b2_row):
            hmid = gelu(jnp.dot(y, w1, preferred_element_type=f32) + vec(b1_row, MLP_DIM))
            return jnp.dot(hmid, w2, preferred_element_type=f32) + vec(b2_row, HIDDEN)

        # ---- patch embedding: both scales in one block-diag matmul, pos + conv
        #      biases precomputed into the row-add table ----
        x = (jnp.dot(x_ref[0], wpatch_ref[...], preferred_element_type=f32)
             + rowadd_ref[:, 0:HIDDEN])                                 # (rows, 32)

        # ---- AttentionBlock (dropout p = 0) ----
        xn = layer_norm(x, V_ALN1G, V_ALN1B)
        qkv = (jnp.dot(xn, w32_ref[:, W32_QKV:W32_QKV + 3 * HIDDEN],
                       preferred_element_type=f32) + vec(V_BQKV, 3 * HIDDEN))  # (rows, 96)
        wo = w32_ref[:, W32_WO:W32_WO + HIDDEN]                         # (32, 32)
        parts = []
        for img in range(ipb):
            r0 = img * SEQ
            acc = None
            for h in range(NUM_HEADS):
                lo = h * HEAD_DIM
                q = qkv[r0:r0 + SEQ, lo:lo + HEAD_DIM]
                k = qkv[r0:r0 + SEQ, HIDDEN + lo:HIDDEN + lo + HEAD_DIM]
                v = qkv[r0:r0 + SEQ, 2 * HIDDEN + lo:2 * HIDDEN + lo + HEAD_DIM]
                s = lax.dot_general(q, k, (((1,), (1,)), ((), ())),
                                    preferred_element_type=f32) * ATTN_SCALE   # (20, 20)
                s = s - jnp.max(s, axis=-1, keepdims=True)
                p = jnp.exp(s)
                p = p * pl.reciprocal(jnp.sum(p, axis=-1, keepdims=True), approx=False)
                oh = jnp.dot(p, v, preferred_element_type=f32)                  # (20, 8)
                # merge heads through out_proj: concat_h(o_h) @ Wo^T == sum_h o_h @ Wo^T[rows_h]
                term = jnp.dot(oh, wo[lo:lo + HEAD_DIM, :], preferred_element_type=f32)
                acc = term if acc is None else acc + term
            parts.append(acc)
        attn = parts[0] if ipb == 1 else jnp.concatenate(parts, axis=0)
        x = x + attn + vec(V_BO, HIDDEN)                                # residual + out_proj bias
        x = x + mlp(layer_norm(x, V_ALN2G, V_ALN2B),
                    w32_ref[:, W32_AW1:W32_AW1 + MLP_DIM], V_AB1,
                    w64_ref[:, 0:HIDDEN], V_AB2)

        # ---- SpectralBlock (F_Linear per scale; FFTs folded into Ai) ----
        xn = layer_norm(x, V_SLN1G, V_SLN1B)
        c = jnp.dot(xn, w32_ref[:, W32_WC:W32_WC + 4 * HIDDEN],
                    preferred_element_type=f32)                         # (rows, 128)
        m1 = rowadd_ref[:, HIDDEN:2 * HIDDEN] > 0.0                     # True on scale-1 rows
        creal = jnp.where(m1, c[:, 0:HIDDEN], c[:, 2 * HIDDEN:3 * HIDDEN])
        cimag = jnp.where(m1, c[:, HIDDEN:2 * HIDDEN], c[:, 3 * HIDDEN:4 * HIDDEN])
        # Ai is block-diagonal over (images x scales) -> one matmul for the whole slab
        yspec = creal + jnp.dot(aiblk_ref[...], cimag, preferred_element_type=f32)
        x = x + mlp(layer_norm(yspec, V_SLN2G, V_SLN2B),
                    w32_ref[:, W32_SW1:W32_SW1 + MLP_DIM], V_SB1,
                    w64_ref[:, HIDDEN:2 * HIDDEN], V_SB2)               # residual = block input

        # ---- final LN + token_control + (channel_control ∘ head, folded host-side) ----
        xn = layer_norm(x, V_FLNG, V_FLNB)
        wt = vecs_ref[V_WT:V_WT + REDUCED_TOKENS, 0:SEQ]                # (4, 20)
        m_all = w32_ref[:, W32_M:W32_M + REDUCED_TOKENS * NUM_CLASSES]  # (32, 40)
        fused_bias = vec(V_HEADB, NUM_CLASSES)                          # (1, 10)
        outs = []
        for img in range(ipb):
            r0 = img * SEQ
            t = jnp.dot(wt, xn[r0:r0 + SEQ, :], preferred_element_type=f32)   # (4, 32)
            logits = fused_bias
            for r in range(REDUCED_TOKENS):
                m_r = m_all[:, r * NUM_CLASSES:(r + 1) * NUM_CLASSES]         # (32, 10)
                logits = logits + jnp.dot(t[r:r + 1, :], m_r, preferred_element_type=f32)
            outs.append(logits)
        o_ref[0] = outs[0] if ipb == 1 else jnp.concatenate(outs, axis=0)

    return kernel

# ----------------------------- host-side glue -----------------------------

def _im2col(x, p):
    """(N, 3, H, W) -> (N, G*G, 3*p*p), column order (c, ky, kx)."""
    n = x.shape[0]
    g = IMAGE_SIZE // p
    xp = x.reshape(n, IN_CH, g, p, g, p).transpose(0, 2, 4, 1, 3, 5)
    return xp.reshape(n, g * g, IN_CH * p * p)


def _im2col_padded(x):
    # TODO(synk): patch extraction (im2col) is plain reshape/transpose glue on
    # the tiny input image and stays in XLA; everything downstream runs in one kernel.
    n = x.shape[0]
    col1 = _im2col(x, PATCH_SIZES[0])                                   # (N, 16, 48)
    col2 = _im2col(x, PATCH_SIZES[1])                                   # (N, 4, 192)
    top = jnp.concatenate([col1, jnp.zeros((n, L1, COLS2), col1.dtype)], axis=2)
    bot = jnp.concatenate([jnp.zeros((n, SEQ - L1, COLS1), col2.dtype), col2], axis=2)
    return jnp.concatenate([top, bot], axis=1)                          # (N, 20, 240)


def _images_per_block(n):
    """Fold the whole batch into one grid step on single-TensorCore chips
    (v5e/v6e); split into two blocks on v7x so both TensorCores are used."""
    try:
        kind = jax.devices()[0].device_kind.lower()
    except Exception:
        kind = ""
    if ("v7" in kind or "7x" in kind) and n % 2 == 0:
        return n // 2
    return n


def vit_forward(prep, x):
    n = x.shape[0]
    ipb = prep['row_add'].shape[0] // SEQ            # images per block (static)
    assert n % ipb == 0, (n, ipb)
    nb = n // ipb
    rows = ipb * SEQ
    xcols = _im2col_padded(x).reshape(nb, rows, PATCH_COLS)

    out = pl.pallas_call(
        _build_kernel(ipb),
        out_shape=jax.ShapeDtypeStruct((nb, ipb, NUM_CLASSES), jnp.float32),
        grid=(nb,),
        in_specs=[
            # per-block activation slab
            pl.BlockSpec((1, rows, PATCH_COLS), lambda i: (i, 0, 0)),
            # packed weights: full-array blocks, constant index maps (stay resident in VMEM)
            pl.BlockSpec((PATCH_COLS, HIDDEN), lambda i: (0, 0)),
            pl.BlockSpec((rows, 2 * HIDDEN), lambda i: (0, 0)),
            pl.BlockSpec((rows, rows), lambda i: (0, 0)),
            pl.BlockSpec((HIDDEN, W32_COLS), lambda i: (0, 0)),
            pl.BlockSpec((MLP_DIM, 2 * HIDDEN), lambda i: (0, 0)),
            pl.BlockSpec((V_ROWS, 128), lambda i: (0, 0)),
        ],
        out_specs=pl.BlockSpec((1, ipb, NUM_CLASSES), lambda i: (i, 0, 0)),
        compiler_params=pltpu.CompilerParams(dimension_semantics=("parallel",)),
    )(xcols, prep['w_patch'], prep['row_add'], prep['ai_blk'],
      prep['w32'], prep['w64'], prep['vecs'])
    return out.reshape(n, NUM_CLASSES)

# ----------------------------- parameters -----------------------------

def init_params(key):
    """Parameters in the native PyTorch layout of VisionTransformer."""
    keys = iter(jax.random.split(key, 40))

    def nrm(shape, std=0.02):
        return std * jax.random.normal(next(keys), shape, dtype=jnp.float32)

    zeros = lambda s: jnp.zeros(s, jnp.float32)
    ones = lambda s: jnp.ones(s, jnp.float32)

    params = {'patch': []}
    for ps in PATCH_SIZES:
        fan_in = IN_CH * ps * ps
        params['patch'].append((nrm((HIDDEN, IN_CH, ps, ps), std=math.sqrt(1.0 / fan_in)),
                                zeros((HIDDEN,))))
    params['pos_embedding'] = nrm((1, SEQ, HIDDEN))

    layers = []
    for enc in LAYER_CONFIG:
        lp = {'ln1_g': ones((HIDDEN,)), 'ln1_b': zeros((HIDDEN,)),
              'ln2_g': ones((HIDDEN,)), 'ln2_b': zeros((HIDDEN,)),
              'mlp_w1': nrm((MLP_DIM, HIDDEN)), 'mlp_b1': zeros((MLP_DIM,)),
              'mlp_w2': nrm((HIDDEN, MLP_DIM)), 'mlp_b2': zeros((HIDDEN,))}
        if enc == 0:
            lp['in_proj_w'] = nrm((3 * HIDDEN, HIDDEN))
            lp['in_proj_b'] = zeros((3 * HIDDEN,))
            lp['out_proj_w'] = nrm((HIDDEN, HIDDEN))
            lp['out_proj_b'] = zeros((HIDDEN,))
        elif enc == 1:
            lp['flin_w'] = [nrm((HIDDEN, HIDDEN, 2)) for _ in SEQ_LENGTHS]
        else:
            raise NotImplementedError(enc)
        layers.append(lp)
    params['layers'] = layers

    params['enc_ln_g'] = ones((HIDDEN,))
    params['enc_ln_b'] = zeros((HIDDEN,))
    params['token_w'] = nrm((REDUCED_TOKENS, SEQ, 1), std=math.sqrt(1.0 / SEQ))
    params['token_b'] = zeros((REDUCED_TOKENS,))
    params['chan_w'] = nrm((REDUCED_DIMS, HIDDEN), std=math.sqrt(1.0 / HIDDEN))
    params['chan_b'] = zeros((REDUCED_DIMS,))
    params['head_w'] = zeros((NUM_CLASSES, REDUCED_TOKENS * REDUCED_DIMS))  # module zero-inits head
    params['head_b'] = zeros((NUM_CLASSES,))
    return params


def prepare_params(p, imgs_per_block):
    """One-time (outside jit) repack into the 6 packed kernel operands."""
    f32 = jnp.float32
    la, ls = p['layers']                       # attention layer, spectral layer
    (w1, b1), (w2, b2) = p['patch']

    # --- fused patch embedding: block-diag weight + (pos + conv-bias | scale-mask) row table ---
    wp1 = w1.reshape(HIDDEN, -1).T             # (48, 32)
    wp2 = w2.reshape(HIDDEN, -1).T             # (192, 32)
    w_patch = jnp.zeros((PATCH_COLS, HIDDEN), f32)
    w_patch = w_patch.at[:COLS1, :].set(wp1).at[COLS1:, :].set(wp2)

    pos = p['pos_embedding'].reshape(SEQ, HIDDEN)
    bias_rows = jnp.concatenate([jnp.broadcast_to(b1, (L1, HIDDEN)),
                                 jnp.broadcast_to(b2, (SEQ - L1, HIDDEN))], axis=0)
    scale1_mask = jnp.concatenate([jnp.ones((L1, HIDDEN), f32),
                                   jnp.zeros((SEQ - L1, HIDDEN), f32)], axis=0)
    row_add = jnp.tile(jnp.concatenate([pos + bias_rows, scale1_mask], axis=1),
                       (imgs_per_block, 1))                             # (ipb*20, 64)

    # --- spectral imaginary spatial mixing, block-diag over scales and images ---
    a1i = _spectral_imag_matrix(GRIDS[0])      # (16, 16)
    a2i = _spectral_imag_matrix(GRIDS[1])      # (4, 4)
    ai_img = np.zeros((SEQ, SEQ))
    ai_img[:L1, :L1] = a1i
    ai_img[L1:, L1:] = a2i
    ai_blk = jnp.asarray(np.kron(np.eye(imgs_per_block), ai_img), f32)  # (ipb*20, ipb*20)

    # --- 32-row weight slab ---
    chanT = p['chan_w'].T                      # (32, 5)
    headT = p['head_w'].T                      # (20, 10)
    w32 = jnp.zeros((HIDDEN, W32_COLS), f32)
    w32 = w32.at[:, W32_QKV:W32_QKV + 3 * HIDDEN].set(la['in_proj_w'].T)
    w32 = w32.at[:, W32_WO:W32_WO + HIDDEN].set(la['out_proj_w'].T)
    w32 = w32.at[:, W32_AW1:W32_AW1 + MLP_DIM].set(la['mlp_w1'].T)
    w32 = w32.at[:, W32_SW1:W32_SW1 + MLP_DIM].set(ls['mlp_w1'].T)
    wr1, wi1 = ls['flin_w'][0][:, :, 0], ls['flin_w'][0][:, :, 1]
    wr2, wi2 = ls['flin_w'][1][:, :, 0], ls['flin_w'][1][:, :, 1]
    w32 = w32.at[:, W32_WC + 0 * HIDDEN:W32_WC + 1 * HIDDEN].set(wr1)
    w32 = w32.at[:, W32_WC + 1 * HIDDEN:W32_WC + 2 * HIDDEN].set(wi1)
    w32 = w32.at[:, W32_WC + 2 * HIDDEN:W32_WC + 3 * HIDDEN].set(wr2)
    w32 = w32.at[:, W32_WC + 3 * HIDDEN:W32_WC + 4 * HIDDEN].set(wi2)
    # channel_control folded into head: M_r = chan_w^T @ head_w^T[5r:5r+5]; fused bias
    # absorbs head_b, chan_b and the token_control conv bias.
    head_bias = p['head_b'][None, :]
    for r in range(REDUCED_TOKENS):
        wh_r = headT[r * REDUCED_DIMS:(r + 1) * REDUCED_DIMS, :]        # (5, 10)
        m_r = chanT @ wh_r                                              # (32, 10)
        w32 = w32.at[:, W32_M + r * NUM_CLASSES:W32_M + (r + 1) * NUM_CLASSES].set(m_r)
        head_bias = (head_bias + p['chan_b'][None, :] @ wh_r
                     + p['token_b'][r] * m_r.sum(axis=0)[None, :])

    # --- 64-row slab: the two MLP down-projections ---
    w64 = jnp.zeros((MLP_DIM, 2 * HIDDEN), f32)
    w64 = w64.at[:, :HIDDEN].set(la['mlp_w2'].T).at[:, HIDDEN:].set(ls['mlp_w2'].T)

    # --- bias / LN / small-vector table ---
    def put(tab, row, v):
        v = jnp.asarray(v, f32).reshape(-1)
        return tab.at[row, :v.shape[0]].set(v)

    vecs = jnp.zeros((V_ROWS, 128), f32)
    vecs = put(vecs, V_ALN1G, la['ln1_g']); vecs = put(vecs, V_ALN1B, la['ln1_b'])
    vecs = put(vecs, V_ALN2G, la['ln2_g']); vecs = put(vecs, V_ALN2B, la['ln2_b'])
    vecs = put(vecs, V_SLN1G, ls['ln1_g']); vecs = put(vecs, V_SLN1B, ls['ln1_b'])
    vecs = put(vecs, V_SLN2G, ls['ln2_g']); vecs = put(vecs, V_SLN2B, ls['ln2_b'])
    vecs = put(vecs, V_FLNG, p['enc_ln_g']); vecs = put(vecs, V_FLNB, p['enc_ln_b'])
    vecs = put(vecs, V_BQKV, la['in_proj_b']); vecs = put(vecs, V_BO, la['out_proj_b'])
    vecs = put(vecs, V_AB1, la['mlp_b1']);    vecs = put(vecs, V_AB2, la['mlp_b2'])
    vecs = put(vecs, V_SB1, ls['mlp_b1']);    vecs = put(vecs, V_SB2, ls['mlp_b2'])
    vecs = put(vecs, V_HEADB, head_bias)
    vecs = vecs.at[V_WT:V_WT + REDUCED_TOKENS, :SEQ].set(p['token_w'][:, :, 0])

    prep = dict(w_patch=w_patch, row_add=row_add, ai_blk=ai_blk,
                w32=w32, w64=w64, vecs=vecs)
    return jax.tree_util.tree_map(lambda a: a.astype(jnp.float32), prep)

# ----------------------------- main -----------------------------

if __name__ == "__main__":
    key = jax.random.PRNGKey(0)
    pkey, xkey = jax.random.split(key)
    params = init_params(pkey)
    ipb = _images_per_block(BATCH)           # batch folding decided once, host-side
    prep = prepare_params(params, ipb)       # weight repack done once, outside jit
    x = jax.random.normal(xkey, (BATCH, IN_CH, IMAGE_SIZE, IMAGE_SIZE), jnp.float32)

    fwd = jax.jit(vit_forward)
    out = jax.block_until_ready(fwd(prep, x))
    assert out.shape == (BATCH, NUM_CLASSES)
    assert out.dtype == jnp.float32
    print("KERNEL_OK")
</pallas_src>

<mosaic_0001>
module attributes {stable_mosaic.version = 11 : i64} {
  func.func @kernel(%arg0: i32, %arg1: memref<1x40x240xf32, #tpu.memory_space<vmem>>, %arg2: memref<240x32xf32, #tpu.memory_space<vmem>>, %arg3: memref<40x64xf32, #tpu.memory_space<vmem>>, %arg4: memref<40x40xf32, #tpu.memory_space<vmem>>, %arg5: memref<32x424xf32, #tpu.memory_space<vmem>>, %arg6: memref<64x64xf32, #tpu.memory_space<vmem>>, %arg7: memref<21x128xf32, #tpu.memory_space<vmem>>, %arg8: memref<1x2x10xf32, #tpu.memory_space<vmem>>) attributes {dimension_semantics = [#tpu.dimension_semantics<parallel>], iteration_bounds = array<i64: 1>, scalar_prefetch = 0 : i64, scratch_operands = 0 : i64, tpu.core_type = #tpu.core_type<tc>, window_params = [{transform_indices = @transform_0, window_bounds = array<i64: 1, 40, 240>}, {pipeline_mode = #tpu.pipeline_mode<synchronous>, transform_indices = @transform_1, window_bounds = array<i64: 240, 32>}, {pipeline_mode = #tpu.pipeline_mode<synchronous>, transform_indices = @transform_2, window_bounds = array<i64: 40, 64>}, {pipeline_mode = #tpu.pipeline_mode<synchronous>, transform_indices = @transform_3, window_bounds = array<i64: 40, 40>}, {pipeline_mode = #tpu.pipeline_mode<synchronous>, transform_indices = @transform_4, window_bounds = array<i64: 32, 424>}, {pipeline_mode = #tpu.pipeline_mode<synchronous>, transform_indices = @transform_5, window_bounds = array<i64: 64, 64>}, {pipeline_mode = #tpu.pipeline_mode<synchronous>, transform_indices = @transform_6, window_bounds = array<i64: 21, 128>}, {transform_indices = @transform_7, window_bounds = array<i64: 1, 2, 10>}]} {
    %c0 = arith.constant 0 : index
    %c0_0 = arith.constant 0 : index
    %c0_1 = arith.constant 0 : index
    %0 = vector.load %arg1[%c0, %c0_0, %c0_1] : memref<1x40x240xf32, #tpu.memory_space<vmem>>, vector<1x40x240xf32>
    %1 = vector.shape_cast %0 : vector<1x40x240xf32> to vector<40x240xf32>
    %c0_2 = arith.constant 0 : index
    %c0_3 = arith.constant 0 : index
    %2 = vector.load %arg2[%c0_2, %c0_3] : memref<240x32xf32, #tpu.memory_space<vmem>>, vector<240x32xf32>
    %cst = arith.constant dense<0.000000e+00> : vector<40x32xf32>
    %3 = tpu.matmul %1, %2, %cst {dimension_numbers = #tpu.dot_dimension_numbers<[1], [0], [0], [1], [0, 0, 1, 1], [], []>} : vector<40x240xf32>, vector<240x32xf32>, vector<40x32xf32> -> vector<40x32xf32>
    %c0_4 = arith.constant 0 : index
    %c0_5 = arith.constant 0 : index
    %4 = vector.load %arg3[%c0_4, %c0_5] : memref<40x64xf32, #tpu.memory_space<vmem>>, vector<40x32xf32>
    %5 = arith.addf %3, %4 : vector<40x32xf32>
    %cst_6 = arith.constant dense<0.000000e+00> : vector<40xf32>
    %6 = vector.multi_reduction <add>, %5, %cst_6 [1] : vector<40x32xf32> to vector<40xf32>
    %7 = vector.shape_cast %6 : vector<40xf32> to vector<40x1xf32>
    %cst_7 = arith.constant 3.200000e+01 : f32
    %8 = vector.broadcast %cst_7 : f32 to vector<40x1xf32>
    %9 = arith.divf %7, %8 : vector<40x1xf32>
    %10 = vector.broadcast %9 : vector<40x1xf32> to vector<40x32xf32>
    %11 = arith.subf %5, %10 : vector<40x32xf32>
    %12 = arith.mulf %11, %11 : vector<40x32xf32>
    %cst_8 = arith.constant dense<0.000000e+00> : vector<40xf32>
    %13 = vector.multi_reduction <add>, %12, %cst_8 [1] : vector<40x32xf32> to vector<40xf32>
    %14 = vector.shape_cast %13 : vector<40xf32> to vector<40x1xf32>
    %cst_9 = arith.constant 3.200000e+01 : f32
    %15 = vector.broadcast %cst_9 : f32 to vector<40x1xf32>
    %16 = arith.divf %14, %15 : vector<40x1xf32>
    %cst_10 = arith.constant 9.99999997E-7 : f32
    %17 = vector.broadcast %cst_10 : f32 to vector<40x1xf32>
    %18 = arith.addf %16, %17 : vector<40x1xf32>
    %19 = math.rsqrt %18 : vector<40x1xf32>
    %20 = vector.broadcast %19 : vector<40x1xf32> to vector<40x32xf32>
    %21 = arith.mulf %11, %20 : vector<40x32xf32>
    %c0_11 = arith.constant 0 : index
    %c0_12 = arith.constant 0 : index
    %22 = vector.load %arg7[%c0_11, %c0_12] : memref<21x128xf32, #tpu.memory_space<vmem>>, vector<1x32xf32>
    %23 = vector.broadcast %22 : vector<1x32xf32> to vector<40x32xf32>
    %24 = arith.mulf %21, %23 : vector<40x32xf32>
    %c1 = arith.constant 1 : index
    %c0_13 = arith.constant 0 : index
    %25 = vector.load %arg7[%c1, %c0_13] : memref<21x128xf32, #tpu.memory_space<vmem>>, vector<1x32xf32>
    %26 = vector.broadcast %25 : vector<1x32xf32> to vector<40x32xf32>
    %27 = arith.addf %24, %26 : vector<40x32xf32>
    %c0_14 = arith.constant 0 : index
    %c0_15 = arith.constant 0 : index
    %28 = vector.load %arg5[%c0_14, %c0_15] : memref<32x424xf32, #tpu.memory_space<vmem>>, vector<32x96xf32>
    %cst_16 = arith.constant dense<0.000000e+00> : vector<40x96xf32>
    %29 = tpu.matmul %27, %28, %cst_16 {dimension_numbers = #tpu.dot_dimension_numbers<[1], [0], [0], [1], [0, 0, 1, 1], [], []>} : vector<40x32xf32>, vector<32x96xf32>, vector<40x96xf32> -> vector<40x96xf32>
    %c10 = arith.constant 10 : index
    %c0_17 = arith.constant 0 : index
    %30 = vector.load %arg7[%c10, %c0_17] : memref<21x128xf32, #tpu.memory_space<vmem>>, vector<1x96xf32>
    %31 = vector.broadcast %30 : vector<1x96xf32> to vector<40x96xf32>
    %32 = arith.addf %29, %31 : vector<40x96xf32>
    %c0_18 = arith.constant 0 : index
    %c96 = arith.constant 96 : index
    %33 = vector.load %arg5[%c0_18, %c96] : memref<32x424xf32, #tpu.memory_space<vmem>>, vector<32x32xf32>
    %34 = vector.extract_strided_slice %32 {offsets = [0, 0], sizes = [20, 8], strides = [1, 1]} : vector<40x96xf32> to vector<20x8xf32>
    %35 = vector.extract_strided_slice %32 {offsets = [0, 32], sizes = [20, 8], strides = [1, 1]} : vector<40x96xf32> to vector<20x8xf32>
    %36 = vector.extract_strided_slice %32 {offsets = [0, 64], sizes = [20, 8], strides = [1, 1]} : vector<40x96xf32> to vector<20x8xf32>
    %cst_19 = arith.constant dense<0.000000e+00> : vector<20x20xf32>
    %37 = tpu.matmul %34, %35, %cst_19 {dimension_numbers = #tpu.dot_dimension_numbers<[1], [1], [0], [0], [0, 0, 1, 0], [], []>} : vector<20x8xf32>, vector<20x8xf32>, vector<20x20xf32> -> vector<20x20xf32>
    %cst_20 = arith.constant 0.353553385 : f32
    %38 = vector.broadcast %cst_20 : f32 to vector<20x20xf32>
    %39 = arith.mulf %37, %38 : vector<20x20xf32>
    %cst_21 = arith.constant dense<0xFF800000> : vector<20xf32>
    %40 = vector.multi_reduction <maximumf>, %39, %cst_21 [1] : vector<20x20xf32> to vector<20xf32>
    %41 = vector.shape_cast %40 : vector<20xf32> to vector<20x1xf32>
    %42 = vector.broadcast %41 : vector<20x1xf32> to vector<20x20xf32>
    %43 = arith.subf %39, %42 : vector<20x20xf32>
    %44 = math.exp %43 : vector<20x20xf32>
    %cst_22 = arith.constant dense<0.000000e+00> : vector<20xf32>
    %45 = vector.multi_reduction <add>, %44, %cst_22 [1] : vector<20x20xf32> to vector<20xf32>
    %46 = vector.shape_cast %45 : vector<20xf32> to vector<20x1xf32>
    %47 = tpu.reciprocal %46 : vector<20x1xf32> -> vector<20x1xf32>
    %48 = vector.broadcast %47 : vector<20x1xf32> to vector<20x20xf32>
    %49 = arith.mulf %44, %48 : vector<20x20xf32>
    %cst_23 = arith.constant dense<0.000000e+00> : vector<20x8xf32>
    %50 = tpu.matmul %49, %36, %cst_23 {dimension_numbers = #tpu.dot_dimension_numbers<[1], [0], [0], [1], [0, 0, 1, 1], [], []>} : vector<20x20xf32>, vector<20x8xf32>, vector<20x8xf32> -> vector<20x8xf32>
    %51 = vector.extract_strided_slice %33 {offsets = [0, 0], sizes = [8, 32], strides = [1, 1]} : vector<32x32xf32> to vector<8x32xf32>
    %cst_24 = arith.constant dense<0.000000e+00> : vector<20x32xf32>
    %52 = tpu.matmul %50, %51, %cst_24 {dimension_numbers = #tpu.dot_dimension_numbers<[1], [0], [0], [1], [0, 0, 1, 1], [], []>} : vector<20x8xf32>, vector<8x32xf32>, vector<20x32xf32> -> vector<20x32xf32>
    %53 = vector.extract_strided_slice %32 {offsets = [0, 8], sizes = [20, 8], strides = [1, 1]} : vector<40x96xf32> to vector<20x8xf32>
    %54 = vector.extract_strided_slice %32 {offsets = [0, 40], sizes = [20, 8], strides = [1, 1]} : vector<40x96xf32> to vector<20x8xf32>
    %55 = vector.extract_strided_slice %32 {offsets = [0, 72], sizes = [20, 8], strides = [1, 1]} : vector<40x96xf32> to vector<20x8xf32>
    %cst_25 = arith.constant dense<0.000000e+00> : vector<20x20xf32>
    %56 = tpu.matmul %53, %54, %cst_25 {dimension_numbers = #tpu.dot_dimension_numbers<[1], [1], [0], [0], [0, 0, 1, 0], [], []>} : vector<20x8xf32>, vector<20x8xf32>, vector<20x20xf32> -> vector<20x20xf32>
    %cst_26 = arith.constant 0.353553385 : f32
    %57 = vector.broadcast %cst_26 : f32 to vector<20x20xf32>
    %58 = arith.mulf %56, %57 : vector<20x20xf32>
    %cst_27 = arith.constant dense<0xFF800000> : vector<20xf32>
    %59 = vector.multi_reduction <maximumf>, %58, %cst_27 [1] : vector<20x20xf32> to vector<20xf32>
    %60 = vector.shape_cast %59 : vector<20xf32> to vector<20x1xf32>
    %61 = vector.broadcast %60 : vector<20x1xf32> to vector<20x20xf32>
    %62 = arith.subf %58, %61 : vector<20x20xf32>
    %63 = math.exp %62 : vector<20x20xf32>
    %cst_28 = arith.constant dense<0.000000e+00> : vector<20xf32>
    %64 = vector.multi_reduction <add>, %63, %cst_28 [1] : vector<20x20xf32> to vector<20xf32>
    %65 = vector.shape_cast %64 : vector<20xf32> to vector<20x1xf32>
    %66 = tpu.reciprocal %65 : vector<20x1xf32> -> vector<20x1xf32>
    %67 = vector.broadcast %66 : vector<20x1xf32> to vector<20x20xf32>
    %68 = arith.mulf %63, %67 : vector<20x20xf32>
    %cst_29 = arith.constant dense<0.000000e+00> : vector<20x8xf32>
    %69 = tpu.matmul %68, %55, %cst_29 {dimension_numbers = #tpu.dot_dimension_numbers<[1], [0], [0], [1], [0, 0, 1, 1], [], []>} : vector<20x20xf32>, vector<20x8xf32>, vector<20x8xf32> -> vector<20x8xf32>
    %70 = vector.extract_strided_slice %33 {offsets = [8, 0], sizes = [8, 32], strides = [1, 1]} : vector<32x32xf32> to vector<8x32xf32>
    %cst_30 = arith.constant dense<0.000000e+00> : vector<20x32xf32>
    %71 = tpu.matmul %69, %70, %cst_30 {dimension_numbers = #tpu.dot_dimension_numbers<[1], [0], [0], [1], [0, 0, 1, 1], [], []>} : vector<20x8xf32>, vector<8x32xf32>, vector<20x32xf32> -> vector<20x32xf32>
    %72 = arith.addf %52, %71 : vector<20x32xf32>
    %73 = vector.extract_strided_slice %32 {offsets = [0, 16], sizes = [20, 8], strides = [1, 1]} : vector<40x96xf32> to vector<20x8xf32>
    %74 = vector.extract_strided_slice %32 {offsets = [0, 48], sizes = [20, 8], strides = [1, 1]} : vector<40x96xf32> to vector<20x8xf32>
    %75 = vector.extract_strided_slice %32 {offsets = [0, 80], sizes = [20, 8], strides = [1, 1]} : vector<40x96xf32> to vector<20x8xf32>
    %cst_31 = arith.constant dense<0.000000e+00> : vector<20x20xf32>
    %76 = tpu.matmul %73, %74, %cst_31 {dimension_numbers = #tpu.dot_dimension_numbers<[1], [1], [0], [0], [0, 0, 1, 0], [], []>} : vector<20x8xf32>, vector<20x8xf32>, vector<20x20xf32> -> vector<20x20xf32>
    %cst_32 = arith.constant 0.353553385 : f32
    %77 = vector.broadcast %cst_32 : f32 to vector<20x20xf32>
    %78 = arith.mulf %76, %77 : vector<20x20xf32>
    %cst_33 = arith.constant dense<0xFF800000> : vector<20xf32>
    %79 = vector.multi_reduction <maximumf>, %78, %cst_33 [1] : vector<20x20xf32> to vector<20xf32>
    %80 = vector.shape_cast %79 : vector<20xf32> to vector<20x1xf32>
    %81 = vector.broadcast %80 : vector<20x1xf32> to vector<20x20xf32>
    %82 = arith.subf %78, %81 : vector<20x20xf32>
    %83 = math.exp %82 : vector<20x20xf32>
    %cst_34 = arith.constant dense<0.000000e+00> : vector<20xf32>
    %84 = vector.multi_reduction <add>, %83, %cst_34 [1] : vector<20x20xf32> to vector<20xf32>
    %85 = vector.shape_cast %84 : vector<20xf32> to vector<20x1xf32>
    %86 = tpu.reciprocal %85 : vector<20x1xf32> -> vector<20x1xf32>
    %87 = vector.broadcast %86 : vector<20x1xf32> to vector<20x20xf32>
    %88 = arith.mulf %83, %87 : vector<20x20xf32>
    %cst_35 = arith.constant dense<0.000000e+00> : vector<20x8xf32>
    %89 = tpu.matmul %88, %75, %cst_35 {dimension_numbers = #tpu.dot_dimension_numbers<[1], [0], [0], [1], [0, 0, 1, 1], [], []>} : vector<20x20xf32>, vector<20x8xf32>, vector<20x8xf32> -> vector<20x8xf32>
    %90 = vector.extract_strided_slice %33 {offsets = [16, 0], sizes = [8, 32], strides = [1, 1]} : vector<32x32xf32> to vector<8x32xf32>
    %cst_36 = arith.constant dense<0.000000e+00> : vector<20x32xf32>
    %91 = tpu.matmul %89, %90, %cst_36 {dimension_numbers = #tpu.dot_dimension_numbers<[1], [0], [0], [1], [0, 0, 1, 1], [], []>} : vector<20x8xf32>, vector<8x32xf32>, vector<20x32xf32> -> vector<20x32xf32>
    %92 = arith.addf %72, %91 : vector<20x32xf32>
    %93 = vector.extract_strided_slice %32 {offsets = [0, 24], sizes = [20, 8], strides = [1, 1]} : vector<40x96xf32> to vector<20x8xf32>
    %94 = vector.extract_strided_slice %32 {offsets = [0, 56], sizes = [20, 8], strides = [1, 1]} : vector<40x96xf32> to vector<20x8xf32>
    %95 = vector.extract_strided_slice %32 {offsets = [0, 88], sizes = [20, 8], strides = [1, 1]} : vector<40x96xf32> to vector<20x8xf32>
    %cst_37 = arith.constant dense<0.000000e+00> : vector<20x20xf32>
    %96 = tpu.matmul %93, %94, %cst_37 {dimension_numbers = #tpu.dot_dimension_numbers<[1], [1], [0], [0], [0, 0, 1, 0], [], []>} : vector<20x8xf32>, vector<20x8xf32>, vector<20x20xf32> -> vector<20x20xf32>
    %cst_38 = arith.constant 0.353553385 : f32
    %97 = vector.broadcast %cst_38 : f32 to vector<20x20xf32>
    %98 = arith.mulf %96, %97 : vector<20x20xf32>
    %cst_39 = arith.constant dense<0xFF800000> : vector<20xf32>
    %99 = vector.multi_reduction <maximumf>, %98, %cst_39 [1] : vector<20x20xf32> to vector<20xf32>
    %100 = vector.shape_cast %99 : vector<20xf32> to vector<20x1xf32>
    %101 = vector.broadcast %100 : vector<20x1xf32> to vector<20x20xf32>
    %102 = arith.subf %98, %101 : vector<20x20xf32>
    %103 = math.exp %102 : vector<20x20xf32>
    %cst_40 = arith.constant dense<0.000000e+00> : vector<20xf32>
    %104 = vector.multi_reduction <add>, %103, %cst_40 [1] : vector<20x20xf32> to vector<20xf32>
    %105 = vector.shape_cast %104 : vector<20xf32> to vector<20x1xf32>
    %106 = tpu.reciprocal %105 : vector<20x1xf32> -> vector<20x1xf32>
    %107 = vector.broadcast %106 : vector<20x1xf32> to vector<20x20xf32>
    %108 = arith.mulf %103, %107 : vector<20x20xf32>
    %cst_41 = arith.constant dense<0.000000e+00> : vector<20x8xf32>
    %109 = tpu.matmul %108, %95, %cst_41 {dimension_numbers = #tpu.dot_dimension_numbers<[1], [0], [0], [1], [0, 0, 1, 1], [], []>} : vector<20x20xf32>, vector<20x8xf32>, vector<20x8xf32> -> vector<20x8xf32>
    %110 = vector.extract_strided_slice %33 {offsets = [24, 0], sizes = [8, 32], strides = [1, 1]} : vector<32x32xf32> to vector<8x32xf32>
    %cst_42 = arith.constant dense<0.000000e+00> : vector<20x32xf32>
    %111 = tpu.matmul %109, %110, %cst_42 {dimension_numbers = #tpu.dot_dimension_numbers<[1], [0], [0], [1], [0, 0, 1, 1], [], []>} : vector<20x8xf32>, vector<8x32xf32>, vector<20x32xf32> -> vector<20x32xf32>
    %112 = arith.addf %92, %111 : vector<20x32xf32>
    %113 = vector.extract_strided_slice %32 {offsets = [20, 0], sizes = [20, 8], strides = [1, 1]} : vector<40x96xf32> to vector<20x8xf32>
    %114 = vector.extract_strided_slice %32 {offsets = [20, 32], sizes = [20, 8], strides = [1, 1]} : vector<40x96xf32> to vector<20x8xf32>
    %115 = vector.extract_strided_slice %32 {offsets = [20, 64], sizes = [20, 8], strides = [1, 1]} : vector<40x96xf32> to vector<20x8xf32>
    %cst_43 = arith.constant dense<0.000000e+00> : vector<20x20xf32>
    %116 = tpu.matmul %113, %114, %cst_43 {dimension_numbers = #tpu.dot_dimension_numbers<[1], [1], [0], [0], [0, 0, 1, 0], [], []>} : vector<20x8xf32>, vector<20x8xf32>, vector<20x20xf32> -> vector<20x20xf32>
    %cst_44 = arith.constant 0.353553385 : f32
    %117 = vector.broadcast %cst_44 : f32 to vector<20x20xf32>
    %118 = arith.mulf %116, %117 : vector<20x20xf32>
    %cst_45 = arith.constant dense<0xFF800000> : vector<20xf32>
    %119 = vector.multi_reduction <maximumf>, %118, %cst_45 [1] : vector<20x20xf32> to vector<20xf32>
    %120 = vector.shape_cast %119 : vector<20xf32> to vector<20x1xf32>
    %121 = vector.broadcast %120 : vector<20x1xf32> to vector<20x20xf32>
    %122 = arith.subf %118, %121 : vector<20x20xf32>
    %123 = math.exp %122 : vector<20x20xf32>
    %cst_46 = arith.constant dense<0.000000e+00> : vector<20xf32>
    %124 = vector.multi_reduction <add>, %123, %cst_46 [1] : vector<20x20xf32> to vector<20xf32>
    %125 = vector.shape_cast %124 : vector<20xf32> to vector<20x1xf32>
    %126 = tpu.reciprocal %125 : vector<20x1xf32> -> vector<20x1xf32>
    %127 = vector.broadcast %126 : vector<20x1xf32> to vector<20x20xf32>
    %128 = arith.mulf %123, %127 : vector<20x20xf32>
    %cst_47 = arith.constant dense<0.000000e+00> : vector<20x8xf32>
    %129 = tpu.matmul %128, %115, %cst_47 {dimension_numbers = #tpu.dot_dimension_numbers<[1], [0], [0], [1], [0, 0, 1, 1], [], []>} : vector<20x20xf32>, vector<20x8xf32>, vector<20x8xf32> -> vector<20x8xf32>
    %130 = vector.extract_strided_slice %33 {offsets = [0, 0], sizes = [8, 32], strides = [1, 1]} : vector<32x32xf32> to vector<8x32xf32>
    %cst_48 = arith.constant dense<0.000000e+00> : vector<20x32xf32>
    %131 = tpu.matmul %129, %130, %cst_48 {dimension_numbers = #tpu.dot_dimension_numbers<[1], [0], [0], [1], [0, 0, 1, 1], [], []>} : vector<20x8xf32>, vector<8x32xf32>, vector<20x32xf32> -> vector<20x32xf32>
    %132 = vector.extract_strided_slice %32 {offsets = [20, 8], sizes = [20, 8], strides = [1, 1]} : vector<40x96xf32> to vector<20x8xf32>
    %133 = vector.extract_strided_slice %32 {offsets = [20, 40], sizes = [20, 8], strides = [1, 1]} : vector<40x96xf32> to vector<20x8xf32>
    %134 = vector.extract_strided_slice %32 {offsets = [20, 72], sizes = [20, 8], strides = [1, 1]} : vector<40x96xf32> to vector<20x8xf32>
    %cst_49 = arith.constant dense<0.000000e+00> : vector<20x20xf32>
    %135 = tpu.matmul %132, %133, %cst_49 {dimension_numbers = #tpu.dot_dimension_numbers<[1], [1], [0], [0], [0, 0, 1, 0], [], []>} : vector<20x8xf32>, vector<20x8xf32>, vector<20x20xf32> -> vector<20x20xf32>
    %cst_50 = arith.constant 0.353553385 : f32
    %136 = vector.broadcast %cst_50 : f32 to vector<20x20xf32>
    %137 = arith.mulf %135, %136 : vector<20x20xf32>
    %cst_51 = arith.constant dense<0xFF800000> : vector<20xf32>
    %138 = vector.multi_reduction <maximumf>, %137, %cst_51 [1] : vector<20x20xf32> to vector<20xf32>
    %139 = vector.shape_cast %138 : vector<20xf32> to vector<20x1xf32>
    %140 = vector.broadcast %139 : vector<20x1xf32> to vector<20x20xf32>
    %141 = arith.subf %137, %140 : vector<20x20xf32>
    %142 = math.exp %141 : vector<20x20xf32>
    %cst_52 = arith.constant dense<0.000000e+00> : vector<20xf32>
    %143 = vector.multi_reduction <add>, %142, %cst_52 [1] : vector<20x20xf32> to vector<20xf32>
    %144 = vector.shape_cast %143 : vector<20xf32> to vector<20x1xf32>
    %145 = tpu.reciprocal %144 : vector<20x1xf32> -> vector<20x1xf32>
    %146 = vector.broadcast %145 : vector<20x1xf32> to vector<20x20xf32>
    %147 = arith.mulf %142, %146 : vector<20x20xf32>
    %cst_53 = arith.constant dense<0.000000e+00> : vector<20x8xf32>
    %148 = tpu.matmul %147, %134, %cst_53 {dimension_numbers = #tpu.dot_dimension_numbers<[1], [0], [0], [1], [0, 0, 1, 1], [], []>} : vector<20x20xf32>, vector<20x8xf32>, vector<20x8xf32> -> vector<20x8xf32>
    %149 = vector.extract_strided_slice %33 {offsets = [8, 0], sizes = [8, 32], strides = [1, 1]} : vector<32x32xf32> to vector<8x32xf32>
    %cst_54 = arith.constant dense<0.000000e+00> : vector<20x32xf32>
    %150 = tpu.matmul %148, %149, %cst_54 {dimension_numbers = #tpu.dot_dimension_numbers<[1], [0], [0], [1], [0, 0, 1, 1], [], []>} : vector<20x8xf32>, vector<8x32xf32>, vector<20x32xf32> -> vector<20x32xf32>
    %151 = arith.addf %131, %150 : vector<20x32xf32>
    %152 = vector.extract_strided_slice %32 {offsets = [20, 16], sizes = [20, 8], strides = [1, 1]} : vector<40x96xf32> to vector<20x8xf32>
    %153 = vector.extract_strided_slice %32 {offsets = [20, 48], sizes = [20, 8], strides = [1, 1]} : vector<40x96xf32> to vector<20x8xf32>
    %154 = vector.extract_strided_slice %32 {offsets = [20, 80], sizes = [20, 8], strides = [1, 1]} : vector<40x96xf32> to vector<20x8xf32>
    %cst_55 = arith.constant dense<0.000000e+00> : vector<20x20xf32>
    %155 = tpu.matmul %152, %153, %cst_55 {dimension_numbers = #tpu.dot_dimension_numbers<[1], [1], [0], [0], [0, 0, 1, 0], [], []>} : vector<20x8xf32>, vector<20x8xf32>, vector<20x20xf32> -> vector<20x20xf32>
    %cst_56 = arith.constant 0.353553385 : f32
    %156 = vector.broadcast %cst_56 : f32 to vector<20x20xf32>
    %157 = arith.mulf %155, %156 : vector<20x20xf32>
    %cst_57 = arith.constant dense<0xFF800000> : vector<20xf32>
    %158 = vector.multi_reduction <maximumf>, %157, %cst_57 [1] : vector<20x20xf32> to vector<20xf32>
    %159 = vector.shape_cast %158 : vector<20xf32> to vector<20x1xf32>
    %160 = vector.broadcast %159 : vector<20x1xf32> to vector<20x20xf32>
    %161 = arith.subf %157, %160 : vector<20x20xf32>
    %162 = math.exp %161 : vector<20x20xf32>
    %cst_58 = arith.constant dense<0.000000e+00> : vector<20xf32>
    %163 = vector.multi_reduction <add>, %162, %cst_58 [1] : vector<20x20xf32> to vector<20xf32>
    %164 = vector.shape_cast %163 : vector<20xf32> to vector<20x1xf32>
    %165 = tpu.reciprocal %164 : vector<20x1xf32> -> vector<20x1xf32>
    %166 = vector.broadcast %165 : vector<20x1xf32> to vector<20x20xf32>
    %167 = arith.mulf %162, %166 : vector<20x20xf32>
    %cst_59 = arith.constant dense<0.000000e+00> : vector<20x8xf32>
    %168 = tpu.matmul %167, %154, %cst_59 {dimension_numbers = #tpu.dot_dimension_numbers<[1], [0], [0], [1], [0, 0, 1, 1], [], []>} : vector<20x20xf32>, vector<20x8xf32>, vector<20x8xf32> -> vector<20x8xf32>
    %169 = vector.extract_strided_slice %33 {offsets = [16, 0], sizes = [8, 32], strides = [1, 1]} : vector<32x32xf32> to vector<8x32xf32>
    %cst_60 = arith.constant dense<0.000000e+00> : vector<20x32xf32>
    %170 = tpu.matmul %168, %169, %cst_60 {dimension_numbers = #tpu.dot_dimension_numbers<[1], [0], [0], [1], [0, 0, 1, 1], [], []>} : vector<20x8xf32>, vector<8x32xf32>, vector<20x32xf32> -> vector<20x32xf32>
    %171 = arith.addf %151, %170 : vector<20x32xf32>
    %172 = vector.extract_strided_slice %32 {offsets = [20, 24], sizes = [20, 8], strides = [1, 1]} : vector<40x96xf32> to vector<20x8xf32>
    %173 = vector.extract_strided_slice %32 {offsets = [20, 56], sizes = [20, 8], strides = [1, 1]} : vector<40x96xf32> to vector<20x8xf32>
    %174 = vector.extract_strided_slice %32 {offsets = [20, 88], sizes = [20, 8], strides = [1, 1]} : vector<40x96xf32> to vector<20x8xf32>
    %cst_61 = arith.constant dense<0.000000e+00> : vector<20x20xf32>
    %175 = tpu.matmul %172, %173, %cst_61 {dimension_numbers = #tpu.dot_dimension_numbers<[1], [1], [0], [0], [0, 0, 1, 0], [], []>} : vector<20x8xf32>, vector<20x8xf32>, vector<20x20xf32> -> vector<20x20xf32>
    %cst_62 = arith.constant 0.353553385 : f32
    %176 = vector.broadcast %cst_62 : f32 to vector<20x20xf32>
    %177 = arith.mulf %175, %176 : vector<20x20xf32>
    %cst_63 = arith.constant dense<0xFF800000> : vector<20xf32>
    %178 = vector.multi_reduction <maximumf>, %177, %cst_63 [1] : vector<20x20xf32> to vector<20xf32>
    %179 = vector.shape_cast %178 : vector<20xf32> to vector<20x1xf32>
    %180 = vector.broadcast %179 : vector<20x1xf32> to vector<20x20xf32>
    %181 = arith.subf %177, %180 : vector<20x20xf32>
    %182 = math.exp %181 : vector<20x20xf32>
    %cst_64 = arith.constant dense<0.000000e+00> : vector<20xf32>
    %183 = vector.multi_reduction <add>, %182, %cst_64 [1] : vector<20x20xf32> to vector<20xf32>
    %184 = vector.shape_cast %183 : vector<20xf32> to vector<20x1xf32>
    %185 = tpu.reciprocal %184 : vector<20x1xf32> -> vector<20x1xf32>
    %186 = vector.broadcast %185 : vector<20x1xf32> to vector<20x20xf32>
    %187 = arith.mulf %182, %186 : vector<20x20xf32>
    %cst_65 = arith.constant dense<0.000000e+00> : vector<20x8xf32>
    %188 = tpu.matmul %187, %174, %cst_65 {dimension_numbers = #tpu.dot_dimension_numbers<[1], [0], [0], [1], [0, 0, 1, 1], [], []>} : vector<20x20xf32>, vector<20x8xf32>, vector<20x8xf32> -> vector<20x8xf32>
    %189 = vector.extract_strided_slice %33 {offsets = [24, 0], sizes = [8, 32], strides = [1, 1]} : vector<32x32xf32> to vector<8x32xf32>
    %cst_66 = arith.constant dense<0.000000e+00> : vector<20x32xf32>
    %190 = tpu.matmul %188, %189, %cst_66 {dimension_numbers = #tpu.dot_dimension_numbers<[1], [0], [0], [1], [0, 0, 1, 1], [], []>} : vector<20x8xf32>, vector<8x32xf32>, vector<20x32xf32> -> vector<20x32xf32>
    %191 = arith.addf %171, %190 : vector<20x32xf32>
    %192 = tpu.concatenate %112, %191 in 0 : vector<20x32xf32>, vector<20x32xf32> -> vector<40x32xf32>
    %193 = arith.addf %5, %192 : vector<40x32xf32>
    %c11 = arith.constant 11 : index
    %c0_67 = arith.constant 0 : index
    %194 = vector.load %arg7[%c11, %c0_67] : memref<21x128xf32, #tpu.memory_space<vmem>>, vector<1x32xf32>
    %195 = vector.broadcast %194 : vector<1x32xf32> to vector<40x32xf32>
    %196 = arith.addf %193, %195 : vector<40x32xf32>
    %cst_68 = arith.constant dense<0.000000e+00> : vector<40xf32>
    %197 = vector.multi_reduction <add>, %196, %cst_68 [1] : vector<40x32xf32> to vector<40xf32>
    %198 = vector.shape_cast %197 : vector<40xf32> to vector<40x1xf32>
    %cst_69 = arith.constant 3.200000e+01 : f32
    %199 = vector.broadcast %cst_69 : f32 to vector<40x1xf32>
    %200 = arith.divf %198, %199 : vector<40x1xf32>
    %201 = vector.broadcast %200 : vector<40x1xf32> to vector<40x32xf32>
    %202 = arith.subf %196, %201 : vector<40x32xf32>
    %203 = arith.mulf %202, %202 : vector<40x32xf32>
    %cst_70 = arith.constant dense<0.000000e+00> : vector<40xf32>
    %204 = vector.multi_reduction <add>, %203, %cst_70 [1] : vector<40x32xf32> to vector<40xf32>
    %205 = vector.shape_cast %204 : vector<40xf32> to vector<40x1xf32>
    %cst_71 = arith.constant 3.200000e+01 : f32
    %206 = vector.broadcast %cst_71 : f32 to vector<40x1xf32>
    %207 = arith.divf %205, %206 : vector<40x1xf32>
    %cst_72 = arith.constant 9.99999997E-7 : f32
    %208 = vector.broadcast %cst_72 : f32 to vector<40x1xf32>
    %209 = arith.addf %207, %208 : vector<40x1xf32>
    %210 = math.rsqrt %209 : vector<40x1xf32>
    %211 = vector.broadcast %210 : vector<40x1xf32> to vector<40x32xf32>
    %212 = arith.mulf %202, %211 : vector<40x32xf32>
    %c2 = arith.constant 2 : index
    %c0_73 = arith.constant 0 : index
    %213 = vector.load %arg7[%c2, %c0_73] : memref<21x128xf32, #tpu.memory_space<vmem>>, vector<1x32xf32>
    %214 = vector.broadcast %213 : vector<1x32xf32> to vector<40x32xf32>
    %215 = arith.mulf %212, %214 : vector<40x32xf32>
    %c3 = arith.constant 3 : index
    %c0_74 = arith.constant 0 : index
    %216 = vector.load %arg7[%c3, %c0_74] : memref<21x128xf32, #tpu.memory_space<vmem>>, vector<1x32xf32>
    %217 = vector.broadcast %216 : vector<1x32xf32> to vector<40x32xf32>
    %218 = arith.addf %215, %217 : vector<40x32xf32>
    %c0_75 = arith.constant 0 : index
    %c128 = arith.constant 128 : index
    %219 = vector.load %arg5[%c0_75, %c128] : memref<32x424xf32, #tpu.memory_space<vmem>>, vector<32x64xf32>
    %c0_76 = arith.constant 0 : index
    %c0_77 = arith.constant 0 : index
    %220 = vector.load %arg6[%c0_76, %c0_77] : memref<64x64xf32, #tpu.memory_space<vmem>>, vector<64x32xf32>
    %cst_78 = arith.constant dense<0.000000e+00> : vector<40x64xf32>
    %221 = tpu.matmul %218, %219, %cst_78 {dimension_numbers = #tpu.dot_dimension_numbers<[1], [0], [0], [1], [0, 0, 1, 1], [], []>} : vector<40x32xf32>, vector<32x64xf32>, vector<40x64xf32> -> vector<40x64xf32>
    %c12 = arith.constant 12 : index
    %c0_79 = arith.constant 0 : index
    %222 = vector.load %arg7[%c12, %c0_79] : memref<21x128xf32, #tpu.memory_space<vmem>>, vector<1x64xf32>
    %223 = vector.broadcast %222 : vector<1x64xf32> to vector<40x64xf32>
    %224 = arith.addf %221, %223 : vector<40x64xf32>
    %cst_80 = arith.constant 5.000000e-01 : f32
    %225 = vector.broadcast %cst_80 : f32 to vector<40x64xf32>
    %226 = arith.mulf %225, %224 : vector<40x64xf32>
    %cst_81 = arith.constant 0.707106769 : f32
    %227 = vector.broadcast %cst_81 : f32 to vector<40x64xf32>
    %228 = arith.mulf %224, %227 : vector<40x64xf32>
    %229 = math.erf %228 : vector<40x64xf32>
    %cst_82 = arith.constant 1.000000e+00 : f32
    %230 = vector.broadcast %cst_82 : f32 to vector<40x64xf32>
    %231 = arith.addf %230, %229 : vector<40x64xf32>
    %232 = arith.mulf %226, %231 : vector<40x64xf32>
    %cst_83 = arith.constant dense<0.000000e+00> : vector<40x32xf32>
    %233 = tpu.matmul %232, %220, %cst_83 {dimension_numbers = #tpu.dot_dimension_numbers<[1], [0], [0], [1], [0, 0, 1, 1], [], []>} : vector<40x64xf32>, vector<64x32xf32>, vector<40x32xf32> -> vector<40x32xf32>
    %c13 = arith.constant 13 : index
    %c0_84 = arith.constant 0 : index
    %234 = vector.load %arg7[%c13, %c0_84] : memref<21x128xf32, #tpu.memory_space<vmem>>, vector<1x32xf32>
    %235 = vector.broadcast %234 : vector<1x32xf32> to vector<40x32xf32>
    %236 = arith.addf %233, %235 : vector<40x32xf32>
    %237 = arith.addf %196, %236 : vector<40x32xf32>
    %cst_85 = arith.constant dense<0.000000e+00> : vector<40xf32>
    %238 = vector.multi_reduction <add>, %237, %cst_85 [1] : vector<40x32xf32> to vector<40xf32>
    %239 = vector.shape_cast %238 : vector<40xf32> to vector<40x1xf32>
    %cst_86 = arith.constant 3.200000e+01 : f32
    %240 = vector.broadcast %cst_86 : f32 to vector<40x1xf32>
    %241 = arith.divf %239, %240 : vector<40x1xf32>
    %242 = vector.broadcast %241 : vector<40x1xf32> to vector<40x32xf32>
    %243 = arith.subf %237, %242 : vector<40x32xf32>
    %244 = arith.mulf %243, %243 : vector<40x32xf32>
    %cst_87 = arith.constant dense<0.000000e+00> : vector<40xf32>
    %245 = vector.multi_reduction <add>, %244, %cst_87 [1] : vector<40x32xf32> to vector<40xf32>
    %246 = vector.shape_cast %245 : vector<40xf32> to vector<40x1xf32>
    %cst_88 = arith.constant 3.200000e+01 : f32
    %247 = vector.broadcast %cst_88 : f32 to vector<40x1xf32>
    %248 = arith.divf %246, %247 : vector<40x1xf32>
    %cst_89 = arith.constant 9.99999997E-7 : f32
    %249 = vector.broadcast %cst_89 : f32 to vector<40x1xf32>
    %250 = arith.addf %248, %249 : vector<40x1xf32>
    %251 = math.rsqrt %250 : vector<40x1xf32>
    %252 = vector.broadcast %251 : vector<40x1xf32> to vector<40x32xf32>
    %253 = arith.mulf %243, %252 : vector<40x32xf32>
    %c4 = arith.constant 4 : index
    %c0_90 = arith.constant 0 : index
    %254 = vector.load %arg7[%c4, %c0_90] : memref<21x128xf32, #tpu.memory_space<vmem>>, vector<1x32xf32>
    %255 = vector.broadcast %254 : vector<1x32xf32> to vector<40x32xf32>
    %256 = arith.mulf %253, %255 : vector<40x32xf32>
    %c5 = arith.constant 5 : index
    %c0_91 = arith.constant 0 : index
    %257 = vector.load %arg7[%c5, %c0_91] : memref<21x128xf32, #tpu.memory_space<vmem>>, vector<1x32xf32>
    %258 = vector.broadcast %257 : vector<1x32xf32> to vector<40x32xf32>
    %259 = arith.addf %256, %258 : vector<40x32xf32>
    %c0_92 = arith.constant 0 : index
    %c256 = arith.constant 256 : index
    %260 = vector.load %arg5[%c0_92, %c256] : memref<32x424xf32, #tpu.memory_space<vmem>>, vector<32x128xf32>
    %cst_93 = arith.constant dense<0.000000e+00> : vector<40x128xf32>
    %261 = tpu.matmul %259, %260, %cst_93 {dimension_numbers = #tpu.dot_dimension_numbers<[1], [0], [0], [1], [0, 0, 1, 1], [], []>} : vector<40x32xf32>, vector<32x128xf32>, vector<40x128xf32> -> vector<40x128xf32>
    %c0_94 = arith.constant 0 : index
    %c32 = arith.constant 32 : index
    %262 = vector.load %arg3[%c0_94, %c32] : memref<40x64xf32, #tpu.memory_space<vmem>>, vector<40x32xf32>
    %cst_95 = arith.constant 0.000000e+00 : f32
    %263 = vector.broadcast %cst_95 : f32 to vector<40x32xf32>
    %264 = arith.cmpf ogt, %262, %263 : vector<40x32xf32>
    %265 = vector.extract_strided_slice %261 {offsets = [0, 0], sizes = [40, 32], strides = [1, 1]} : vector<40x128xf32> to vector<40x32xf32>
    %266 = vector.extract_strided_slice %261 {offsets = [0, 64], sizes = [40, 32], strides = [1, 1]} : vector<40x128xf32> to vector<40x32xf32>
    %267 = arith.select %264, %265, %266 : vector<40x32xi1>, vector<40x32xf32>
    %268 = vector.extract_strided_slice %261 {offsets = [0, 32], sizes = [40, 32], strides = [1, 1]} : vector<40x128xf32> to vector<40x32xf32>
    %269 = vector.extract_strided_slice %261 {offsets = [0, 96], sizes = [40, 32], strides = [1, 1]} : vector<40x128xf32> to vector<40x32xf32>
    %270 = arith.select %264, %268, %269 : vector<40x32xi1>, vector<40x32xf32>
    %c0_96 = arith.constant 0 : index
    %c0_97 = arith.constant 0 : index
    %271 = vector.load %arg4[%c0_96, %c0_97] : memref<40x40xf32, #tpu.memory_space<vmem>>, vector<40x40xf32>
    %cst_98 = arith.constant dense<0.000000e+00> : vector<40x32xf32>
    %272 = tpu.matmul %271, %270, %cst_98 {dimension_numbers = #tpu.dot_dimension_numbers<[1], [0], [0], [1], [0, 0, 1, 1], [], []>} : vector<40x40xf32>, vector<40x32xf32>, vector<40x32xf32> -> vector<40x32xf32>
    %273 = arith.addf %267, %272 : vector<40x32xf32>
    %cst_99 = arith.constant dense<0.000000e+00> : vector<40xf32>
    %274 = vector.multi_reduction <add>, %273, %cst_99 [1] : vector<40x32xf32> to vector<40xf32>
    %275 = vector.shape_cast %274 : vector<40xf32> to vector<40x1xf32>
    %cst_100 = arith.constant 3.200000e+01 : f32
    %276 = vector.broadcast %cst_100 : f32 to vector<40x1xf32>
    %277 = arith.divf %275, %276 : vector<40x1xf32>
    %278 = vector.broadcast %277 : vector<40x1xf32> to vector<40x32xf32>
    %279 = arith.subf %273, %278 : vector<40x32xf32>
    %280 = arith.mulf %279, %279 : vector<40x32xf32>
    %cst_101 = arith.constant dense<0.000000e+00> : vector<40xf32>
    %281 = vector.multi_reduction <add>, %280, %cst_101 [1] : vector<40x32xf32> to vector<40xf32>
    %282 = vector.shape_cast %281 : vector<40xf32> to vector<40x1xf32>
    %cst_102 = arith.constant 3.200000e+01 : f32
    %283 = vector.broadcast %cst_102 : f32 to vector<40x1xf32>
    %284 = arith.divf %282, %283 : vector<40x1xf32>
    %cst_103 = arith.constant 9.99999997E-7 : f32
    %285 = vector.broadcast %cst_103 : f32 to vector<40x1xf32>
    %286 = arith.addf %284, %285 : vector<40x1xf32>
    %287 = math.rsqrt %286 : vector<40x1xf32>
    %288 = vector.broadcast %287 : vector<40x1xf32> to vector<40x32xf32>
    %289 = arith.mulf %279, %288 : vector<40x32xf32>
    %c6 = arith.constant 6 : index
    %c0_104 = arith.constant 0 : index
    %290 = vector.load %arg7[%c6, %c0_104] : memref<21x128xf32, #tpu.memory_space<vmem>>, vector<1x32xf32>
    %291 = vector.broadcast %290 : vector<1x32xf32> to vector<40x32xf32>
    %292 = arith.mulf %289, %291 : vector<40x32xf32>
    %c7 = arith.constant 7 : index
    %c0_105 = arith.constant 0 : index
    %293 = vector.load %arg7[%c7, %c0_105] : memref<21x128xf32, #tpu.memory_space<vmem>>, vector<1x32xf32>
    %294 = vector.broadcast %293 : vector<1x32xf32> to vector<40x32xf32>
    %295 = arith.addf %292, %294 : vector<40x32xf32>
    %c0_106 = arith.constant 0 : index
    %c192 = arith.constant 192 : index
    %296 = vector.load %arg5[%c0_106, %c192] : memref<32x424xf32, #tpu.memory_space<vmem>>, vector<32x64xf32>
    %c0_107 = arith.constant 0 : index
    %c32_108 = arith.constant 32 : index
    %297 = vector.load %arg6[%c0_107, %c32_108] : memref<64x64xf32, #tpu.memory_space<vmem>>, vector<64x32xf32>
    %cst_109 = arith.constant dense<0.000000e+00> : vector<40x64xf32>
    %298 = tpu.matmul %295, %296, %cst_109 {dimension_numbers = #tpu.dot_dimension_numbers<[1], [0], [0], [1], [0, 0, 1, 1], [], []>} : vector<40x32xf32>, vector<32x64xf32>, vector<40x64xf32> -> vector<40x64xf32>
    %c14 = arith.constant 14 : index
    %c0_110 = arith.constant 0 : index
    %299 = vector.load %arg7[%c14, %c0_110] : memref<21x128xf32, #tpu.memory_space<vmem>>, vector<1x64xf32>
    %300 = vector.broadcast %299 : vector<1x64xf32> to vector<40x64xf32>
    %301 = arith.addf %298, %300 : vector<40x64xf32>
    %cst_111 = arith.constant 5.000000e-01 : f32
    %302 = vector.broadcast %cst_111 : f32 to vector<40x64xf32>
    %303 = arith.mulf %302, %301 : vector<40x64xf32>
    %cst_112 = arith.constant 0.707106769 : f32
    %304 = vector.broadcast %cst_112 : f32 to vector<40x64xf32>
    %305 = arith.mulf %301, %304 : vector<40x64xf32>
    %306 = math.erf %305 : vector<40x64xf32>
    %cst_113 = arith.constant 1.000000e+00 : f32
    %307 = vector.broadcast %cst_113 : f32 to vector<40x64xf32>
    %308 = arith.addf %307, %306 : vector<40x64xf32>
    %309 = arith.mulf %303, %308 : vector<40x64xf32>
    %cst_114 = arith.constant dense<0.000000e+00> : vector<40x32xf32>
    %310 = tpu.matmul %309, %297, %cst_114 {dimension_numbers = #tpu.dot_dimension_numbers<[1], [0], [0], [1], [0, 0, 1, 1], [], []>} : vector<40x64xf32>, vector<64x32xf32>, vector<40x32xf32> -> vector<40x32xf32>
    %c15 = arith.constant 15 : index
    %c0_115 = arith.constant 0 : index
    %311 = vector.load %arg7[%c15, %c0_115] : memref<21x128xf32, #tpu.memory_space<vmem>>, vector<1x32xf32>
    %312 = vector.broadcast %311 : vector<1x32xf32> to vector<40x32xf32>
    %313 = arith.addf %310, %312 : vector<40x32xf32>
    %314 = arith.addf %237, %313 : vector<40x32xf32>
    %cst_116 = arith.constant dense<0.000000e+00> : vector<40xf32>
    %315 = vector.multi_reduction <add>, %314, %cst_116 [1] : vector<40x32xf32> to vector<40xf32>
    %316 = vector.shape_cast %315 : vector<40xf32> to vector<40x1xf32>
    %cst_117 = arith.constant 3.200000e+01 : f32
    %317 = vector.broadcast %cst_117 : f32 to vector<40x1xf32>
    %318 = arith.divf %316, %317 : vector<40x1xf32>
    %319 = vector.broadcast %318 : vector<40x1xf32> to vector<40x32xf32>
    %320 = arith.subf %314, %319 : vector<40x32xf32>
    %321 = arith.mulf %320, %320 : vector<40x32xf32>
    %cst_118 = arith.constant dense<0.000000e+00> : vector<40xf32>
    %322 = vector.multi_reduction <add>, %321, %cst_118 [1] : vector<40x32xf32> to vector<40xf32>
    %323 = vector.shape_cast %322 : vector<40xf32> to vector<40x1xf32>
    %cst_119 = arith.constant 3.200000e+01 : f32
    %324 = vector.broadcast %cst_119 : f32 to vector<40x1xf32>
    %325 = arith.divf %323, %324 : vector<40x1xf32>
    %cst_120 = arith.constant 9.99999997E-7 : f32
    %326 = vector.broadcast %cst_120 : f32 to vector<40x1xf32>
    %327 = arith.addf %325, %326 : vector<40x1xf32>
    %328 = math.rsqrt %327 : vector<40x1xf32>
    %329 = vector.broadcast %328 : vector<40x1xf32> to vector<40x32xf32>
    %330 = arith.mulf %320, %329 : vector<40x32xf32>
    %c8 = arith.constant 8 : index
    %c0_121 = arith.constant 0 : index
    %331 = vector.load %arg7[%c8, %c0_121] : memref<21x128xf32, #tpu.memory_space<vmem>>, vector<1x32xf32>
    %332 = vector.broadcast %331 : vector<1x32xf32> to vector<40x32xf32>
    %333 = arith.mulf %330, %332 : vector<40x32xf32>
    %c9 = arith.constant 9 : index
    %c0_122 = arith.constant 0 : index
    %334 = vector.load %arg7[%c9, %c0_122] : memref<21x128xf32, #tpu.memory_space<vmem>>, vector<1x32xf32>
    %335 = vector.broadcast %334 : vector<1x32xf32> to vector<40x32xf32>
    %336 = arith.addf %333, %335 : vector<40x32xf32>
    %c17 = arith.constant 17 : index
    %c0_123 = arith.constant 0 : index
    %337 = vector.load %arg7[%c17, %c0_123] : memref<21x128xf32, #tpu.memory_space<vmem>>, vector<4x20xf32>
    %c0_124 = arith.constant 0 : index
    %c384 = arith.constant 384 : index
    %338 = vector.load %arg5[%c0_124, %c384] : memref<32x424xf32, #tpu.memory_space<vmem>>, vector<32x40xf32>
    %c16 = arith.constant 16 : index
    %c0_125 = arith.constant 0 : index
    %339 = vector.load %arg7[%c16, %c0_125] : memref<21x128xf32, #tpu.memory_space<vmem>>, vector<1x10xf32>
    %340 = vector.extract_strided_slice %336 {offsets = [0, 0], sizes = [20, 32], strides = [1, 1]} : vector<40x32xf32> to vector<20x32xf32>
    %cst_126 = arith.constant dense<0.000000e+00> : vector<4x32xf32>
    %341 = tpu.matmul %337, %340, %cst_126 {dimension_numbers = #tpu.dot_dimension_numbers<[1], [0], [0], [1], [0, 0, 1, 1], [], []>} : vector<4x20xf32>, vector<20x32xf32>, vector<4x32xf32> -> vector<4x32xf32>
    %342 = vector.extract_strided_slice %338 {offsets = [0, 0], sizes = [32, 10], strides = [1, 1]} : vector<32x40xf32> to vector<32x10xf32>
    %343 = vector.extract_strided_slice %341 {offsets = [0, 0], sizes = [1, 32], strides = [1, 1]} : vector<4x32xf32> to vector<1x32xf32>
    %cst_127 = arith.constant dense<0.000000e+00> : vector<1x10xf32>
    %344 = tpu.matmul %343, %342, %cst_127 {dimension_numbers = #tpu.dot_dimension_numbers<[1], [0], [0], [1], [0, 0, 1, 1], [], []>} : vector<1x32xf32>, vector<32x10xf32>, vector<1x10xf32> -> vector<1x10xf32>
    %345 = arith.addf %339, %344 : vector<1x10xf32>
    %346 = vector.extract_strided_slice %338 {offsets = [0, 10], sizes = [32, 10], strides = [1, 1]} : vector<32x40xf32> to vector<32x10xf32>
    %347 = vector.extract_strided_slice %341 {offsets = [1, 0], sizes = [1, 32], strides = [1, 1]} : vector<4x32xf32> to vector<1x32xf32>
    %cst_128 = arith.constant dense<0.000000e+00> : vector<1x10xf32>
    %348 = tpu.matmul %347, %346, %cst_128 {dimension_numbers = #tpu.dot_dimension_numbers<[1], [0], [0], [1], [0, 0, 1, 1], [], []>} : vector<1x32xf32>, vector<32x10xf32>, vector<1x10xf32> -> vector<1x10xf32>
    %349 = arith.addf %345, %348 : vector<1x10xf32>
    %350 = vector.extract_strided_slice %338 {offsets = [0, 20], sizes = [32, 10], strides = [1, 1]} : vector<32x40xf32> to vector<32x10xf32>
    %351 = vector.extract_strided_slice %341 {offsets = [2, 0], sizes = [1, 32], strides = [1, 1]} : vector<4x32xf32> to vector<1x32xf32>
    %cst_129 = arith.constant dense<0.000000e+00> : vector<1x10xf32>
    %352 = tpu.matmul %351, %350, %cst_129 {dimension_numbers = #tpu.dot_dimension_numbers<[1], [0], [0], [1], [0, 0, 1, 1], [], []>} : vector<1x32xf32>, vector<32x10xf32>, vector<1x10xf32> -> vector<1x10xf32>
    %353 = arith.addf %349, %352 : vector<1x10xf32>
    %354 = vector.extract_strided_slice %338 {offsets = [0, 30], sizes = [32, 10], strides = [1, 1]} : vector<32x40xf32> to vector<32x10xf32>
    %355 = vector.extract_strided_slice %341 {offsets = [3, 0], sizes = [1, 32], strides = [1, 1]} : vector<4x32xf32> to vector<1x32xf32>
    %cst_130 = arith.constant dense<0.000000e+00> : vector<1x10xf32>
    %356 = tpu.matmul %355, %354, %cst_130 {dimension_numbers = #tpu.dot_dimension_numbers<[1], [0], [0], [1], [0, 0, 1, 1], [], []>} : vector<1x32xf32>, vector<32x10xf32>, vector<1x10xf32> -> vector<1x10xf32>
    %357 = arith.addf %353, %356 : vector<1x10xf32>
    %358 = vector.extract_strided_slice %336 {offsets = [20, 0], sizes = [20, 32], strides = [1, 1]} : vector<40x32xf32> to vector<20x32xf32>
    %cst_131 = arith.constant dense<0.000000e+00> : vector<4x32xf32>
    %359 = tpu.matmul %337, %358, %cst_131 {dimension_numbers = #tpu.dot_dimension_numbers<[1], [0], [0], [1], [0, 0, 1, 1], [], []>} : vector<4x20xf32>, vector<20x32xf32>, vector<4x32xf32> -> vector<4x32xf32>
    %360 = vector.extract_strided_slice %338 {offsets = [0, 0], sizes = [32, 10], strides = [1, 1]} : vector<32x40xf32> to vector<32x10xf32>
    %361 = vector.extract_strided_slice %359 {offsets = [0, 0], sizes = [1, 32], strides = [1, 1]} : vector<4x32xf32> to vector<1x32xf32>
    %cst_132 = arith.constant dense<0.000000e+00> : vector<1x10xf32>
    %362 = tpu.matmul %361, %360, %cst_132 {dimension_numbers = #tpu.dot_dimension_numbers<[1], [0], [0], [1], [0, 0, 1, 1], [], []>} : vector<1x32xf32>, vector<32x10xf32>, vector<1x10xf32> -> vector<1x10xf32>
    %363 = arith.addf %339, %362 : vector<1x10xf32>
    %364 = vector.extract_strided_slice %338 {offsets = [0, 10], sizes = [32, 10], strides = [1, 1]} : vector<32x40xf32> to vector<32x10xf32>
    %365 = vector.extract_strided_slice %359 {offsets = [1, 0], sizes = [1, 32], strides = [1, 1]} : vector<4x32xf32> to vector<1x32xf32>
    %cst_133 = arith.constant dense<0.000000e+00> : vector<1x10xf32>
    %366 = tpu.matmul %365, %364, %cst_133 {dimension_numbers = #tpu.dot_dimension_numbers<[1], [0], [0], [1], [0, 0, 1, 1], [], []>} : vector<1x32xf32>, vector<32x10xf32>, vector<1x10xf32> -> vector<1x10xf32>
    %367 = arith.addf %363, %366 : vector<1x10xf32>
    %368 = vector.extract_strided_slice %338 {offsets = [0, 20], sizes = [32, 10], strides = [1, 1]} : vector<32x40xf32> to vector<32x10xf32>
    %369 = vector.extract_strided_slice %359 {offsets = [2, 0], sizes = [1, 32], strides = [1, 1]} : vector<4x32xf32> to vector<1x32xf32>
    %cst_134 = arith.constant dense<0.000000e+00> : vector<1x10xf32>
    %370 = tpu.matmul %369, %368, %cst_134 {dimension_numbers = #tpu.dot_dimension_numbers<[1], [0], [0], [1], [0, 0, 1, 1], [], []>} : vector<1x32xf32>, vector<32x10xf32>, vector<1x10xf32> -> vector<1x10xf32>
    %371 = arith.addf %367, %370 : vector<1x10xf32>
    %372 = vector.extract_strided_slice %338 {offsets = [0, 30], sizes = [32, 10], strides = [1, 1]} : vector<32x40xf32> to vector<32x10xf32>
    %373 = vector.extract_strided_slice %359 {offsets = [3, 0], sizes = [1, 32], strides = [1, 1]} : vector<4x32xf32> to vector<1x32xf32>
    %cst_135 = arith.constant dense<0.000000e+00> : vector<1x10xf32>
    %374 = tpu.matmul %373, %372, %cst_135 {dimension_numbers = #tpu.dot_dimension_numbers<[1], [0], [0], [1], [0, 0, 1, 1], [], []>} : vector<1x32xf32>, vector<32x10xf32>, vector<1x10xf32> -> vector<1x10xf32>
    %375 = arith.addf %371, %374 : vector<1x10xf32>
    %376 = tpu.concatenate %357, %375 in 0 : vector<1x10xf32>, vector<1x10xf32> -> vector<2x10xf32>
    %c0_136 = arith.constant 0 : index
    %c0_137 = arith.constant 0 : index
    %c0_138 = arith.constant 0 : index
    %377 = vector.load %arg8[%c0_136, %c0_137, %c0_138] : memref<1x2x10xf32, #tpu.memory_space<vmem>>, vector<1x2x10xf32>
    %378 = vector.shape_cast %377 : vector<1x2x10xf32> to vector<2x10xf32>
    %379 = vector.shape_cast %376 : vector<2x10xf32> to vector<1x2x10xf32>
    tpu.vector_store %arg8[%c0_136, %c0_137, %c0_138], %379 {strides = array<i32>} : memref<1x2x10xf32, #tpu.memory_space<vmem>>, vector<1x2x10xf32>,
    return
  }
  func.func @transform_0(%arg0: i32) -> (i32, i32, i32) {
    %c0_i32 = arith.constant 0 : i32
    %c0_i32_0 = arith.constant 0 : i32
    %c0_i32_1 = arith.constant 0 : i32
    return %arg0, %c0_i32, %c0_i32_0 : i32, i32, i32
  }
  func.func @transform_1(%arg0: i32) -> (i32, i32) {
    %c0_i32 = arith.constant 0 : i32
    %c0_i32_0 = arith.constant 0 : i32
    %c0_i32_1 = arith.constant 0 : i32
    return %c0_i32, %c0_i32_0 : i32, i32
  }
  func.func @transform_2(%arg0: i32) -> (i32, i32) {
    %c0_i32 = arith.constant 0 : i32
    %c0_i32_0 = arith.constant 0 : i32
    %c0_i32_1 = arith.constant 0 : i32
    return %c0_i32, %c0_i32_0 : i32, i32
  }
  func.func @transform_3(%arg0: i32) -> (i32, i32) {
    %c0_i32 = arith.constant 0 : i32
    %c0_i32_0 = arith.constant 0 : i32
    %c0_i32_1 = arith.constant 0 : i32
    return %c0_i32, %c0_i32_0 : i32, i32
  }
  func.func @transform_4(%arg0: i32) -> (i32, i32) {
    %c0_i32 = arith.constant 0 : i32
    %c0_i32_0 = arith.constant 0 : i32
    %c0_i32_1 = arith.constant 0 : i32
    return %c0_i32, %c0_i32_0 : i32, i32
  }
  func.func @transform_5(%arg0: i32) -> (i32, i32) {
    %c0_i32 = arith.constant 0 : i32
    %c0_i32_0 = arith.constant 0 : i32
    %c0_i32_1 = arith.constant 0 : i32
    return %c0_i32, %c0_i32_0 : i32, i32
  }
  func.func @transform_6(%arg0: i32) -> (i32, i32) {
    %c0_i32 = arith.constant 0 : i32
    %c0_i32_0 = arith.constant 0 : i32
    %c0_i32_1 = arith.constant 0 : i32
    return %c0_i32, %c0_i32_0 : i32, i32
  }
  func.func @transform_7(%arg0: i32) -> (i32, i32, i32) {
    %c0_i32 = arith.constant 0 : i32
    %c0_i32_0 = arith.constant 0 : i32
    %c0_i32_1 = arith.constant 0 : i32
    return %arg0, %c0_i32, %c0_i32_0 : i32, i32, i32
  }
}

</mosaic_0001>

<llo_original>
// kernel: vit_forward.1
$region0: #{vit_forward.1}
  #allocation0 [shape = 'u32[]', space=smem, size = 0x4, offset = 0x4, fixed_abs, tag = 'smem constant byte address 0x4 - core index']
  #allocation1 [shape = 'u32[144,128]{1,0:T(1,128)}', space=vmem, size = 0x12000, scoped, tag = 'internal scratch']
  %s0 = inlined_call_operand.vmem [shape: f32[1,40,240], index: 0, kind: input, shape index: {}]
  %s1 = inlined_call_operand.vmem [shape: f32[240,32], index: 1, kind: input, shape index: {}]
  %s2 = inlined_call_operand.vmem [shape: f32[40,64], index: 2, kind: input, shape index: {}]
  %s3 = inlined_call_operand.vmem [shape: f32[40,40], index: 3, kind: input, shape index: {}]
  %s4 = inlined_call_operand.vmem [shape: f32[32,424], index: 4, kind: input, shape index: {}]
  %s5 = inlined_call_operand.vmem [shape: f32[64,64], index: 5, kind: input, shape index: {}]
  %s6 = inlined_call_operand.vmem [shape: f32[21,128], index: 6, kind: input, shape index: {}]
  %s7 = inlined_call_operand.hbm [shape: f32[1,2,10], index: 7, kind: output, shape index: {}]
  %s8 = sld [smem:[#allocation0]]
  $region38: #{vit_forward.1} parent=0
    _
  %s10 = ssub.s32 1, %s8
  %s11 = scalar_select 0, %s10, %s8
  $region1: #{vit_forward.1} parent=0
    #allocation2 [shape = 'u8[1024]{0}', space=vmem, size = 0x400, scoped, tag = 'output window, operand 0, single buffered']
    #allocation3 [shape = 's32[1]{0}', space=sflag, size = 0x4, scoped, tag = 'scoped memory for vit_forward.1']
    %12 = vsyncpa [#allocation3], 0
    // Predicated region
    $region2: #{vit_forward.1} parent=1 // pred_check
      _
    $region3: #{vit_forward.1} parent=1 // pred_check_branch
      %14 = sbr.rel (0) target = $region5
    $region4: #{vit_forward.1} parent=1 // pred_region
      _
    $region5: #{vit_forward.1} parent=1 // pred_fallthru
      _
    // Predicated region
    $region6: #{vit_forward.1} parent=1 // pred_check
      _
    $region7: #{vit_forward.1} parent=1 // pred_check_branch
      %16 = sbr.rel (0) target = $region9
    $region8: #{vit_forward.1} parent=1 // pred_region
      _
    $region9: #{vit_forward.1} parent=1 // pred_fallthru
      _
    // Predicated region
    $region10: #{vit_forward.1} parent=1 // pred_check
      _
    $region11: #{vit_forward.1} parent=1 // pred_check_branch
      %18 = sbr.rel (0) target = $region13
    $region12: #{vit_forward.1} parent=1 // pred_region
      _
    $region13: #{vit_forward.1} parent=1 // pred_fallthru
      _
    // Predicated region
    $region14: #{vit_forward.1} parent=1 // pred_check
      _
    $region15: #{vit_forward.1} parent=1 // pred_check_branch
      %20 = sbr.rel (0) target = $region17
    $region16: #{vit_forward.1} parent=1 // pred_region
      _
    $region17: #{vit_forward.1} parent=1 // pred_fallthru
      _
    // Predicated region
    $region18: #{vit_forward.1} parent=1 // pred_check
      _
    $region19: #{vit_forward.1} parent=1 // pred_check_branch
      %22 = sbr.rel (0) target = $region21
    $region20: #{vit_forward.1} parent=1 // pred_region
      _
    $region21: #{vit_forward.1} parent=1 // pred_fallthru
      _
    // Predicated region
    $region22: #{vit_forward.1} parent=1 // pred_check
      _
    $region23: #{vit_forward.1} parent=1 // pred_check_branch
      %24 = sbr.rel (0) target = $region25
    $region24: #{vit_forward.1} parent=1 // pred_region
      _
    $region25: #{vit_forward.1} parent=1 // pred_fallthru
      _
    // Predicated region
    $region26: #{vit_forward.1} parent=1 // pred_check
      _
    $region27: #{vit_forward.1} parent=1 // pred_check_branch
      %26 = sbr.rel (0) target = $region29
    $region28: #{vit_forward.1} parent=1 // pred_region
      _
    $region29: #{vit_forward.1} parent=1 // pred_fallthru
      _
    %v27 = vld [vmem:[%s0] sm:$0xff]
    %v28 = vld [vmem:[%s0 + $0x8] sm:$0xff]
    %v29 = vld [vmem:[%s0 + $0x10] sm:$0xff]
    %v30 = vld [vmem:[%s0 + $0x18] sm:$0xff]
    %v31 = vld [vmem:[%s0 + $0x20] sm:$0xff]
    %v32 = vld [vmem:[%s0 + $0x28] sm:$0xff]
    %v33 = vld [vmem:[%s0 + $0x30] sm:$0xff]
    %v34 = vld [vmem:[%s0 + $0x38] sm:$0xff]
    %v35 = vld [vmem:[%s0 + $0x40] sm:$0xff]
    %v36 = vld [vmem:[%s0 + $0x48] sm:$0xff]
    %v37 = vld [vmem:[%s1] sm:$0xff]
    %v38 = vld [vmem:[%s1 + $0x8] sm:$0xff]
    %v39 = vld [vmem:[%s1 + $0x10] sm:$0xff]
    %v40 = vld [vmem:[%s1 + $0x18] sm:$0xff]
    %v41 = vld [vmem:[%s1 + $0x20] sm:$0xff]
    %v42 = vld [vmem:[%s1 + $0x28] sm:$0xff]
    %v43 = vld [vmem:[%s1 + $0x30] sm:$0xff]
    %v44 = vld [vmem:[%s1 + $0x38] sm:$0xff]
    %v45 = vld [vmem:[%s1 + $0x40] sm:$0xff]
    %v46 = vld [vmem:[%s1 + $0x48] sm:$0xff]
    %v47 = vld [vmem:[%s1 + $0x50] sm:$0xff]
    %v48 = vld [vmem:[%s1 + $0x58] sm:$0xff]
    %v49 = vld [vmem:[%s1 + $0x60] sm:$0xff]
    %v50 = vld [vmem:[%s1 + $0x68] sm:$0xff]
    %v51 = vld [vmem:[%s1 + $0x70] sm:$0xff]
    %v52 = vld [vmem:[%s1 + $0x78] sm:$0xff]
    %v53 = vld [vmem:[%s1 + $0x80] sm:$0xff]
    %v54 = vld [vmem:[%s1 + $0x88] sm:$0xff]
    %v55 = vld [vmem:[%s1 + $0x90] sm:$0xff]
    %v56 = vld [vmem:[%s1 + $0x98] sm:$0xff]
    %v57 = vld [vmem:[%s1 + $0xa0] sm:$0xff]
    %v58 = vld [vmem:[%s1 + $0xa8] sm:$0xff]
    %v59 = vld [vmem:[%s1 + $0xb0] sm:$0xff]
    %v60 = vld [vmem:[%s1 + $0xb8] sm:$0xff]
    %v61 = vld [vmem:[%s1 + $0xc0] sm:$0xff]
    %v62 = vld [vmem:[%s1 + $0xc8] sm:$0xff]
    %v63 = vld [vmem:[%s1 + $0xd0] sm:$0xff]
    %v64 = vld [vmem:[%s1 + $0xd8] sm:$0xff]
    %v65 = vld [vmem:[%s1 + $0xe0] sm:$0xff]
    %v66 = vld [vmem:[%s1 + $0xe8] sm:$0xff]
    %v67 = vld [vmem:[%s2] sm:$0xff]
    %v68 = vld [vmem:[%s2 + $0x8] sm:$0xff]
    %v69 = vld [vmem:[%s2 + $0x10] sm:$0xff]
    %v70 = vld [vmem:[%s2 + $0x18] sm:$0xff]
    %v71 = vld [vmem:[%s2 + $0x20] sm:$0xff]
    %vm72 = vcmask 916480
    %v74 = vsel %vm72, %v28, 0
    %v77 = vsel %vm72, %v30, 0
    %v80 = vsel %vm72, %v32, 0
    %v83 = vsel %vm72, %v34, 0
    %v86 = vsel %vm72, %v36, 0
    %88 = vmatprep.subr.mxu0 0.0
    %89 = vmatpush1.msra.mxu0 %v37
    %90 = vmatprep.subr.mxu0 0.0
    %91 = vmatpush1.msra.mxu0 %v38
    %92 = vmatprep.subr.mxu0 0.0
    %93 = vmatpush1.msra.mxu0 %v39
    %94 = vmatprep.subr.mxu0 0.0
    %95 = vmatpush1.msra.mxu0 %v40
    %96 = vmatprep.subr.mxu0 0.0
    %97 = vmatpush1.msra.mxu0 %v41
    %98 = vmatprep.subr.mxu0 0.0
    %99 = vmatpush1.msra.mxu0 %v42
    %100 = vmatprep.subr.mxu0 0.0
    %101 = vmatpush1.msra.mxu0 %v43
    %102 = vmatprep.subr.mxu0 0.0
    %103 = vmatpush1.msra.mxu0 %v44
    %104 = vmatprep.subr.mxu0 0.0
    %105 = vmatpush1.msra.mxu0 %v45
    %106 = vmatprep.subr.mxu0 0.0
    %107 = vmatpush1.msra.mxu0 %v46
    %108 = vmatprep.subr.mxu0 0.0
    %109 = vmatpush1.msra.mxu0 %v47
    %110 = vmatprep.subr.mxu0 0.0
    %111 = vmatpush1.msra.mxu0 %v48
    %112 = vmatprep.subr.mxu0 0.0
    %113 = vmatpush1.msra.mxu0 %v49
    %114 = vmatprep.subr.mxu0 0.0
    %115 = vmatpush1.msra.mxu0 %v50
    %116 = vmatprep.subr.mxu0 0.0
    %117 = vmatpush1.msra.mxu0 %v51
    %118 = vmatprep.subr.mxu0 0.0
    %119 = vmatpush1.msra.mxu0 %v52
    %120 = vmatprep.subr.mxu0 0.0
    %121 = vmatpush1.msra.mxu0 %v53
    %122 = vmatprep.subr.mxu0 0.0
    %123 = vmatpush1.msra.mxu0 %v54
    %124 = vmatprep.subr.mxu0 0.0
    %125 = vmatpush1.msra.mxu0 %v55
    %126 = vmatprep.subr.mxu0 0.0
    %127 = vmatpush1.msra.mxu0 %v56
    %128 = vmatprep.subr.mxu0 0.0
    %129 = vmatpush1.msra.mxu0 %v57
    %130 = vmatprep.subr.mxu0 0.0
    %131 = vmatpush1.msra.mxu0 %v58
    %132 = vmatprep.subr.mxu0 0.0
    %133 = vmatpush1.msra.mxu0 %v59
    %134 = vmatprep.subr.mxu0 0.0
    %135 = vmatpush1.msra.mxu0 %v60
    %136 = vmatprep.subr.mxu0 0.0
    %137 = vmatpush1.msra.mxu0 %v61
    %138 = vmatprep.subr.mxu0 0.0
    %139 = vmatpush1.msra.mxu0 %v62
    %140 = vmatprep.subr.mxu0 0.0
    %141 = vmatpush1.msra.mxu0 %v63
    %142 = vmatprep.subr.mxu0 0.0
    %143 = vmatpush1.msra.mxu0 %v64
    %144 = vmatprep.subr.mxu0 0.0
    %145 = vmatpush1.msra.mxu0 %v65
    %146 = vmatprep.subr.mxu0 0.0
    %147 = vmatpush1.msra.mxu0 %v66
    %148 = vmatprep.subr.mxu0 0.0
    %149 = vmatpush1.msra.mxu0 0.0
    %150 = vmatprep.subr.mxu0 0.0
    %151 = vmatpush1.msra.mxu0 0.0
    %152 = vmatprep.mubr.f32.mxu0 %v74
    %153 = vmatmul.mubr.f32.gmra.mrb[0].mxu0 %v27
    %v154 = vpop.f32.mrb[0].mxu0
    %v155 = vadd.f32 %v67, %v154
    %v156 = vpop.f32.mrb[0].mxu0
    %157 = vmatprep.mubr.f32.mxu0 %v77
    %158 = vmatmul.mubr.f32.gmra.mrb[0].mxu0 %v29
    %v159 = vpop.f32.mrb[0].mxu0
    %v160 = vadd.f32 %v68, %v159
    %v161 = vpop.f32.mrb[0].mxu0
    %162 = vmatprep.mubr.f32.mxu0 %v80
    %163 = vmatmul.mubr.f32.gmra.mrb[0].mxu0 %v31
    %v164 = vpop.f32.mrb[0].mxu0
    %v165 = vadd.f32 %v69, %v164
    %v166 = vpop.f32.mrb[0].mxu0
    %167 = vmatprep.mubr.f32.mxu0 %v83
    %168 = vmatmul.mubr.f32.gmra.mrb[0].mxu0 %v33
    %v169 = vpop.f32.mrb[0].mxu0
    %v170 = vadd.f32 %v70, %v169
    %v171 = vpop.f32.mrb[0].mxu0
    %172 = vmatprep.mubr.f32.mxu0 %v86
    %173 = vmatmul.mubr.f32.gmra.mrb[0].mxu0 %v35
    %v174 = vpop.f32.mrb[0].mxu0
    %v175 = vadd.f32 %v71, %v174
    %v176 = vpop.f32.mrb[0].mxu0
    %177 = vdwg.mxu0
    %vm178 = vcmask 261120
    %v179 = vsel %vm178, %v155, 0.0
    %180 = vadd.xlane.f32.xlu0 %v179
    %v181 = vpop.xlane.xlu0 %180
    %v182 = vsel %vm178, %v160, 0.0
    %183 = vadd.xlane.f32.xlu0 %v182
    %v184 = vpop.xlane.xlu0 %183
    %v185 = vsel %vm178, %v165, 0.0
    %186 = vadd.xlane.f32.xlu0 %v185
    %v187 = vpop.xlane.xlu0 %186
    %v188 = vsel %vm178, %v170, 0.0
    %189 = vadd.xlane.f32.xlu0 %v188
    %v190 = vpop.xlane.xlu0 %189
    %v191 = vsel %vm178, %v175, 0.0
    %192 = vadd.xlane.f32.xlu0 %v191
    %v193 = vpop.xlane.xlu0 %192
    %v194 = vrcp.pop 32.0
    %v195 = vmul.f32 %v181, %v194
    %v196 = vmul.f32 %v184, %v194
    %v197 = vmul.f32 %v187, %v194
    %v198 = vmul.f32 %v190, %v194
    %v199 = vmul.f32 %v193, %v194
    %v200 = vsub.f32 %v155, %v195
    %v201 = vsub.f32 %v160, %v196
    %v202 = vsub.f32 %v165, %v197
    %v203 = vsub.f32 %v170, %v198
    %v204 = vsub.f32 %v175, %v199
    %v205 = vmul.f32 %v200, %v200
    %v206 = vmul.f32 %v201, %v201
    %v207 = vmul.f32 %v202, %v202
    %v208 = vmul.f32 %v203, %v203
    %v209 = vmul.f32 %v204, %v204
    %v210 = vsel %vm178, %v205, 0.0
    %211 = vadd.xlane.f32.xlu0 %v210
    %v212 = vpop.xlane.xlu0 %211
    %v213 = vsel %vm178, %v206, 0.0
    %214 = vadd.xlane.f32.xlu0 %v213
    %v215 = vpop.xlane.xlu0 %214
    %v216 = vsel %vm178, %v207, 0.0
    %217 = vadd.xlane.f32.xlu0 %v216
    %v218 = vpop.xlane.xlu0 %217
    %v219 = vsel %vm178, %v208, 0.0
    %220 = vadd.xlane.f32.xlu0 %v219
    %v221 = vpop.xlane.xlu0 %220
    %v222 = vsel %vm178, %v209, 0.0
    %223 = vadd.xlane.f32.xlu0 %v222
    %v224 = vpop.xlane.xlu0 %223
    %v225 = vmul.f32 %v212, %v194
    %v226 = vmul.f32 %v215, %v194
    %v227 = vmul.f32 %v218, %v194
    %v228 = vmul.f32 %v221, %v194
    %v229 = vmul.f32 %v224, %v194
    %v230 = vadd.f32 %v225, 1e-06
    %v231 = vadd.f32 %v226, 1e-06
    %v232 = vadd.f32 %v227, 1e-06
    %v233 = vadd.f32 %v228, 1e-06
    %v234 = vadd.f32 %v229, 1e-06
    %v235 = vrsqrt.pop %v230
    %v236 = vrsqrt.pop %v231
    %v237 = vrsqrt.pop %v232
    %v238 = vrsqrt.pop %v233
    %v239 = vrsqrt.pop %v234
    %v240 = vmul.f32 %v200, %v235
    %v241 = vmul.f32 %v201, %v236
    %v242 = vmul.f32 %v202, %v237
    %v243 = vmul.f32 %v203, %v238
    %v244 = vmul.f32 %v204, %v239
    %v245 = vld [vmem:[%s6] sm:$0x1]
    %v246 = vlaneseq
    %v247 = vshrl.u32 %v246, 7
    %v248 = vsub.s32 0, %v247
    %v249 = vrot.slane %v245, %v248
    %v250 = vmul.f32 %v240, %v249
    %v251 = vmul.f32 %v241, %v249
    %v252 = vmul.f32 %v242, %v249
    %v253 = vmul.f32 %v243, %v249
    %v254 = vmul.f32 %v244, %v249
    %v255 = vld [vmem:[%s6 + $0x1] sm:$0x1]
    %v256 = vlaneseq
    %v257 = vshrl.u32 %v256, 7
    %v258 = vsub.s32 0, %v257
    %v259 = vrot.slane %v255, %v258
    %v260 = vadd.f32 %v250, %v259
    %v261 = vadd.f32 %v251, %v259
    %v262 = vadd.f32 %v252, %v259
    %v263 = vadd.f32 %v253, %v259
    %v264 = vadd.f32 %v254, %v259
    %v265 = vld [vmem:[%s4] sm:$0xff]
    %v266 = vld [vmem:[%s4 + $0x20] sm:$0xff]
    %v267 = vld [vmem:[%s4 + $0x40] sm:$0xff]
    %v268 = vld [vmem:[%s4 + $0x60] sm:$0xff]
    %v269 = vld [vmem:[%s6 + $0xa] sm:$0x1]
    %v270 = vlaneseq
    %v271 = vshrl.u32 %v270, 7
    %v272 = vsub.s32 0, %v271
    %v273 = vrot.slane %v269, %v272
    %v275 = vsel %vm178, %v260, 0
    %v278 = vsel %vm178, %v261, 0
    %v281 = vsel %vm178, %v262, 0
    %v284 = vsel %vm178, %v263, 0
    %v287 = vsel %vm178, %v264, 0
    %289 = vmatprep.subr.mxu0 0.0
    %290 = vmatpush1.msra.mxu0 %v265
    %291 = vmatprep.subr.mxu0 0.0
    %292 = vmatpush1.msra.mxu0 %v266
    %293 = vmatprep.subr.mxu0 0.0
    %294 = vmatpush1.msra.mxu0 %v267
    %295 = vmatprep.subr.mxu0 0.0
    %296 = vmatpush1.msra.mxu0 %v268
    %297 = vmatprep.subr.mxu0 0.0
    %298 = vmatpush1.msra.mxu0 0.0
    %299 = vmatprep.subr.mxu0 0.0
    %300 = vmatpush1.msra.mxu0 0.0
    %301 = vmatprep.subr.mxu0 0.0
    %302 = vmatpush1.msra.mxu0 0.0
    %303 = vmatprep.subr.mxu0 0.0
    %304 = vmatpush1.msra.mxu0 0.0
    %305 = vmatprep.subr.mxu0 0.0
    %306 = vmatpush1.msra.mxu0 0.0
    %307 = vmatprep.subr.mxu0 0.0
    %308 = vmatpush1.msra.mxu0 0.0
    %309 = vmatprep.subr.mxu0 0.0
    %310 = vmatpush1.msra.mxu0 0.0
    %311 = vmatprep.subr.mxu0 0.0
    %312 = vmatpush1.msra.mxu0 0.0
    %313 = vmatprep.subr.mxu0 0.0
    %314 = vmatpush1.msra.mxu0 0.0
    %315 = vmatprep.subr.mxu0 0.0
    %316 = vmatpush1.msra.mxu0 0.0
    %317 = vmatprep.subr.mxu0 0.0
    %318 = vmatpush1.msra.mxu0 0.0
    %319 = vmatprep.subr.mxu0 0.0
    %320 = vmatpush1.msra.mxu0 0.0
    %321 = vmatprep.subr.mxu0 0.0
    %322 = vmatpush1.msra.mxu0 0.0
    %323 = vmatprep.subr.mxu0 0.0
    %324 = vmatpush1.msra.mxu0 0.0
    %325 = vmatprep.subr.mxu0 0.0
    %326 = vmatpush1.msra.mxu0 0.0
    %327 = vmatprep.subr.mxu0 0.0
    %328 = vmatpush1.msra.mxu0 0.0
    %329 = vmatprep.subr.mxu0 0.0
    %330 = vmatpush1.msra.mxu0 0.0
    %331 = vmatprep.subr.mxu0 0.0
    %332 = vmatpush1.msra.mxu0 0.0
    %333 = vmatprep.subr.mxu0 0.0
    %334 = vmatpush1.msra.mxu0 0.0
    %335 = vmatprep.subr.mxu0 0.0
    %336 = vmatpush1.msra.mxu0 0.0
    %337 = vmatprep.subr.mxu0 0.0
    %338 = vmatpush1.msra.mxu0 0.0
    %339 = vmatprep.subr.mxu0 0.0
    %340 = vmatpush1.msra.mxu0 0.0
    %341 = vmatprep.subr.mxu0 0.0
    %342 = vmatpush1.msra.mxu0 0.0
    %343 = vmatprep.subr.mxu0 0.0
    %344 = vmatpush1.msra.mxu0 0.0
    %345 = vmatprep.subr.mxu0 0.0
    %346 = vmatpush1.msra.mxu0 0.0
    %347 = vmatprep.subr.mxu0 0.0
    %348 = vmatpush1.msra.mxu0 0.0
    %349 = vmatprep.subr.mxu0 0.0
    %350 = vmatpush1.msra.mxu0 0.0
    %351 = vmatprep.subr.mxu0 0.0
    %352 = vmatpush1.msra.mxu0 0.0
    %353 = vmatprep.mubr.f32.mxu0 0.0
    %354 = vmatmul.mubr.f32.gmra.mrb[0].mxu0 %v275
    %v355 = vpop.f32.mrb[0].mxu0
    %v356 = vadd.f32 %v273, %v355
    %v357 = vpop.f32.mrb[0].mxu0
    %358 = vmatprep.mubr.f32.mxu0 0.0
    %359 = vmatmul.mubr.f32.gmra.mrb[0].mxu0 %v278
    %v360 = vpop.f32.mrb[0].mxu0
    %v361 = vadd.f32 %v273, %v360
    %v362 = vpop.f32.mrb[0].mxu0
    %363 = vmatprep.mubr.f32.mxu0 0.0
    %364 = vmatmul.mubr.f32.gmra.mrb[0].mxu0 %v281
    %v365 = vpop.f32.mrb[0].mxu0
    %v366 = vadd.f32 %v273, %v365
    %v367 = vpop.f32.mrb[0].mxu0
    %368 = vmatprep.mubr.f32.mxu0 0.0
    %369 = vmatmul.mubr.f32.gmra.mrb[0].mxu0 %v284
    %v370 = vpop.f32.mrb[0].mxu0
    %v371 = vadd.f32 %v273, %v370
    %v372 = vpop.f32.mrb[0].mxu0
    %373 = vmatprep.mubr.f32.mxu0 0.0
    %374 = vmatmul.mubr.f32.gmra.mrb[0].mxu0 %v287
    %v375 = vpop.f32.mrb[0].mxu0
    %v376 = vadd.f32 %v273, %v375
    %v377 = vpop.f32.mrb[0].mxu0
    %378 = vdwg.mxu0
    %382 = vrot.lane.b32.xlu0 %v356, 96
    %v383 = vpop.permute.xlu0 %382
    %384 = vrot.lane.b32.xlu0 %v361, 96
    %v385 = vpop.permute.xlu0 %384
    %386 = vrot.lane.b32.xlu0 %v366, 96
    %v387 = vpop.permute.xlu0 %386
    %vm388 = vcmask 64512
    %v389 = vsel %vm388, %v356, 0
    %v391 = vsel %vm388, %v361, 0
    %v393 = vsel %vm388, %v366, 0
    %v395 = vsel %vm388, %v383, 0
    %v397 = vsel %vm388, %v385, 0
    %v399 = vsel %vm388, %v387, 0
    %401 = vmatprep.subr.mxu0 0.0
    %402 = vmatpush1.xpose.msra.mxu0 %v395
    %403 = vmatprep.subr.mxu0 0.0
    %404 = vmatpush1.xpose.msra.mxu0 %v397
    %405 = vmatprep.subr.mxu0 0.0
    %406 = vmatpush1.xpose.msra.mxu0 %v399
    %407 = vmatprep.subr.mxu0 0.0
    %408 = vmatpush1.xpose.msra.mxu0 0.0
    %409 = vmatprep.subr.mxu0 0.0
    %410 = vmatpush1.xpose.msra.mxu0 0.0
    %411 = vmatprep.subr.mxu0 0.0
    %412 = vmatpush1.xpose.msra.mxu0 0.0
    %413 = vmatprep.subr.mxu0 0.0
    %414 = vmatpush1.xpose.msra.mxu0 0.0
    %415 = vmatprep.subr.mxu0 0.0
    %416 = vmatpush1.xpose.msra.mxu0 0.0
    %417 = vmatprep.subr.mxu0 0.0
    %418 = vmatpush1.xpose.msra.mxu0 0.0
    %419 = vmatprep.subr.mxu0 0.0
    %420 = vmatpush1.xpose.msra.mxu0 0.0
    %421 = vmatprep.subr.mxu0 0.0
    %422 = vmatpush1.xpose.msra.mxu0 0.0
    %423 = vmatprep.subr.mxu0 0.0
    %424 = vmatpush1.xpose.msra.mxu0 0.0
    %425 = vmatprep.subr.mxu0 0.0
    %426 = vmatpush1.xpose.msra.mxu0 0.0
    %427 = vmatprep.subr.mxu0 0.0
    %428 = vmatpush1.xpose.msra.mxu0 0.0
    %429 = vmatprep.subr.mxu0 0.0
    %430 = vmatpush1.xpose.msra.mxu0 0.0
    %431 = vmatprep.subr.mxu0 0.0
    %432 = vmatpush1.xpose.msra.mxu0 0.0
    %433 = vmatprep.subr.mxu0 0.0
    %434 = vmatpush1.xpose.msra.mxu0 0.0
    %435 = vmatprep.subr.mxu0 0.0
    %436 = vmatpush1.xpose.msra.mxu0 0.0
    %437 = vmatprep.subr.mxu0 0.0
    %438 = vmatpush1.xpose.msra.mxu0 0.0
    %439 = vmatprep.subr.mxu0 0.0
    %440 = vmatpush1.xpose.msra.mxu0 0.0
    %441 = vmatprep.subr.mxu0 0.0
    %442 = vmatpush1.xpose.msra.mxu0 0.0
    %443 = vmatprep.subr.mxu0 0.0
    %444 = vmatpush1.xpose.msra.mxu0 0.0
    %445 = vmatprep.subr.mxu0 0.0
    %446 = vmatpush1.xpose.msra.mxu0 0.0
    %447 = vmatprep.subr.mxu0 0.0
    %448 = vmatpush1.xpose.msra.mxu0 0.0
    %449 = vmatprep.subr.mxu0 0.0
    %450 = vmatpush1.xpose.msra.mxu0 0.0
    %451 = vmatprep.subr.mxu0 0.0
    %452 = vmatpush1.xpose.msra.mxu0 0.0
    %453 = vmatprep.subr.mxu0 0.0
    %454 = vmatpush1.xpose.msra.mxu0 0.0
    %455 = vmatprep.subr.mxu0 0.0
    %456 = vmatpush1.xpose.msra.mxu0 0.0
    %457 = vmatprep.subr.mxu0 0.0
    %458 = vmatpush1.xpose.msra.mxu0 0.0
    %459 = vmatprep.subr.mxu0 0.0
    %460 = vmatpush1.xpose.msra.mxu0 0.0
    %461 = vmatprep.subr.mxu0 0.0
    %462 = vmatpush1.xpose.msra.mxu0 0.0
    %463 = vmatprep.subr.mxu0 0.0
    %464 = vmatpush1.xpose.msra.mxu0 0.0
    %465 = vmatprep.mubr.f32.mxu0 0.0
    %466 = vmatmul.mubr.f32.gmra.mrb[0].mxu0 %v389
    %v467 = vpop.f32.mrb[0].mxu0
    %v468 = vadd.f32 0.0, %v467
    %v469 = vpop.f32.mrb[0].mxu0
    %470 = vmatprep.mubr.f32.mxu0 0.0
    %471 = vmatmul.mubr.f32.gmra.mrb[0].mxu0 %v391
    %v472 = vpop.f32.mrb[0].mxu0
    %v473 = vadd.f32 0.0, %v472
    %v474 = vpop.f32.mrb[0].mxu0
    %475 = vmatprep.mubr.f32.mxu0 0.0
    %476 = vmatmul.mubr.f32.gmra.mrb[0].mxu0 %v393
    %v477 = vpop.f32.mrb[0].mxu0
    %v478 = vadd.f32 0.0, %v477
    %v479 = vpop.f32.mrb[0].mxu0
    %480 = vdwg.mxu0
    %v481 = vmul.f32 %v468, 0.35355338
    %v482 = vmul.f32 %v473, 0.35355338
    %v483 = vmul.f32 %v478, 0.35355338
    %vm484 = vcmask 162816
    %v485 = vsel %vm484, %v481, -inf
    %486 = vmax.xlane.f32.xlu0 %v485
    %v487 = vpop.xlane.xlu0 %486
    %v488 = vsel %vm484, %v482, -inf
    %489 = vmax.xlane.f32.xlu0 %v488
    %v490 = vpop.xlane.xlu0 %489
    %vm491 = vcmask 158720
    %v492 = vsel %vm491, %v483, -inf
    %493 = vmax.xlane.f32.xlu0 %v492
    %v494 = vpop.xlane.xlu0 %493
    %v495 = vsub.f32 %v481, %v487
    %v496 = vsub.f32 %v482, %v490
    %v497 = vsub.f32 %v483, %v494
    %v498 = vmul.f32 %v495, 1.442695
    %v499 = vpow.pop %v498
    %v500 = vmul.f32 %v496, 1.442695
    %v501 = vpow.pop %v500
    %v502 = vmul.f32 %v497, 1.442695
    %v503 = vpow.pop %v502
    %v504 = vsel %vm484, %v499, 0.0
    %505 = vadd.xlane.f32.xlu0 %v504
    %v506 = vpop.xlane.xlu0 %505
    %v507 = vsel %vm484, %v501, 0.0
    %508 = vadd.xlane.f32.xlu0 %v507
    %v509 = vpop.xlane.xlu0 %508
    %v510 = vsel %vm491, %v503, 0.0
    %511 = vadd.xlane.f32.xlu0 %v510
    %v512 = vpop.xlane.xlu0 %511
    %v513 = vrcp.pop %v506
    %v514 = vrcp.pop %v509
    %v515 = vrcp.pop %v512
    %v516 = vmul.f32 %v499, %v513
    %v517 = vmul.f32 %v501, %v514
    %v518 = vmul.f32 %v503, %v515
    %519 = vrot.lane.b32.xlu0 %v356, 64
    %v520 = vpop.permute.xlu0 %519
    %521 = vrot.lane.b32.xlu0 %v361, 64
    %v522 = vpop.permute.xlu0 %521
    %523 = vrot.lane.b32.xlu0 %v366, 64
    %v524 = vpop.permute.xlu0 %523
    %v528 = vsel %vm484, %v516, 0
    %v531 = vsel %vm484, %v517, 0
    %v534 = vsel %vm484, %v518, 0
    %vm536 = vcmask 1043456
    %v537 = vsel %vm536, %v524, 0
    %539 = vmatprep.subr.mxu0 0.0
    %540 = vmatpush1.msra.mxu0 %v520
    %541 = vmatprep.subr.mxu0 0.0
    %542 = vmatpush1.msra.mxu0 %v522
    %543 = vmatprep.subr.mxu0 0.0
    %544 = vmatpush1.msra.mxu0 %v537
    %545 = vmatprep.subr.mxu0 0.0
    %546 = vmatpush1.msra.mxu0 0.0
    %547 = vmatprep.subr.mxu0 0.0
    %548 = vmatpush1.msra.mxu0 0.0
    %549 = vmatprep.subr.mxu0 0.0
    %550 = vmatpush1.msra.mxu0 0.0
    %551 = vmatprep.subr.mxu0 0.0
    %552 = vmatpush1.msra.mxu0 0.0
    %553 = vmatprep.subr.mxu0 0.0
    %554 = vmatpush1.msra.mxu0 0.0
    %555 = vmatprep.subr.mxu0 0.0
    %556 = vmatpush1.msra.mxu0 0.0
    %557 = vmatprep.subr.mxu0 0.0
    %558 = vmatpush1.msra.mxu0 0.0
    %559 = vmatprep.subr.mxu0 0.0
    %560 = vmatpush1.msra.mxu0 0.0
    %561 = vmatprep.subr.mxu0 0.0
    %562 = vmatpush1.msra.mxu0 0.0
    %563 = vmatprep.subr.mxu0 0.0
    %564 = vmatpush1.msra.mxu0 0.0
    %565 = vmatprep.subr.mxu0 0.0
    %566 = vmatpush1.msra.mxu0 0.0
    %567 = vmatprep.subr.mxu0 0.0
    %568 = vmatpush1.msra.mxu0 0.0
    %569 = vmatprep.subr.mxu0 0.0
    %570 = vmatpush1.msra.mxu0 0.0
    %571 = vmatprep.subr.mxu0 0.0
    %572 = vmatpush1.msra.mxu0 0.0
    %573 = vmatprep.subr.mxu0 0.0
    %574 = vmatpush1.msra.mxu0 0.0
    %575 = vmatprep.subr.mxu0 0.0
    %576 = vmatpush1.msra.mxu0 0.0
    %577 = vmatprep.subr.mxu0 0.0
    %578 = vmatpush1.msra.mxu0 0.0
    %579 = vmatprep.subr.mxu0 0.0
    %580 = vmatpush1.msra.mxu0 0.0
    %581 = vmatprep.subr.mxu0 0.0
    %582 = vmatpush1.msra.mxu0 0.0
    %583 = vmatprep.subr.mxu0 0.0
    %584 = vmatpush1.msra.mxu0 0.0
    %585 = vmatprep.subr.mxu0 0.0
    %586 = vmatpush1.msra.mxu0 0.0
    %587 = vmatprep.subr.mxu0 0.0
    %588 = vmatpush1.msra.mxu0 0.0
    %589 = vmatprep.subr.mxu0 0.0
    %590 = vmatpush1.msra.mxu0 0.0
    %591 = vmatprep.subr.mxu0 0.0
    %592 = vmatpush1.msra.mxu0 0.0
    %593 = vmatprep.subr.mxu0 0.0
    %594 = vmatpush1.msra.mxu0 0.0
    %595 = vmatprep.subr.mxu0 0.0
    %596 = vmatpush1.msra.mxu0 0.0
    %597 = vmatprep.subr.mxu0 0.0
    %598 = vmatpush1.msra.mxu0 0.0
    %599 = vmatprep.subr.mxu0 0.0
    %600 = vmatpush1.msra.mxu0 0.0
    %601 = vmatprep.subr.mxu0 0.0
    %602 = vmatpush1.msra.mxu0 0.0
    %603 = vmatprep.mubr.f32.mxu0 0.0
    %604 = vmatmul.mubr.f32.gmra.mrb[0].mxu0 %v528
    %v605 = vpop.f32.mrb[0].mxu0
    %v606 = vadd.f32 0.0, %v605
    %v607 = vpop.f32.mrb[0].mxu0
    %608 = vmatprep.mubr.f32.mxu0 0.0
    %609 = vmatmul.mubr.f32.gmra.mrb[0].mxu0 %v531
    %v610 = vpop.f32.mrb[0].mxu0
    %v611 = vadd.f32 0.0, %v610
    %v612 = vpop.f32.mrb[0].mxu0
    %613 = vmatprep.mubr.f32.mxu0 0.0
    %614 = vmatmul.mubr.f32.gmra.mrb[0].mxu0 %v534
    %v615 = vpop.f32.mrb[0].mxu0
    %v616 = vadd.f32 0.0, %v615
    %v617 = vpop.f32.mrb[0].mxu0
    %618 = vdwg.mxu0
    %619 = vrot.lane.b32.xlu0 %v356, 120
    %v620 = vpop.permute.xlu0 %619
    %621 = vrot.lane.b32.xlu0 %v361, 120
    %v622 = vpop.permute.xlu0 %621
    %623 = vrot.lane.b32.xlu0 %v366, 120
    %v624 = vpop.permute.xlu0 %623
    %625 = vrot.lane.b32.xlu0 %v356, 88
    %v626 = vpop.permute.xlu0 %625
    %627 = vrot.lane.b32.xlu0 %v361, 88
    %v628 = vpop.permute.xlu0 %627
    %629 = vrot.lane.b32.xlu0 %v366, 88
    %v630 = vpop.permute.xlu0 %629
    %v631 = vsel %vm388, %v620, 0
    %v633 = vsel %vm388, %v622, 0
    %v635 = vsel %vm388, %v624, 0
    %v637 = vsel %vm388, %v626, 0
    %v639 = vsel %vm388, %v628, 0
    %v641 = vsel %vm388, %v630, 0
    %643 = vmatprep.subr.mxu0 0.0
    %644 = vmatpush1.xpose.msra.mxu0 %v637
    %645 = vmatprep.subr.mxu0 0.0
    %646 = vmatpush1.xpose.msra.mxu0 %v639
    %647 = vmatprep.subr.mxu0 0.0
    %648 = vmatpush1.xpose.msra.mxu0 %v641
    %649 = vmatprep.subr.mxu0 0.0
    %650 = vmatpush1.xpose.msra.mxu0 0.0
    %651 = vmatprep.subr.mxu0 0.0
    %652 = vmatpush1.xpose.msra.mxu0 0.0
    %653 = vmatprep.subr.mxu0 0.0
    %654 = vmatpush1.xpose.msra.mxu0 0.0
    %655 = vmatprep.subr.mxu0 0.0
    %656 = vmatpush1.xpose.msra.mxu0 0.0
    %657 = vmatprep.subr.mxu0 0.0
    %658 = vmatpush1.xpose.msra.mxu0 0.0
    %659 = vmatprep.subr.mxu0 0.0
    %660 = vmatpush1.xpose.msra.mxu0 0.0
    %661 = vmatprep.subr.mxu0 0.0
    %662 = vmatpush1.xpose.msra.mxu0 0.0
    %663 = vmatprep.subr.mxu0 0.0
    %664 = vmatpush1.xpose.msra.mxu0 0.0
    %665 = vmatprep.subr.mxu0 0.0
    %666 = vmatpush1.xpose.msra.mxu0 0.0
    %667 = vmatprep.subr.mxu0 0.0
    %668 = vmatpush1.xpose.msra.mxu0 0.0
    %669 = vmatprep.subr.mxu0 0.0
    %670 = vmatpush1.xpose.msra.mxu0 0.0
    %671 = vmatprep.subr.mxu0 0.0
    %672 = vmatpush1.xpose.msra.mxu0 0.0
    %673 = vmatprep.subr.mxu0 0.0
    %674 = vmatpush1.xpose.msra.mxu0 0.0
    %675 = vmatprep.subr.mxu0 0.0
    %676 = vmatpush1.xpose.msra.mxu0 0.0
    %677 = vmatprep.subr.mxu0 0.0
    %678 = vmatpush1.xpose.msra.mxu0 0.0
    %679 = vmatprep.subr.mxu0 0.0
    %680 = vmatpush1.xpose.msra.mxu0 0.0
    %681 = vmatprep.subr.mxu0 0.0
    %682 = vmatpush1.xpose.msra.mxu0 0.0
    %683 = vmatprep.subr.mxu0 0.0
    %684 = vmatpush1.xpose.msra.mxu0 0.0
    %685 = vmatprep.subr.mxu0 0.0
    %686 = vmatpush1.xpose.msra.mxu0 0.0
    %687 = vmatprep.subr.mxu0 0.0
    %688 = vmatpush1.xpose.msra.mxu0 0.0
    %689 = vmatprep.subr.mxu0 0.0
    %690 = vmatpush1.xpose.msra.mxu0 0.0
    %691 = vmatprep.subr.mxu0 0.0
    %692 = vmatpush1.xpose.msra.mxu0 0.0
    %693 = vmatprep.subr.mxu0 0.0
    %694 = vmatpush1.xpose.msra.mxu0 0.0
    %695 = vmatprep.subr.mxu0 0.0
    %696 = vmatpush1.xpose.msra.mxu0 0.0
    %697 = vmatprep.subr.mxu0 0.0
    %698 = vmatpush1.xpose.msra.mxu0 0.0
    %699 = vmatprep.subr.mxu0 0.0
    %700 = vmatpush1.xpose.msra.mxu0 0.0
    %701 = vmatprep.subr.mxu0 0.0
    %702 = vmatpush1.xpose.msra.mxu0 0.0
    %703 = vmatprep.subr.mxu0 0.0
    %704 = vmatpush1.xpose.msra.mxu0 0.0
    %705 = vmatprep.subr.mxu0 0.0
    %706 = vmatpush1.xpose.msra.mxu0 0.0
    %707 = vmatprep.mubr.f32.mxu0 0.0
    %708 = vmatmul.mubr.f32.gmra.mrb[0].mxu0 %v631
    %v709 = vpop.f32.mrb[0].mxu0
    %v710 = vadd.f32 0.0, %v709
    %v711 = vpop.f32.mrb[0].mxu0
    %712 = vmatprep.mubr.f32.mxu0 0.0
    %713 = vmatmul.mubr.f32.gmra.mrb[0].mxu0 %v633
    %v714 = vpop.f32.mrb[0].mxu0
    %v715 = vadd.f32 0.0, %v714
    %v716 = vpop.f32.mrb[0].mxu0
    %717 = vmatprep.mubr.f32.mxu0 0.0
    %718 = vmatmul.mubr.f32.gmra.mrb[0].mxu0 %v635
    %v719 = vpop.f32.mrb[0].mxu0
    %v720 = vadd.f32 0.0, %v719
    %v721 = vpop.f32.mrb[0].mxu0
    %722 = vdwg.mxu0
    %v723 = vmul.f32 %v710, 0.35355338
    %v724 = vmul.f32 %v715, 0.35355338
    %v725 = vmul.f32 %v720, 0.35355338
    %v726 = vsel %vm484, %v723, -inf
    %727 = vmax.xlane.f32.xlu0 %v726
    %v728 = vpop.xlane.xlu0 %727
    %v729 = vsel %vm484, %v724, -inf
    %730 = vmax.xlane.f32.xlu0 %v729
    %v731 = vpop.xlane.xlu0 %730
    %v732 = vsel %vm491, %v725, -inf
    %733 = vmax.xlane.f32.xlu0 %v732
    %v734 = vpop.xlane.xlu0 %733
    %v735 = vsub.f32 %v723, %v728
    %v736 = vsub.f32 %v724, %v731
    %v737 = vsub.f32 %v725, %v734
    %v738 = vmul.f32 %v735, 1.442695
    %v739 = vpow.pop %v738
    %v740 = vmul.f32 %v736, 1.442695
    %v741 = vpow.pop %v740
    %v742 = vmul.f32 %v737, 1.442695
    %v743 = vpow.pop %v742
    %v744 = vsel %vm484, %v739, 0.0
    %745 = vadd.xlane.f32.xlu0 %v744
    %v746 = vpop.xlane.xlu0 %745
    %v747 = vsel %vm484, %v741, 0.0
    %748 = vadd.xlane.f32.xlu0 %v747
    %v749 = vpop.xlane.xlu0 %748
    %v750 = vsel %vm491, %v743, 0.0
    %751 = vadd.xlane.f32.xlu0 %v750
    %v752 = vpop.xlane.xlu0 %751
    %v753 = vrcp.pop %v746
    %v754 = vrcp.pop %v749
    %v755 = vrcp.pop %v752
    %v756 = vmul.f32 %v739, %v753
    %v757 = vmul.f32 %v741, %v754
    %v758 = vmul.f32 %v743, %v755
    %759 = vrot.lane.b32.xlu0 %v356, 56
    %v760 = vpop.permute.xlu0 %759
    %761 = vrot.lane.b32.xlu0 %v361, 56
    %v762 = vpop.permute.xlu0 %761
    %763 = vrot.lane.b32.xlu0 %v366, 56
    %v764 = vpop.permute.xlu0 %763
    %v768 = vsel %vm484, %v756, 0
    %v771 = vsel %vm484, %v757, 0
    %v774 = vsel %vm484, %v758, 0
    %v776 = vsel %vm536, %v764, 0
    %778 = vmatprep.subr.mxu0 0.0
    %779 = vmatpush1.msra.mxu0 %v760
    %780 = vmatprep.subr.mxu0 0.0
    %781 = vmatpush1.msra.mxu0 %v762
    %782 = vmatprep.subr.mxu0 0.0
    %783 = vmatpush1.msra.mxu0 %v776
    %784 = vmatprep.subr.mxu0 0.0
    %785 = vmatpush1.msra.mxu0 0.0
    %786 = vmatprep.subr.mxu0 0.0
    %787 = vmatpush1.msra.mxu0 0.0
    %788 = vmatprep.subr.mxu0 0.0
    %789 = vmatpush1.msra.mxu0 0.0
    %790 = vmatprep.subr.mxu0 0.0
    %791 = vmatpush1.msra.mxu0 0.0
    %792 = vmatprep.subr.mxu0 0.0
    %793 = vmatpush1.msra.mxu0 0.0
    %794 = vmatprep.subr.mxu0 0.0
    %795 = vmatpush1.msra.mxu0 0.0
    %796 = vmatprep.subr.mxu0 0.0
    %797 = vmatpush1.msra.mxu0 0.0
    %798 = vmatprep.subr.mxu0 0.0
    %799 = vmatpush1.msra.mxu0 0.0
    %800 = vmatprep.subr.mxu0 0.0
    %801 = vmatpush1.msra.mxu0 0.0
    %802 = vmatprep.subr.mxu0 0.0
    %803 = vmatpush1.msra.mxu0 0.0
    %804 = vmatprep.subr.mxu0 0.0
    %805 = vmatpush1.msra.mxu0 0.0
    %806 = vmatprep.subr.mxu0 0.0
    %807 = vmatpush1.msra.mxu0 0.0
    %808 = vmatprep.subr.mxu0 0.0
    %809 = vmatpush1.msra.mxu0 0.0
    %810 = vmatprep.subr.mxu0 0.0
    %811 = vmatpush1.msra.mxu0 0.0
    %812 = vmatprep.subr.mxu0 0.0
    %813 = vmatpush1.msra.mxu0 0.0
    %814 = vmatprep.subr.mxu0 0.0
    %815 = vmatpush1.msra.mxu0 0.0
    %816 = vmatprep.subr.mxu0 0.0
    %817 = vmatpush1.msra.mxu0 0.0
    %818 = vmatprep.subr.mxu0 0.0
    %819 = vmatpush1.msra.mxu0 0.0
    %820 = vmatprep.subr.mxu0 0.0
    %821 = vmatpush1.msra.mxu0 0.0
    %822 = vmatprep.subr.mxu0 0.0
    %823 = vmatpush1.msra.mxu0 0.0
    %824 = vmatprep.subr.mxu0 0.0
    %825 = vmatpush1.msra.mxu0 0.0
    %826 = vmatprep.subr.mxu0 0.0
    %827 = vmatpush1.msra.mxu0 0.0
    %828 = vmatprep.subr.mxu0 0.0
    %829 = vmatpush1.msra.mxu0 0.0
    %830 = vmatprep.subr.mxu0 0.0
    %831 = vmatpush1.msra.mxu0 0.0
    %832 = vmatprep.subr.mxu0 0.0
    %833 = vmatpush1.msra.mxu0 0.0
    %834 = vmatprep.subr.mxu0 0.0
    %835 = vmatpush1.msra.mxu0 0.0
    %836 = vmatprep.subr.mxu0 0.0
    %837 = vmatpush1.msra.mxu0 0.0
    %838 = vmatprep.subr.mxu0 0.0
    %839 = vmatpush1.msra.mxu0 0.0
    %840 = vmatprep.subr.mxu0 0.0
    %841 = vmatpush1.msra.mxu0 0.0
    %842 = vmatprep.mubr.f32.mxu0 0.0
    %843 = vmatmul.mubr.f32.gmra.mrb[0].mxu0 %v768
    %v844 = vpop.f32.mrb[0].mxu0
    %v845 = vadd.f32 0.0, %v844
    %v846 = vpop.f32.mrb[0].mxu0
    %847 = vmatprep.mubr.f32.mxu0 0.0
    %848 = vmatmul.mubr.f32.gmra.mrb[0].mxu0 %v771
    %v849 = vpop.f32.mrb[0].mxu0
    %v850 = vadd.f32 0.0, %v849
    %v851 = vpop.f32.mrb[0].mxu0
    %852 = vmatprep.mubr.f32.mxu0 0.0
    %853 = vmatmul.mubr.f32.gmra.mrb[0].mxu0 %v774
    %v854 = vpop.f32.mrb[0].mxu0
    %v855 = vadd.f32 0.0, %v854
    %v856 = vpop.f32.mrb[0].mxu0
    %857 = vdwg.mxu0
    %859 = vrot.lane.b32.xlu0 %v266, 32
    %v860 = vpop.permute.xlu0 %859
    %v863 = vsel %vm388, %v845, 0
    %v866 = vsel %vm388, %v850, 0
    %v869 = vsel %vm388, %v855, 0
    %871 = vmatprep.subr.mxu0 0.0
    %872 = vmatpush1.msra.mxu0 %v860
    %873 = vmatprep.subr.mxu0 0.0
    %874 = vmatpush1.msra.mxu0 0.0
    %875 = vmatprep.subr.mxu0 0.0
    %876 = vmatpush1.msra.mxu0 0.0
    %877 = vmatprep.subr.mxu0 0.0
    %878 = vmatpush1.msra.mxu0 0.0
    %879 = vmatprep.subr.mxu0 0.0
    %880 = vmatpush1.msra.mxu0 0.0
    %881 = vmatprep.subr.mxu0 0.0
    %882 = vmatpush1.msra.mxu0 0.0
    %883 = vmatprep.subr.mxu0 0.0
    %884 = vmatpush1.msra.mxu0 0.0
    %885 = vmatprep.subr.mxu0 0.0
    %886 = vmatpush1.msra.mxu0 0.0
    %887 = vmatprep.subr.mxu0 0.0
    %888 = vmatpush1.msra.mxu0 0.0
    %889 = vmatprep.subr.mxu0 0.0
    %890 = vmatpush1.msra.mxu0 0.0
    %891 = vmatprep.subr.mxu0 0.0
    %892 = vmatpush1.msra.mxu0 0.0
    %893 = vmatprep.subr.mxu0 0.0
    %894 = vmatpush1.msra.mxu0 0.0
    %895 = vmatprep.subr.mxu0 0.0
    %896 = vmatpush1.msra.mxu0 0.0
    %897 = vmatprep.subr.mxu0 0.0
    %898 = vmatpush1.msra.mxu0 0.0
    %899 = vmatprep.subr.mxu0 0.0
    %900 = vmatpush1.msra.mxu0 0.0
    %901 = vmatprep.subr.mxu0 0.0
    %902 = vmatpush1.msra.mxu0 0.0
    %903 = vmatprep.subr.mxu0 0.0
    %904 = vmatpush1.msra.mxu0 0.0
    %905 = vmatprep.subr.mxu0 0.0
    %906 = vmatpush1.msra.mxu0 0.0
    %907 = vmatprep.subr.mxu0 0.0
    %908 = vmatpush1.msra.mxu0 0.0
    %909 = vmatprep.subr.mxu0 0.0
    %910 = vmatpush1.msra.mxu0 0.0
    %911 = vmatprep.subr.mxu0 0.0
    %912 = vmatpush1.msra.mxu0 0.0
    %913 = vmatprep.subr.mxu0 0.0
    %914 = vmatpush1.msra.mxu0 0.0
    %915 = vmatprep.subr.mxu0 0.0
    %916 = vmatpush1.msra.mxu0 0.0
    %917 = vmatprep.subr.mxu0 0.0
    %918 = vmatpush1.msra.mxu0 0.0
    %919 = vmatprep.subr.mxu0 0.0
    %920 = vmatpush1.msra.mxu0 0.0
    %921 = vmatprep.subr.mxu0 0.0
    %922 = vmatpush1.msra.mxu0 0.0
    %923 = vmatprep.subr.mxu0 0.0
    %924 = vmatpush1.msra.mxu0 0.0
    %925 = vmatprep.subr.mxu0 0.0
    %926 = vmatpush1.msra.mxu0 0.0
    %927 = vmatprep.subr.mxu0 0.0
    %928 = vmatpush1.msra.mxu0 0.0
    %929 = vmatprep.subr.mxu0 0.0
    %930 = vmatpush1.msra.mxu0 0.0
    %931 = vmatprep.subr.mxu0 0.0
    %932 = vmatpush1.msra.mxu0 0.0
    %933 = vmatprep.subr.mxu0 0.0
    %934 = vmatpush1.msra.mxu0 0.0
    %935 = vmatprep.mubr.f32.mxu0 0.0
    %936 = vmatmul.mubr.f32.gmra.mrb[0].mxu0 %v863
    %v937 = vpop.f32.mrb[0].mxu0
    %v938 = vadd.f32 0.0, %v937
    %v939 = vpop.f32.mrb[0].mxu0
    %940 = vmatprep.mubr.f32.mxu0 0.0
    %941 = vmatmul.mubr.f32.gmra.mrb[0].mxu0 %v866
    %v942 = vpop.f32.mrb[0].mxu0
    %v943 = vadd.f32 0.0, %v942
    %v944 = vpop.f32.mrb[0].mxu0
    %945 = vmatprep.mubr.f32.mxu0 0.0
    %946 = vmatmul.mubr.f32.gmra.mrb[0].mxu0 %v869
    %v947 = vpop.f32.mrb[0].mxu0
    %v948 = vadd.f32 0.0, %v947
    %v949 = vpop.f32.mrb[0].mxu0
    %950 = vdwg.mxu0
    %952 = vrot.lane.b32.xlu0 %v265, 32
    %v953 = vpop.permute.xlu0 %952
    %v956 = vsel %vm388, %v606, 0
    %v959 = vsel %vm388, %v611, 0
    %v962 = vsel %vm388, %v616, 0
    %964 = vmatprep.subr.mxu0 0.0
    %965 = vmatpush1.msra.mxu0 %v953
    %966 = vmatprep.subr.mxu0 0.0
    %967 = vmatpush1.msra.mxu0 0.0
    %968 = vmatprep.subr.mxu0 0.0
    %969 = vmatpush1.msra.mxu0 0.0
    %970 = vmatprep.subr.mxu0 0.0
    %971 = vmatpush1.msra.mxu0 0.0
    %972 = vmatprep.subr.mxu0 0.0
    %973 = vmatpush1.msra.mxu0 0.0
    %974 = vmatprep.subr.mxu0 0.0
    %975 = vmatpush1.msra.mxu0 0.0
    %976 = vmatprep.subr.mxu0 0.0
    %977 = vmatpush1.msra.mxu0 0.0
    %978 = vmatprep.subr.mxu0 0.0
    %979 = vmatpush1.msra.mxu0 0.0
    %980 = vmatprep.subr.mxu0 0.0
    %981 = vmatpush1.msra.mxu0 0.0
    %982 = vmatprep.subr.mxu0 0.0
    %983 = vmatpush1.msra.mxu0 0.0
    %984 = vmatprep.subr.mxu0 0.0
    %985 = vmatpush1.msra.mxu0 0.0
    %986 = vmatprep.subr.mxu0 0.0
    %987 = vmatpush1.msra.mxu0 0.0
    %988 = vmatprep.subr.mxu0 0.0
    %989 = vmatpush1.msra.mxu0 0.0
    %990 = vmatprep.subr.mxu0 0.0
    %991 = vmatpush1.msra.mxu0 0.0
    %992 = vmatprep.subr.mxu0 0.0
    %993 = vmatpush1.msra.mxu0 0.0
    %994 = vmatprep.subr.mxu0 0.0
    %995 = vmatpush1.msra.mxu0 0.0
    %996 = vmatprep.subr.mxu0 0.0
    %997 = vmatpush1.msra.mxu0 0.0
    %998 = vmatprep.subr.mxu0 0.0
    %999 = vmatpush1.msra.mxu0 0.0
    %1000 = vmatprep.subr.mxu0 0.0
    %1001 = vmatpush1.msra.mxu0 0.0
    %1002 = vmatprep.subr.mxu0 0.0
    %1003 = vmatpush1.msra.mxu0 0.0
    %1004 = vmatprep.subr.mxu0 0.0
    %1005 = vmatpush1.msra.mxu0 0.0
    %1006 = vmatprep.subr.mxu0 0.0
    %1007 = vmatpush1.msra.mxu0 0.0
    %1008 = vmatprep.subr.mxu0 0.0
    %1009 = vmatpush1.msra.mxu0 0.0
    %1010 = vmatprep.subr.mxu0 0.0
    %1011 = vmatpush1.msra.mxu0 0.0
    %1012 = vmatprep.subr.mxu0 0.0
    %1013 = vmatpush1.msra.mxu0 0.0
    %1014 = vmatprep.subr.mxu0 0.0
    %1015 = vmatpush1.msra.mxu0 0.0
    %1016 = vmatprep.subr.mxu0 0.0
    %1017 = vmatpush1.msra.mxu0 0.0
    %1018 = vmatprep.subr.mxu0 0.0
    %1019 = vmatpush1.msra.mxu0 0.0
    %1020 = vmatprep.subr.mxu0 0.0
    %1021 = vmatpush1.msra.mxu0 0.0
    %1022 = vmatprep.subr.mxu0 0.0
    %1023 = vmatpush1.msra.mxu0 0.0
    %1024 = vmatprep.subr.mxu0 0.0
    %1025 = vmatpush1.msra.mxu0 0.0
    %1026 = vmatprep.subr.mxu0 0.0
    %1027 = vmatpush1.msra.mxu0 0.0
    %1028 = vmatprep.mubr.f32.mxu0 0.0
    %1029 = vmatmul.mubr.f32.gmra.mrb[0].mxu0 %v956
    %v1030 = vpop.f32.mrb[0].mxu0
    %v1031 = vadd.f32 %v938, %v1030
    %v1032 = vpop.f32.mrb[0].mxu0
    %1033 = vmatprep.mubr.f32.mxu0 0.0
    %1034 = vmatmul.mubr.f32.gmra.mrb[0].mxu0 %v959
    %v1035 = vpop.f32.mrb[0].mxu0
    %v1036 = vadd.f32 %v943, %v1035
    %v1037 = vpop.f32.mrb[0].mxu0
    %1038 = vmatprep.mubr.f32.mxu0 0.0
    %1039 = vmatmul.mubr.f32.gmra.mrb[0].mxu0 %v962
    %v1040 = vpop.f32.mrb[0].mxu0
    %v1041 = vadd.f32 %v948, %v1040
    %v1042 = vpop.f32.mrb[0].mxu0
    %1043 = vdwg.mxu0
    %1044 = vrot.lane.b32.xlu0 %v356, 112
    %v1045 = vpop.permute.xlu0 %1044
    %1046 = vrot.lane.b32.xlu0 %v361, 112
    %v1047 = vpop.permute.xlu0 %1046
    %1048 = vrot.lane.b32.xlu0 %v366, 112
    %v1049 = vpop.permute.xlu0 %1048
    %1050 = vrot.lane.b32.xlu0 %v356, 80
    %v1051 = vpop.permute.xlu0 %1050
    %1052 = vrot.lane.b32.xlu0 %v361, 80
    %v1053 = vpop.permute.xlu0 %1052
    %1054 = vrot.lane.b32.xlu0 %v366, 80
    %v1055 = vpop.permute.xlu0 %1054
    %v1056 = vsel %vm388, %v1045, 0
    %v1058 = vsel %vm388, %v1047, 0
    %v1060 = vsel %vm388, %v1049, 0
    %v1062 = vsel %vm388, %v1051, 0
    %v1064 = vsel %vm388, %v1053, 0
    %v1066 = vsel %vm388, %v1055, 0
    %1068 = vmatprep.subr.mxu0 0.0
    %1069 = vmatpush1.xpose.msra.mxu0 %v1062
    %1070 = vmatprep.subr.mxu0 0.0
    %1071 = vmatpush1.xpose.msra.mxu0 %v1064
    %1072 = vmatprep.subr.mxu0 0.0
    %1073 = vmatpush1.xpose.msra.mxu0 %v1066
    %1074 = vmatprep.subr.mxu0 0.0
    %1075 = vmatpush1.xpose.msra.mxu0 0.0
    %1076 = vmatprep.subr.mxu0 0.0
    %1077 = vmatpush1.xpose.msra.mxu0 0.0
    %1078 = vmatprep.subr.mxu0 0.0
    %1079 = vmatpush1.xpose.msra.mxu0 0.0
    %1080 = vmatprep.subr.mxu0 0.0
    %1081 = vmatpush1.xpose.msra.mxu0 0.0
    %1082 = vmatprep.subr.mxu0 0.0
    %1083 = vmatpush1.xpose.msra.mxu0 0.0
    %1084 = vmatprep.subr.mxu0 0.0
    %1085 = vmatpush1.xpose.msra.mxu0 0.0
    %1086 = vmatprep.subr.mxu0 0.0
    %1087 = vmatpush1.xpose.msra.mxu0 0.0
    %1088 = vmatprep.subr.mxu0 0.0
    %1089 = vmatpush1.xpose.msra.mxu0 0.0
    %1090 = vmatprep.subr.mxu0 0.0
    %1091 = vmatpush1.xpose.msra.mxu0 0.0
    %1092 = vmatprep.subr.mxu0 0.0
    %1093 = vmatpush1.xpose.msra.mxu0 0.0
    %1094 = vmatprep.subr.mxu0 0.0
    %1095 = vmatpush1.xpose.msra.mxu0 0.0
    %1096 = vmatprep.subr.mxu0 0.0
    %1097 = vmatpush1.xpose.msra.mxu0 0.0
    %1098 = vmatprep.subr.mxu0 0.0
    %1099 = vmatpush1.xpose.msra.mxu0 0.0
    %1100 = vmatprep.subr.mxu0 0.0
    %1101 = vmatpush1.xpose.msra.mxu0 0.0
    %1102 = vmatprep.subr.mxu0 0.0
    %1103 = vmatpush1.xpose.msra.mxu0 0.0
    %1104 = vmatprep.subr.mxu0 0.0
    %1105 = vmatpush1.xpose.msra.mxu0 0.0
    %1106 = vmatprep.subr.mxu0 0.0
    %1107 = vmatpush1.xpose.msra.mxu0 0.0
    %1108 = vmatprep.subr.mxu0 0.0
    %1109 = vmatpush1.xpose.msra.mxu0 0.0
    %1110 = vmatprep.subr.mxu0 0.0
    %1111 = vmatpush1.xpose.msra.mxu0 0.0
    %1112 = vmatprep.subr.mxu0 0.0
    %1113 = vmatpush1.xpose.msra.mxu0 0.0
    %1114 = vmatprep.subr.mxu0 0.0
    %1115 = vmatpush1.xpose.msra.mxu0 0.0
    %1116 = vmatprep.subr.mxu0 0.0
    %1117 = vmatpush1.xpose.msra.mxu0 0.0
    %1118 = vmatprep.subr.mxu0 0.0
    %1119 = vmatpush1.xpose.msra.mxu0 0.0
    %1120 = vmatprep.subr.mxu0 0.0
    %1121 = vmatpush1.xpose.msra.mxu0 0.0
    %1122 = vmatprep.subr.mxu0 0.0
    %1123 = vmatpush1.xpose.msra.mxu0 0.0
    %1124 = vmatprep.subr.mxu0 0.0
    %1125 = vmatpush1.xpose.msra.mxu0 0.0
    %1126 = vmatprep.subr.mxu0 0.0
    %1127 = vmatpush1.xpose.msra.mxu0 0.0
    %1128 = vmatprep.subr.mxu0 0.0
    %1129 = vmatpush1.xpose.msra.mxu0 0.0
    %1130 = vmatprep.subr.mxu0 0.0
    %1131 = vmatpush1.xpose.msra.mxu0 0.0
    %1132 = vmatprep.mubr.f32.mxu0 0.0
    %1133 = vmatmul.mubr.f32.gmra.mrb[0].mxu0 %v1056
    %v1134 = vpop.f32.mrb[0].mxu0
    %v1135 = vadd.f32 0.0, %v1134
    %v1136 = vpop.f32.mrb[0].mxu0
    %1137 = vmatprep.mubr.f32.mxu0 0.0
    %1138 = vmatmul.mubr.f32.gmra.mrb[0].mxu0 %v1058
    %v1139 = vpop.f32.mrb[0].mxu0
    %v1140 = vadd.f32 0.0, %v1139
    %v1141 = vpop.f32.mrb[0].mxu0
    %1142 = vmatprep.mubr.f32.mxu0 0.0
    %1143 = vmatmul.mubr.f32.gmra.mrb[0].mxu0 %v1060
    %v1144 = vpop.f32.mrb[0].mxu0
    %v1145 = vadd.f32 0.0, %v1144
    %v1146 = vpop.f32.mrb[0].mxu0
    %1147 = vdwg.mxu0
    %v1148 = vmul.f32 %v1135, 0.35355338
    %v1149 = vmul.f32 %v1140, 0.35355338
    %v1150 = vmul.f32 %v1145, 0.35355338
    %v1151 = vsel %vm484, %v1148, -inf
    %1152 = vmax.xlane.f32.xlu0 %v1151
    %v1153 = vpop.xlane.xlu0 %1152
    %v1154 = vsel %vm484, %v1149, -inf
    %1155 = vmax.xlane.f32.xlu0 %v1154
    %v1156 = vpop.xlane.xlu0 %1155
    %v1157 = vsel %vm491, %v1150, -inf
    %1158 = vmax.xlane.f32.xlu0 %v1157
    %v1159 = vpop.xlane.xlu0 %1158
    %v1160 = vsub.f32 %v1148, %v1153
    %v1161 = vsub.f32 %v1149, %v1156
    %v1162 = vsub.f32 %v1150, %v1159
    %v1163 = vmul.f32 %v1160, 1.442695
    %v1164 = vpow.pop %v1163
    %v1165 = vmul.f32 %v1161, 1.442695
    %v1166 = vpow.pop %v1165
    %v1167 = vmul.f32 %v1162, 1.442695
    %v1168 = vpow.pop %v1167
    %v1169 = vsel %vm484, %v1164, 0.0
    %1170 = vadd.xlane.f32.xlu0 %v1169
    %v1171 = vpop.xlane.xlu0 %1170
    %v1172 = vsel %vm484, %v1166, 0.0
    %1173 = vadd.xlane.f32.xlu0 %v1172
    %v1174 = vpop.xlane.xlu0 %1173
    %v1175 = vsel %vm491, %v1168, 0.0
    %1176 = vadd.xlane.f32.xlu0 %v1175
    %v1177 = vpop.xlane.xlu0 %1176
    %v1178 = vrcp.pop %v1171
    %v1179 = vrcp.pop %v1174
    %v1180 = vrcp.pop %v1177
    %v1181 = vmul.f32 %v1164, %v1178
    %v1182 = vmul.f32 %v1166, %v1179
    %v1183 = vmul.f32 %v1168, %v1180
    %1184 = vrot.lane.b32.xlu0 %v356, 48
    %v1185 = vpop.permute.xlu0 %1184
    %1186 = vrot.lane.b32.xlu0 %v361, 48
    %v1187 = vpop.permute.xlu0 %1186
    %1188 = vrot.lane.b32.xlu0 %v366, 48
    %v1189 = vpop.permute.xlu0 %1188
    %v1193 = vsel %vm484, %v1181, 0
    %v1196 = vsel %vm484, %v1182, 0
    %v1199 = vsel %vm484, %v1183, 0
    %v1201 = vsel %vm536, %v1189, 0
    %1203 = vmatprep.subr.mxu0 0.0
    %1204 = vmatpush1.msra.mxu0 %v1185
    %1205 = vmatprep.subr.mxu0 0.0
    %1206 = vmatpush1.msra.mxu0 %v1187
    %1207 = vmatprep.subr.mxu0 0.0
    %1208 = vmatpush1.msra.mxu0 %v1201
    %1209 = vmatprep.subr.mxu0 0.0
    %1210 = vmatpush1.msra.mxu0 0.0
    %1211 = vmatprep.subr.mxu0 0.0
    %1212 = vmatpush1.msra.mxu0 0.0
    %1213 = vmatprep.subr.mxu0 0.0
    %1214 = vmatpush1.msra.mxu0 0.0
    %1215 = vmatprep.subr.mxu0 0.0
    %1216 = vmatpush1.msra.mxu0 0.0
    %1217 = vmatprep.subr.mxu0 0.0
    %1218 = vmatpush1.msra.mxu0 0.0
    %1219 = vmatprep.subr.mxu0 0.0
    %1220 = vmatpush1.msra.mxu0 0.0
    %1221 = vmatprep.subr.mxu0 0.0
    %1222 = vmatpush1.msra.mxu0 0.0
    %1223 = vmatprep.subr.mxu0 0.0
    %1224 = vmatpush1.msra.mxu0 0.0
    %1225 = vmatprep.subr.mxu0 0.0
    %1226 = vmatpush1.msra.mxu0 0.0
    %1227 = vmatprep.subr.mxu0 0.0
    %1228 = vmatpush1.msra.mxu0 0.0
    %1229 = vmatprep.subr.mxu0 0.0
    %1230 = vmatpush1.msra.mxu0 0.0
    %1231 = vmatprep.subr.mxu0 0.0
    %1232 = vmatpush1.msra.mxu0 0.0
    %1233 = vmatprep.subr.mxu0 0.0
    %1234 = vmatpush1.msra.mxu0 0.0
    %1235 = vmatprep.subr.mxu0 0.0
    %1236 = vmatpush1.msra.mxu0 0.0
    %1237 = vmatprep.subr.mxu0 0.0
    %1238 = vmatpush1.msra.mxu0 0.0
    %1239 = vmatprep.subr.mxu0 0.0
    %1240 = vmatpush1.msra.mxu0 0.0
    %1241 = vmatprep.subr.mxu0 0.0
    %1242 = vmatpush1.msra.mxu0 0.0
    %1243 = vmatprep.subr.mxu0 0.0
    %1244 = vmatpush1.msra.mxu0 0.0
    %1245 = vmatprep.subr.mxu0 0.0
    %1246 = vmatpush1.msra.mxu0 0.0
    %1247 = vmatprep.subr.mxu0 0.0
    %1248 = vmatpush1.msra.mxu0 0.0
    %1249 = vmatprep.subr.mxu0 0.0
    %1250 = vmatpush1.msra.mxu0 0.0
    %1251 = vmatprep.subr.mxu0 0.0
    %1252 = vmatpush1.msra.mxu0 0.0
    %1253 = vmatprep.subr.mxu0 0.0
    %1254 = vmatpush1.msra.mxu0 0.0
    %1255 = vmatprep.subr.mxu0 0.0
    %1256 = vmatpush1.msra.mxu0 0.0
    %1257 = vmatprep.subr.mxu0 0.0
    %1258 = vmatpush1.msra.mxu0 0.0
    %1259 = vmatprep.subr.mxu0 0.0
    %1260 = vmatpush1.msra.mxu0 0.0
    %1261 = vmatprep.subr.mxu0 0.0
    %1262 = vmatpush1.msra.mxu0 0.0
    %1263 = vmatprep.subr.mxu0 0.0
    %1264 = vmatpush1.msra.mxu0 0.0
    %1265 = vmatprep.subr.mxu0 0.0
    %1266 = vmatpush1.msra.mxu0 0.0
    %1267 = vmatprep.mubr.f32.mxu0 0.0
    %1268 = vmatmul.mubr.f32.gmra.mrb[0].mxu0 %v1193
    %v1269 = vpop.f32.mrb[0].mxu0
    %v1270 = vadd.f32 0.0, %v1269
    %v1271 = vpop.f32.mrb[0].mxu0
    %1272 = vmatprep.mubr.f32.mxu0 0.0
    %1273 = vmatmul.mubr.f32.gmra.mrb[0].mxu0 %v1196
    %v1274 = vpop.f32.mrb[0].mxu0
    %v1275 = vadd.f32 0.0, %v1274
    %v1276 = vpop.f32.mrb[0].mxu0
    %1277 = vmatprep.mubr.f32.mxu0 0.0
    %1278 = vmatmul.mubr.f32.gmra.mrb[0].mxu0 %v1199
    %v1279 = vpop.f32.mrb[0].mxu0
    %v1280 = vadd.f32 0.0, %v1279
    %v1281 = vpop.f32.mrb[0].mxu0
    %1282 = vdwg.mxu0
    %1284 = vrot.lane.b32.xlu0 %v267, 32
    %v1285 = vpop.permute.xlu0 %1284
    %v1288 = vsel %vm388, %v1270, 0
    %v1291 = vsel %vm388, %v1275, 0
    %v1294 = vsel %vm388, %v1280, 0
    %1296 = vmatprep.subr.mxu0 0.0
    %1297 = vmatpush1.msra.mxu0 %v1285
    %1298 = vmatprep.subr.mxu0 0.0
    %1299 = vmatpush1.msra.mxu0 0.0
    %1300 = vmatprep.subr.mxu0 0.0
    %1301 = vmatpush1.msra.mxu0 0.0
    %1302 = vmatprep.subr.mxu0 0.0
    %1303 = vmatpush1.msra.mxu0 0.0
    %1304 = vmatprep.subr.mxu0 0.0
    %1305 = vmatpush1.msra.mxu0 0.0
    %1306 = vmatprep.subr.mxu0 0.0
    %1307 = vmatpush1.msra.mxu0 0.0
    %1308 = vmatprep.subr.mxu0 0.0
    %1309 = vmatpush1.msra.mxu0 0.0
    %1310 = vmatprep.subr.mxu0 0.0
    %1311 = vmatpush1.msra.mxu0 0.0
    %1312 = vmatprep.subr.mxu0 0.0
    %1313 = vmatpush1.msra.mxu0 0.0
    %1314 = vmatprep.subr.mxu0 0.0
    %1315 = vmatpush1.msra.mxu0 0.0
    %1316 = vmatprep.subr.mxu0 0.0
    %1317 = vmatpush1.msra.mxu0 0.0
    %1318 = vmatprep.subr.mxu0 0.0
    %1319 = vmatpush1.msra.mxu0 0.0
    %1320 = vmatprep.subr.mxu0 0.0
    %1321 = vmatpush1.msra.mxu0 0.0
    %1322 = vmatprep.subr.mxu0 0.0
    %1323 = vmatpush1.msra.mxu0 0.0
    %1324 = vmatprep.subr.mxu0 0.0
    %1325 = vmatpush1.msra.mxu0 0.0
    %1326 = vmatprep.subr.mxu0 0.0
    %1327 = vmatpush1.msra.mxu0 0.0
    %1328 = vmatprep.subr.mxu0 0.0
    %1329 = vmatpush1.msra.mxu0 0.0
    %1330 = vmatprep.subr.mxu0 0.0
    %1331 = vmatpush1.msra.mxu0 0.0
    %1332 = vmatprep.subr.mxu0 0.0
    %1333 = vmatpush1.msra.mxu0 0.0
    %1334 = vmatprep.subr.mxu0 0.0
    %1335 = vmatpush1.msra.mxu0 0.0
    %1336 = vmatprep.subr.mxu0 0.0
    %1337 = vmatpush1.msra.mxu0 0.0
    %1338 = vmatprep.subr.mxu0 0.0
    %1339 = vmatpush1.msra.mxu0 0.0
    %1340 = vmatprep.subr.mxu0 0.0
    %1341 = vmatpush1.msra.mxu0 0.0
    %1342 = vmatprep.subr.mxu0 0.0
    %1343 = vmatpush1.msra.mxu0 0.0
    %1344 = vmatprep.subr.mxu0 0.0
    %1345 = vmatpush1.msra.mxu0 0.0
    %1346 = vmatprep.subr.mxu0 0.0
    %1347 = vmatpush1.msra.mxu0 0.0
    %1348 = vmatprep.subr.mxu0 0.0
    %1349 = vmatpush1.msra.mxu0 0.0
    %1350 = vmatprep.subr.mxu0 0.0
    %1351 = vmatpush1.msra.mxu0 0.0
    %1352 = vmatprep.subr.mxu0 0.0
    %1353 = vmatpush1.msra.mxu0 0.0
    %1354 = vmatprep.subr.mxu0 0.0
    %1355 = vmatpush1.msra.mxu0 0.0
    %1356 = vmatprep.subr.mxu0 0.0
    %1357 = vmatpush1.msra.mxu0 0.0
    %1358 = vmatprep.subr.mxu0 0.0
    %1359 = vmatpush1.msra.mxu0 0.0
    %1360 = vmatprep.mubr.f32.mxu0 0.0
    %1361 = vmatmul.mubr.f32.gmra.mrb[0].mxu0 %v1288
    %v1362 = vpop.f32.mrb[0].mxu0
    %v1363 = vadd.f32 0.0, %v1362
    %v1364 = vpop.f32.mrb[0].mxu0
    %1365 = vmatprep.mubr.f32.mxu0 0.0
    %1366 = vmatmul.mubr.f32.gmra.mrb[0].mxu0 %v1291
    %v1367 = vpop.f32.mrb[0].mxu0
    %v1368 = vadd.f32 0.0, %v1367
    %v1369 = vpop.f32.mrb[0].mxu0
    %1370 = vmatprep.mubr.f32.mxu0 0.0
    %1371 = vmatmul.mubr.f32.gmra.mrb[0].mxu0 %v1294
    %v1372 = vpop.f32.mrb[0].mxu0
    %v1373 = vadd.f32 0.0, %v1372
    %v1374 = vpop.f32.mrb[0].mxu0
    %1375 = vdwg.mxu0
    %v1376 = vadd.f32 %v1031, %v1363
    %v1377 = vadd.f32 %v1036, %v1368
    %v1378 = vadd.f32 %v1041, %v1373
    %1379 = vrot.lane.b32.xlu0 %v356, 104
    %v1380 = vpop.permute.xlu0 %1379
    %1381 = vrot.lane.b32.xlu0 %v361, 104
    %v1382 = vpop.permute.xlu0 %1381
    %1383 = vrot.lane.b32.xlu0 %v366, 104
    %v1384 = vpop.permute.xlu0 %1383
    %1385 = vrot.lane.b32.xlu0 %v356, 72
    %v1386 = vpop.permute.xlu0 %1385
    %1387 = vrot.lane.b32.xlu0 %v361, 72
    %v1388 = vpop.permute.xlu0 %1387
    %1389 = vrot.lane.b32.xlu0 %v366, 72
    %v1390 = vpop.permute.xlu0 %1389
    %v1391 = vsel %vm388, %v1380, 0
    %v1393 = vsel %vm388, %v1382, 0
    %v1395 = vsel %vm388, %v1384, 0
    %v1397 = vsel %vm388, %v1386, 0
    %v1399 = vsel %vm388, %v1388, 0
    %v1401 = vsel %vm388, %v1390, 0
    %1403 = vmatprep.subr.mxu0 0.0
    %1404 = vmatpush1.xpose.msra.mxu0 %v1397
    %1405 = vmatprep.subr.mxu0 0.0
    %1406 = vmatpush1.xpose.msra.mxu0 %v1399
    %1407 = vmatprep.subr.mxu0 0.0
    %1408 = vmatpush1.xpose.msra.mxu0 %v1401
    %1409 = vmatprep.subr.mxu0 0.0
    %1410 = vmatpush1.xpose.msra.mxu0 0.0
    %1411 = vmatprep.subr.mxu0 0.0
    %1412 = vmatpush1.xpose.msra.mxu0 0.0
    %1413 = vmatprep.subr.mxu0 0.0
    %1414 = vmatpush1.xpose.msra.mxu0 0.0
    %1415 = vmatprep.subr.mxu0 0.0
    %1416 = vmatpush1.xpose.msra.mxu0 0.0
    %1417 = vmatprep.subr.mxu0 0.0
    %1418 = vmatpush1.xpose.msra.mxu0 0.0
    %1419 = vmatprep.subr.mxu0 0.0
    %1420 = vmatpush1.xpose.msra.mxu0 0.0
    %1421 = vmatprep.subr.mxu0 0.0
    %1422 = vmatpush1.xpose.msra.mxu0 0.0
    %1423 = vmatprep.subr.mxu0 0.0
    %1424 = vmatpush1.xpose.msra.mxu0 0.0
    %1425 = vmatprep.subr.mxu0 0.0
    %1426 = vmatpush1.xpose.msra.mxu0 0.0
    %1427 = vmatprep.subr.mxu0 0.0
    %1428 = vmatpush1.xpose.msra.mxu0 0.0
    %1429 = vmatprep.subr.mxu0 0.0
    %1430 = vmatpush1.xpose.msra.mxu0 0.0
    %1431 = vmatprep.subr.mxu0 0.0
    %1432 = vmatpush1.xpose.msra.mxu0 0.0
    %1433 = vmatprep.subr.mxu0 0.0
    %1434 = vmatpush1.xpose.msra.mxu0 0.0
    %1435 = vmatprep.subr.mxu0 0.0
    %1436 = vmatpush1.xpose.msra.mxu0 0.0
    %1437 = vmatprep.subr.mxu0 0.0
    %1438 = vmatpush1.xpose.msra.mxu0 0.0
    %1439 = vmatprep.subr.mxu0 0.0
    %1440 = vmatpush1.xpose.msra.mxu0 0.0
    %1441 = vmatprep.subr.mxu0 0.0
    %1442 = vmatpush1.xpose.msra.mxu0 0.0
    %1443 = vmatprep.subr.mxu0 0.0
    %1444 = vmatpush1.xpose.msra.mxu0 0.0
    %1445 = vmatprep.subr.mxu0 0.0
    %1446 = vmatpush1.xpose.msra.mxu0 0.0
    %1447 = vmatprep.subr.mxu0 0.0
    %1448 = vmatpush1.xpose.msra.mxu0 0.0
    %1449 = vmatprep.subr.mxu0 0.0
    %1450 = vmatpush1.xpose.msra.mxu0 0.0
    %1451 = vmatprep.subr.mxu0 0.0
    %1452 = vmatpush1.xpose.msra.mxu0 0.0
    %1453 = vmatprep.subr.mxu0 0.0
    %1454 = vmatpush1.xpose.msra.mxu0 0.0
    %1455 = vmatprep.subr.mxu0 0.0
    %1456 = vmatpush1.xpose.msra.mxu0 0.0
    %1457 = vmatprep.subr.mxu0 0.0
    %1458 = vmatpush1.xpose.msra.mxu0 0.0
    %1459 = vmatprep.subr.mxu0 0.0
    %1460 = vmatpush1.xpose.msra.mxu0 0.0
    %1461 = vmatprep.subr.mxu0 0.0
    %1462 = vmatpush1.xpose.msra.mxu0 0.0
    %1463 = vmatprep.subr.mxu0 0.0
    %1464 = vmatpush1.xpose.msra.mxu0 0.0
    %1465 = vmatprep.subr.mxu0 0.0
    %1466 = vmatpush1.xpose.msra.mxu0 0.0
    %1467 = vmatprep.mubr.f32.mxu0 0.0
    %1468 = vmatmul.mubr.f32.gmra.mrb[0].mxu0 %v1391
    %v1469 = vpop.f32.mrb[0].mxu0
    %v1470 = vadd.f32 0.0, %v1469
    %v1471 = vpop.f32.mrb[0].mxu0
    %1472 = vmatprep.mubr.f32.mxu0 0.0
    %1473 = vmatmul.mubr.f32.gmra.mrb[0].mxu0 %v1393
    %v1474 = vpop.f32.mrb[0].mxu0
    %v1475 = vadd.f32 0.0, %v1474
    %v1476 = vpop.f32.mrb[0].mxu0
    %1477 = vmatprep.mubr.f32.mxu0 0.0
    %1478 = vmatmul.mubr.f32.gmra.mrb[0].mxu0 %v1395
    %v1479 = vpop.f32.mrb[0].mxu0
    %v1480 = vadd.f32 0.0, %v1479
    %v1481 = vpop.f32.mrb[0].mxu0
    %1482 = vdwg.mxu0
    %v1483 = vmul.f32 %v1470, 0.35355338
    %v1484 = vmul.f32 %v1475, 0.35355338
    %v1485 = vmul.f32 %v1480, 0.35355338
    %v1486 = vsel %vm484, %v1483, -inf
    %1487 = vmax.xlane.f32.xlu0 %v1486
    %v1488 = vpop.xlane.xlu0 %1487
    %v1489 = vsel %vm484, %v1484, -inf
    %1490 = vmax.xlane.f32.xlu0 %v1489
    %v1491 = vpop.xlane.xlu0 %1490
    %v1492 = vsel %vm491, %v1485, -inf
    %1493 = vmax.xlane.f32.xlu0 %v1492
    %v1494 = vpop.xlane.xlu0 %1493
    %v1495 = vsub.f32 %v1483, %v1488
    %v1496 = vsub.f32 %v1484, %v1491
    %v1497 = vsub.f32 %v1485, %v1494
    %v1498 = vmul.f32 %v1495, 1.442695
    %v1499 = vpow.pop %v1498
    %v1500 = vmul.f32 %v1496, 1.442695
    %v1501 = vpow.pop %v1500
    %v1502 = vmul.f32 %v1497, 1.442695
    %v1503 = vpow.pop %v1502
    %v1504 = vsel %vm484, %v1499, 0.0
    %1505 = vadd.xlane.f32.xlu0 %v1504
    %v1506 = vpop.xlane.xlu0 %1505
    %v1507 = vsel %vm484, %v1501, 0.0
    %1508 = vadd.xlane.f32.xlu0 %v1507
    %v1509 = vpop.xlane.xlu0 %1508
    %v1510 = vsel %vm491, %v1503, 0.0
    %1511 = vadd.xlane.f32.xlu0 %v1510
    %v1512 = vpop.xlane.xlu0 %1511
    %v1513 = vrcp.pop %v1506
    %v1514 = vrcp.pop %v1509
    %v1515 = vrcp.pop %v1512
    %v1516 = vmul.f32 %v1499, %v1513
    %v1517 = vmul.f32 %v1501, %v1514
    %v1518 = vmul.f32 %v1503, %v1515
    %1519 = vrot.lane.b32.xlu0 %v356, 40
    %v1520 = vpop.permute.xlu0 %1519
    %1521 = vrot.lane.b32.xlu0 %v361, 40
    %v1522 = vpop.permute.xlu0 %1521
    %1523 = vrot.lane.b32.xlu0 %v366, 40
    %v1524 = vpop.permute.xlu0 %1523
    %v1528 = vsel %vm484, %v1516, 0
    %v1531 = vsel %vm484, %v1517, 0
    %v1534 = vsel %vm484, %v1518, 0
    %v1536 = vsel %vm536, %v1524, 0
    %1538 = vmatprep.subr.mxu0 0.0
    %1539 = vmatpush1.msra.mxu0 %v1520
    %1540 = vmatprep.subr.mxu0 0.0
    %1541 = vmatpush1.msra.mxu0 %v1522
    %1542 = vmatprep.subr.mxu0 0.0
    %1543 = vmatpush1.msra.mxu0 %v1536
    %1544 = vmatprep.subr.mxu0 0.0
    %1545 = vmatpush1.msra.mxu0 0.0
    %1546 = vmatprep.subr.mxu0 0.0
    %1547 = vmatpush1.msra.mxu0 0.0
    %1548 = vmatprep.subr.mxu0 0.0
    %1549 = vmatpush1.msra.mxu0 0.0
    %1550 = vmatprep.subr.mxu0 0.0
    %1551 = vmatpush1.msra.mxu0 0.0
    %1552 = vmatprep.subr.mxu0 0.0
    %1553 = vmatpush1.msra.mxu0 0.0
    %1554 = vmatprep.subr.mxu0 0.0
    %1555 = vmatpush1.msra.mxu0 0.0
    %1556 = vmatprep.subr.mxu0 0.0
    %1557 = vmatpush1.msra.mxu0 0.0
    %1558 = vmatprep.subr.mxu0 0.0
    %1559 = vmatpush1.msra.mxu0 0.0
    %1560 = vmatprep.subr.mxu0 0.0
    %1561 = vmatpush1.msra.mxu0 0.0
    %1562 = vmatprep.subr.mxu0 0.0
    %1563 = vmatpush1.msra.mxu0 0.0
    %1564 = vmatprep.subr.mxu0 0.0
    %1565 = vmatpush1.msra.mxu0 0.0
    %1566 = vmatprep.subr.mxu0 0.0
    %1567 = vmatpush1.msra.mxu0 0.0
    %1568 = vmatprep.subr.mxu0 0.0
    %1569 = vmatpush1.msra.mxu0 0.0
    %1570 = vmatprep.subr.mxu0 0.0
    %1571 = vmatpush1.msra.mxu0 0.0
    %1572 = vmatprep.subr.mxu0 0.0
    %1573 = vmatpush1.msra.mxu0 0.0
    %1574 = vmatprep.subr.mxu0 0.0
    %1575 = vmatpush1.msra.mxu0 0.0
    %1576 = vmatprep.subr.mxu0 0.0
    %1577 = vmatpush1.msra.mxu0 0.0
    %1578 = vmatprep.subr.mxu0 0.0
    %1579 = vmatpush1.msra.mxu0 0.0
    %1580 = vmatprep.subr.mxu0 0.0
    %1581 = vmatpush1.msra.mxu0 0.0
    %1582 = vmatprep.subr.mxu0 0.0
    %1583 = vmatpush1.msra.mxu0 0.0
    %1584 = vmatprep.subr.mxu0 0.0
    %1585 = vmatpush1.msra.mxu0 0.0
    %1586 = vmatprep.subr.mxu0 0.0
    %1587 = vmatpush1.msra.mxu0 0.0
    %1588 = vmatprep.subr.mxu0 0.0
    %1589 = vmatpush1.msra.mxu0 0.0
    %1590 = vmatprep.subr.mxu0 0.0
    %1591 = vmatpush1.msra.mxu0 0.0
    %1592 = vmatprep.subr.mxu0 0.0
    %1593 = vmatpush1.msra.mxu0 0.0
    %1594 = vmatprep.subr.mxu0 0.0
    %1595 = vmatpush1.msra.mxu0 0.0
    %1596 = vmatprep.subr.mxu0 0.0
    %1597 = vmatpush1.msra.mxu0 0.0
    %1598 = vmatprep.subr.mxu0 0.0
    %1599 = vmatpush1.msra.mxu0 0.0
    %1600 = vmatprep.subr.mxu0 0.0
    %1601 = vmatpush1.msra.mxu0 0.0
    %1602 = vmatprep.mubr.f32.mxu0 0.0
    %1603 = vmatmul.mubr.f32.gmra.mrb[0].mxu0 %v1528
    %v1604 = vpop.f32.mrb[0].mxu0
    %v1605 = vadd.f32 0.0, %v1604
    %v1606 = vpop.f32.mrb[0].mxu0
    %1607 = vmatprep.mubr.f32.mxu0 0.0
    %1608 = vmatmul.mubr.f32.gmra.mrb[0].mxu0 %v1531
    %v1609 = vpop.f32.mrb[0].mxu0
    %v1610 = vadd.f32 0.0, %v1609
    %v1611 = vpop.f32.mrb[0].mxu0
    %1612 = vmatprep.mubr.f32.mxu0 0.0
    %1613 = vmatmul.mubr.f32.gmra.mrb[0].mxu0 %v1534
    %v1614 = vpop.f32.mrb[0].mxu0
    %v1615 = vadd.f32 0.0, %v1614
    %v1616 = vpop.f32.mrb[0].mxu0
    %1617 = vdwg.mxu0
    %1619 = vrot.lane.b32.xlu0 %v268, 32
    %v1620 = vpop.permute.xlu0 %1619
    %v1623 = vsel %vm388, %v1605, 0
    %v1626 = vsel %vm388, %v1610, 0
    %v1629 = vsel %vm388, %v1615, 0
    %1631 = vmatprep.subr.mxu0 0.0
    %1632 = vmatpush1.msra.mxu0 %v1620
    %1633 = vmatprep.subr.mxu0 0.0
    %1634 = vmatpush1.msra.mxu0 0.0
    %1635 = vmatprep.subr.mxu0 0.0
    %1636 = vmatpush1.msra.mxu0 0.0
    %1637 = vmatprep.subr.mxu0 0.0
    %1638 = vmatpush1.msra.mxu0 0.0
    %1639 = vmatprep.subr.mxu0 0.0
    %1640 = vmatpush1.msra.mxu0 0.0
    %1641 = vmatprep.subr.mxu0 0.0
    %1642 = vmatpush1.msra.mxu0 0.0
    %1643 = vmatprep.subr.mxu0 0.0
    %1644 = vmatpush1.msra.mxu0 0.0
    %1645 = vmatprep.subr.mxu0 0.0
    %1646 = vmatpush1.msra.mxu0 0.0
    %1647 = vmatprep.subr.mxu0 0.0
    %1648 = vmatpush1.msra.mxu0 0.0
    %1649 = vmatprep.subr.mxu0 0.0
    %1650 = vmatpush1.msra.mxu0 0.0
    %1651 = vmatprep.subr.mxu0 0.0
    %1652 = vmatpush1.msra.mxu0 0.0
    %1653 = vmatprep.subr.mxu0 0.0
    %1654 = vmatpush1.msra.mxu0 0.0
    %1655 = vmatprep.subr.mxu0 0.0
    %1656 = vmatpush1.msra.mxu0 0.0
    %1657 = vmatprep.subr.mxu0 0.0
    %1658 = vmatpush1.msra.mxu0 0.0
    %1659 = vmatprep.subr.mxu0 0.0
    %1660 = vmatpush1.msra.mxu0 0.0
    %1661 = vmatprep.subr.mxu0 0.0
    %1662 = vmatpush1.msra.mxu0 0.0
    %1663 = vmatprep.subr.mxu0 0.0
    %1664 = vmatpush1.msra.mxu0 0.0
    %1665 = vmatprep.subr.mxu0 0.0
    %1666 = vmatpush1.msra.mxu0 0.0
    %1667 = vmatprep.subr.mxu0 0.0
    %1668 = vmatpush1.msra.mxu0 0.0
    %1669 = vmatprep.subr.mxu0 0.0
    %1670 = vmatpush1.msra.mxu0 0.0
    %1671 = vmatprep.subr.mxu0 0.0
    %1672 = vmatpush1.msra.mxu0 0.0
    %1673 = vmatprep.subr.mxu0 0.0
    %1674 = vmatpush1.msra.mxu0 0.0
    %1675 = vmatprep.subr.mxu0 0.0
    %1676 = vmatpush1.msra.mxu0 0.0
    %1677 = vmatprep.subr.mxu0 0.0
    %1678 = vmatpush1.msra.mxu0 0.0
    %1679 = vmatprep.subr.mxu0 0.0
    %1680 = vmatpush1.msra.mxu0 0.0
    %1681 = vmatprep.subr.mxu0 0.0
    %1682 = vmatpush1.msra.mxu0 0.0
    %1683 = vmatprep.subr.mxu0 0.0
    %1684 = vmatpush1.msra.mxu0 0.0
    %1685 = vmatprep.subr.mxu0 0.0
    %1686 = vmatpush1.msra.mxu0 0.0
    %1687 = vmatprep.subr.mxu0 0.0
    %1688 = vmatpush1.msra.mxu0 0.0
    %1689 = vmatprep.subr.mxu0 0.0
    %1690 = vmatpush1.msra.mxu0 0.0
    %1691 = vmatprep.subr.mxu0 0.0
    %1692 = vmatpush1.msra.mxu0 0.0
    %1693 = vmatprep.subr.mxu0 0.0
    %1694 = vmatpush1.msra.mxu0 0.0
    %1695 = vmatprep.mubr.f32.mxu0 0.0
    %1696 = vmatmul.mubr.f32.gmra.mrb[0].mxu0 %v1623
    %v1697 = vpop.f32.mrb[0].mxu0
    %v1698 = vadd.f32 0.0, %v1697
    %v1699 = vpop.f32.mrb[0].mxu0
    %1700 = vmatprep.mubr.f32.mxu0 0.0
    %1701 = vmatmul.mubr.f32.gmra.mrb[0].mxu0 %v1626
    %v1702 = vpop.f32.mrb[0].mxu0
    %v1703 = vadd.f32 0.0, %v1702
    %v1704 = vpop.f32.mrb[0].mxu0
    %1705 = vmatprep.mubr.f32.mxu0 0.0
    %1706 = vmatmul.mubr.f32.gmra.mrb[0].mxu0 %v1629
    %v1707 = vpop.f32.mrb[0].mxu0
    %v1708 = vadd.f32 0.0, %v1707
    %v1709 = vpop.f32.mrb[0].mxu0
    %1710 = vdwg.mxu0
    %v1711 = vadd.f32 %v1376, %v1698
    %v1712 = vadd.f32 %v1377, %v1703
    %v1713 = vadd.f32 %v1378, %v1708
    %v1716 = vrot.slane %v366, 4
    %v1717 = vrot.slane %v371, 4
    %v1718 = vsel %vm536, %v1716, %v1717
    %v1719 = vrot.slane %v376, 4
    %v1720 = vsel %vm536, %v1717, %v1719
    %1721 = vrot.lane.b32.xlu0 %v1718, 96
    %v1722 = vpop.permute.xlu0 %1721
    %1723 = vrot.lane.b32.xlu0 %v1720, 96
    %v1724 = vpop.permute.xlu0 %1723
    %1725 = vrot.lane.b32.xlu0 %v1719, 96
    %v1726 = vpop.permute.xlu0 %1725
    %v1727 = vsel %vm388, %v1718, 0
    %v1729 = vsel %vm388, %v1720, 0
    %v1731 = vsel %vm388, %v1719, 0
    %v1733 = vsel %vm388, %v1722, 0
    %v1735 = vsel %vm388, %v1724, 0
    %v1737 = vsel %vm388, %v1726, 0
    %1739 = vmatprep.subr.mxu0 0.0
    %1740 = vmatpush1.xpose.msra.mxu0 %v1733
    %1741 = vmatprep.subr.mxu0 0.0
    %1742 = vmatpush1.xpose.msra.mxu0 %v1735
    %1743 = vmatprep.subr.mxu0 0.0
    %1744 = vmatpush1.xpose.msra.mxu0 %v1737
    %1745 = vmatprep.subr.mxu0 0.0
    %1746 = vmatpush1.xpose.msra.mxu0 0.0
    %1747 = vmatprep.subr.mxu0 0.0
    %1748 = vmatpush1.xpose.msra.mxu0 0.0
    %1749 = vmatprep.subr.mxu0 0.0
    %1750 = vmatpush1.xpose.msra.mxu0 0.0
    %1751 = vmatprep.subr.mxu0 0.0
    %1752 = vmatpush1.xpose.msra.mxu0 0.0
    %1753 = vmatprep.subr.mxu0 0.0
    %1754 = vmatpush1.xpose.msra.mxu0 0.0
    %1755 = vmatprep.subr.mxu0 0.0
    %1756 = vmatpush1.xpose.msra.mxu0 0.0
    %1757 = vmatprep.subr.mxu0 0.0
    %1758 = vmatpush1.xpose.msra.mxu0 0.0
    %1759 = vmatprep.subr.mxu0 0.0
    %1760 = vmatpush1.xpose.msra.mxu0 0.0
    %1761 = vmatprep.subr.mxu0 0.0
    %1762 = vmatpush1.xpose.msra.mxu0 0.0
    %1763 = vmatprep.subr.mxu0 0.0
    %1764 = vmatpush1.xpose.msra.mxu0 0.0
    %1765 = vmatprep.subr.mxu0 0.0
    %1766 = vmatpush1.xpose.msra.mxu0 0.0
    %1767 = vmatprep.subr.mxu0 0.0
    %1768 = vmatpush1.xpose.msra.mxu0 0.0
    %1769 = vmatprep.subr.mxu0 0.0
    %1770 = vmatpush1.xpose.msra.mxu0 0.0
    %1771 = vmatprep.subr.mxu0 0.0
    %1772 = vmatpush1.xpose.msra.mxu0 0.0
    %1773 = vmatprep.subr.mxu0 0.0
    %1774 = vmatpush1.xpose.msra.mxu0 0.0
    %1775 = vmatprep.subr.mxu0 0.0
    %1776 = vmatpush1.xpose.msra.mxu0 0.0
    %1777 = vmatprep.subr.mxu0 0.0
    %1778 = vmatpush1.xpose.msra.mxu0 0.0
    %1779 = vmatprep.subr.mxu0 0.0
    %1780 = vmatpush1.xpose.msra.mxu0 0.0
    %1781 = vmatprep.subr.mxu0 0.0
    %1782 = vmatpush1.xpose.msra.mxu0 0.0
    %1783 = vmatprep.subr.mxu0 0.0
    %1784 = vmatpush1.xpose.msra.mxu0 0.0
    %1785 = vmatprep.subr.mxu0 0.0
    %1786 = vmatpush1.xpose.msra.mxu0 0.0
    %1787 = vmatprep.subr.mxu0 0.0
    %1788 = vmatpush1.xpose.msra.mxu0 0.0
    %1789 = vmatprep.subr.mxu0 0.0
    %1790 = vmatpush1.xpose.msra.mxu0 0.0
    %1791 = vmatprep.subr.mxu0 0.0
    %1792 = vmatpush1.xpose.msra.mxu0 0.0
    %1793 = vmatprep.subr.mxu0 0.0
    %1794 = vmatpush1.xpose.msra.mxu0 0.0
    %1795 = vmatprep.subr.mxu0 0.0
    %1796 = vmatpush1.xpose.msra.mxu0 0.0
    %1797 = vmatprep.subr.mxu0 0.0
    %1798 = vmatpush1.xpose.msra.mxu0 0.0
    %1799 = vmatprep.subr.mxu0 0.0
    %1800 = vmatpush1.xpose.msra.mxu0 0.0
    %1801 = vmatprep.subr.mxu0 0.0
    %1802 = vmatpush1.xpose.msra.mxu0 0.0
    %1803 = vmatprep.mubr.f32.mxu0 0.0
    %1804 = vmatmul.mubr.f32.gmra.mrb[0].mxu0 %v1727
    %v1805 = vpop.f32.mrb[0].mxu0
    %v1806 = vadd.f32 0.0, %v1805
    %v1807 = vpop.f32.mrb[0].mxu0
    %1808 = vmatprep.mubr.f32.mxu0 0.0
    %1809 = vmatmul.mubr.f32.gmra.mrb[0].mxu0 %v1729
    %v1810 = vpop.f32.mrb[0].mxu0
    %v1811 = vadd.f32 0.0, %v1810
    %v1812 = vpop.f32.mrb[0].mxu0
    %1813 = vmatprep.mubr.f32.mxu0 0.0
    %1814 = vmatmul.mubr.f32.gmra.mrb[0].mxu0 %v1731
    %v1815 = vpop.f32.mrb[0].mxu0
    %v1816 = vadd.f32 0.0, %v1815
    %v1817 = vpop.f32.mrb[0].mxu0
    %1818 = vdwg.mxu0
    %v1819 = vmul.f32 %v1806, 0.35355338
    %v1820 = vmul.f32 %v1811, 0.35355338
    %v1821 = vmul.f32 %v1816, 0.35355338
    %v1822 = vsel %vm484, %v1819, -inf
    %1823 = vmax.xlane.f32.xlu0 %v1822
    %v1824 = vpop.xlane.xlu0 %1823
    %v1825 = vsel %vm484, %v1820, -inf
    %1826 = vmax.xlane.f32.xlu0 %v1825
    %v1827 = vpop.xlane.xlu0 %1826
    %v1828 = vsel %vm491, %v1821, -inf
    %1829 = vmax.xlane.f32.xlu0 %v1828
    %v1830 = vpop.xlane.xlu0 %1829
    %v1831 = vsub.f32 %v1819, %v1824
    %v1832 = vsub.f32 %v1820, %v1827
    %v1833 = vsub.f32 %v1821, %v1830
    %v1834 = vmul.f32 %v1831, 1.442695
    %v1835 = vpow.pop %v1834
    %v1836 = vmul.f32 %v1832, 1.442695
    %v1837 = vpow.pop %v1836
    %v1838 = vmul.f32 %v1833, 1.442695
    %v1839 = vpow.pop %v1838
    %v1840 = vsel %vm484, %v1835, 0.0
    %1841 = vadd.xlane.f32.xlu0 %v1840
    %v1842 = vpop.xlane.xlu0 %1841
    %v1843 = vsel %vm484, %v1837, 0.0
    %1844 = vadd.xlane.f32.xlu0 %v1843
    %v1845 = vpop.xlane.xlu0 %1844
    %v1846 = vsel %vm491, %v1839, 0.0
    %1847 = vadd.xlane.f32.xlu0 %v1846
    %v1848 = vpop.xlane.xlu0 %1847
    %v1849 = vrcp.pop %v1842
    %v1850 = vrcp.pop %v1845
    %v1851 = vrcp.pop %v1848
    %v1852 = vmul.f32 %v1835, %v1849
    %v1853 = vmul.f32 %v1837, %v1850
    %v1854 = vmul.f32 %v1839, %v1851
    %1855 = vrot.lane.b32.xlu0 %v1718, 64
    %v1856 = vpop.permute.xlu0 %1855
    %1857 = vrot.lane.b32.xlu0 %v1720, 64
    %v1858 = vpop.permute.xlu0 %1857
    %1859 = vrot.lane.b32.xlu0 %v1719, 64
    %v1860 = vpop.permute.xlu0 %1859
    %v1864 = vsel %vm484, %v1852, 0
    %v1867 = vsel %vm484, %v1853, 0
    %v1870 = vsel %vm484, %v1854, 0
    %v1872 = vsel %vm536, %v1860, 0
    %1874 = vmatprep.subr.mxu0 0.0
    %1875 = vmatpush1.msra.mxu0 %v1856
    %1876 = vmatprep.subr.mxu0 0.0
    %1877 = vmatpush1.msra.mxu0 %v1858
    %1878 = vmatprep.subr.mxu0 0.0
    %1879 = vmatpush1.msra.mxu0 %v1872
    %1880 = vmatprep.subr.mxu0 0.0
    %1881 = vmatpush1.msra.mxu0 0.0
    %1882 = vmatprep.subr.mxu0 0.0
    %1883 = vmatpush1.msra.mxu0 0.0
    %1884 = vmatprep.subr.mxu0 0.0
    %1885 = vmatpush1.msra.mxu0 0.0
    %1886 = vmatprep.subr.mxu0 0.0
    %1887 = vmatpush1.msra.mxu0 0.0
    %1888 = vmatprep.subr.mxu0 0.0
    %1889 = vmatpush1.msra.mxu0 0.0
    %1890 = vmatprep.subr.mxu0 0.0
    %1891 = vmatpush1.msra.mxu0 0.0
    %1892 = vmatprep.subr.mxu0 0.0
    %1893 = vmatpush1.msra.mxu0 0.0
    %1894 = vmatprep.subr.mxu0 0.0
    %1895 = vmatpush1.msra.mxu0 0.0
    %1896 = vmatprep.subr.mxu0 0.0
    %1897 = vmatpush1.msra.mxu0 0.0
    %1898 = vmatprep.subr.mxu0 0.0
    %1899 = vmatpush1.msra.mxu0 0.0
    %1900 = vmatprep.subr.mxu0 0.0
    %1901 = vmatpush1.msra.mxu0 0.0
    %1902 = vmatprep.subr.mxu0 0.0
    %1903 = vmatpush1.msra.mxu0 0.0
    %1904 = vmatprep.subr.mxu0 0.0
    %1905 = vmatpush1.msra.mxu0 0.0
    %1906 = vmatprep.subr.mxu0 0.0
    %1907 = vmatpush1.msra.mxu0 0.0
    %1908 = vmatprep.subr.mxu0 0.0
    %1909 = vmatpush1.msra.mxu0 0.0
    %1910 = vmatprep.subr.mxu0 0.0
    %1911 = vmatpush1.msra.mxu0 0.0
    %1912 = vmatprep.subr.mxu0 0.0
    %1913 = vmatpush1.msra.mxu0 0.0
    %1914 = vmatprep.subr.mxu0 0.0
    %1915 = vmatpush1.msra.mxu0 0.0
    %1916 = vmatprep.subr.mxu0 0.0
    %1917 = vmatpush1.msra.mxu0 0.0
    %1918 = vmatprep.subr.mxu0 0.0
    %1919 = vmatpush1.msra.mxu0 0.0
    %1920 = vmatprep.subr.mxu0 0.0
    %1921 = vmatpush1.msra.mxu0 0.0
    %1922 = vmatprep.subr.mxu0 0.0
    %1923 = vmatpush1.msra.mxu0 0.0
    %1924 = vmatprep.subr.mxu0 0.0
    %1925 = vmatpush1.msra.mxu0 0.0
    %1926 = vmatprep.subr.mxu0 0.0
    %1927 = vmatpush1.msra.mxu0 0.0
    %1928 = vmatprep.subr.mxu0 0.0
    %1929 = vmatpush1.msra.mxu0 0.0
    %1930 = vmatprep.subr.mxu0 0.0
    %1931 = vmatpush1.msra.mxu0 0.0
    %1932 = vmatprep.subr.mxu0 0.0
    %1933 = vmatpush1.msra.mxu0 0.0
    %1934 = vmatprep.subr.mxu0 0.0
    %1935 = vmatpush1.msra.mxu0 0.0
    %1936 = vmatprep.subr.mxu0 0.0
    %1937 = vmatpush1.msra.mxu0 0.0
    %1938 = vmatprep.mubr.f32.mxu0 0.0
    %1939 = vmatmul.mubr.f32.gmra.mrb[0].mxu0 %v1864
    %v1940 = vpop.f32.mrb[0].mxu0
    %v1941 = vadd.f32 0.0, %v1940
    %v1942 = vpop.f32.mrb[0].mxu0
    %1943 = vmatprep.mubr.f32.mxu0 0.0
    %1944 = vmatmul.mubr.f32.gmra.mrb[0].mxu0 %v1867
    %v1945 = vpop.f32.mrb[0].mxu0
    %v1946 = vadd.f32 0.0, %v1945
    %v1947 = vpop.f32.mrb[0].mxu0
    %1948 = vmatprep.mubr.f32.mxu0 0.0
    %1949 = vmatmul.mubr.f32.gmra.mrb[0].mxu0 %v1870
    %v1950 = vpop.f32.mrb[0].mxu0
    %v1951 = vadd.f32 0.0, %v1950
    %v1952 = vpop.f32.mrb[0].mxu0
    %1953 = vdwg.mxu0
    %1954 = vrot.lane.b32.xlu0 %v1718, 120
    %v1955 = vpop.permute.xlu0 %1954
    %1956 = vrot.lane.b32.xlu0 %v1720, 120
    %v1957 = vpop.permute.xlu0 %1956
    %1958 = vrot.lane.b32.xlu0 %v1719, 120
    %v1959 = vpop.permute.xlu0 %1958
    %1960 = vrot.lane.b32.xlu0 %v1718, 88
    %v1961 = vpop.permute.xlu0 %1960
    %1962 = vrot.lane.b32.xlu0 %v1720, 88
    %v1963 = vpop.permute.xlu0 %1962
    %1964 = vrot.lane.b32.xlu0 %v1719, 88
    %v1965 = vpop.permute.xlu0 %1964
    %v1966 = vsel %vm388, %v1955, 0
    %v1968 = vsel %vm388, %v1957, 0
    %v1970 = vsel %vm388, %v1959, 0
    %v1972 = vsel %vm388, %v1961, 0
    %v1974 = vsel %vm388, %v1963, 0
    %v1976 = vsel %vm388, %v1965, 0
    %1978 = vmatprep.subr.mxu0 0.0
    %1979 = vmatpush1.xpose.msra.mxu0 %v1972
    %1980 = vmatprep.subr.mxu0 0.0
    %1981 = vmatpush1.xpose.msra.mxu0 %v1974
    %1982 = vmatprep.subr.mxu0 0.0
    %1983 = vmatpush1.xpose.msra.mxu0 %v1976
    %1984 = vmatprep.subr.mxu0 0.0
    %1985 = vmatpush1.xpose.msra.mxu0 0.0
    %1986 = vmatprep.subr.mxu0 0.0
    %1987 = vmatpush1.xpose.msra.mxu0 0.0
    %1988 = vmatprep.subr.mxu0 0.0
    %1989 = vmatpush1.xpose.msra.mxu0 0.0
    %1990 = vmatprep.subr.mxu0 0.0
    %1991 = vmatpush1.xpose.msra.mxu0 0.0
    %1992 = vmatprep.subr.mxu0 0.0
    %1993 = vmatpush1.xpose.msra.mxu0 0.0
    %1994 = vmatprep.subr.mxu0 0.0
    %1995 = vmatpush1.xpose.msra.mxu0 0.0
    %1996 = vmatprep.subr.mxu0 0.0
    %1997 = vmatpush1.xpose.msra.mxu0 0.0
    %1998 = vmatprep.subr.mxu0 0.0
    %1999 = vmatpush1.xpose.msra.mxu0 0.0
    %2000 = vmatprep.subr.mxu0 0.0
    %2001 = vmatpush1.xpose.msra.mxu0 0.0
    %2002 = vmatprep.subr.mxu0 0.0
    %2003 = vmatpush1.xpose.msra.mxu0 0.0
    %2004 = vmatprep.subr.mxu0 0.0
    %2005 = vmatpush1.xpose.msra.mxu0 0.0
    %2006 = vmatprep.subr.mxu0 0.0
    %2007 = vmatpush1.xpose.msra.mxu0 0.0
    %2008 = vmatprep.subr.mxu0 0.0
    %2009 = vmatpush1.xpose.msra.mxu0 0.0
    %2010 = vmatprep.subr.mxu0 0.0
    %2011 = vmatpush1.xpose.msra.mxu0 0.0
    %2012 = vmatprep.subr.mxu0 0.0
    %2013 = vmatpush1.xpose.msra.mxu0 0.0
    %2014 = vmatprep.subr.mxu0 0.0
    %2015 = vmatpush1.xpose.msra.mxu0 0.0
    %2016 = vmatprep.subr.mxu0 0.0
    %2017 = vmatpush1.xpose.msra.mxu0 0.0
    %2018 = vmatprep.subr.mxu0 0.0
    %2019 = vmatpush1.xpose.msra.mxu0 0.0
    %2020 = vmatprep.subr.mxu0 0.0
    %2021 = vmatpush1.xpose.msra.mxu0 0.0
    %2022 = vmatprep.subr.mxu0 0.0
    %2023 = vmatpush1.xpose.msra.mxu0 0.0
    %2024 = vmatprep.subr.mxu0 0.0
    %2025 = vmatpush1.xpose.msra.mxu0 0.0
    %2026 = vmatprep.subr.mxu0 0.0
    %2027 = vmatpush1.xpose.msra.mxu0 0.0
    %2028 = vmatprep.subr.mxu0 0.0
    %2029 = vmatpush1.xpose.msra.mxu0 0.0
    %2030 = vmatprep.subr.mxu0 0.0
    %2031 = vmatpush1.xpose.msra.mxu0 0.0
    %2032 = vmatprep.subr.mxu0 0.0
    %2033 = vmatpush1.xpose.msra.mxu0 0.0
    %2034 = vmatprep.subr.mxu0 0.0
    %2035 = vmatpush1.xpose.msra.mxu0 0.0
    %2036 = vmatprep.subr.mxu0 0.0
    %2037 = vmatpush1.xpose.msra.mxu0 0.0
    %2038 = vmatprep.subr.mxu0 0.0
    %2039 = vmatpush1.xpose.msra.mxu0 0.0
    %2040 = vmatprep.subr.mxu0 0.0
    %2041 = vmatpush1.xpose.msra.mxu0 0.0
    %2042 = vmatprep.mubr.f32.mxu0 0.0
    %2043 = vmatmul.mubr.f32.gmra.mrb[0].mxu0 %v1966
    %v2044 = vpop.f32.mrb[0].mxu0
    %v2045 = vadd.f32 0.0, %v2044
    %v2046 = vpop.f32.mrb[0].mxu0
    %2047 = vmatprep.mubr.f32.mxu0 0.0
    %2048 = vmatmul.mubr.f32.gmra.mrb[0].mxu0 %v1968
    %v2049 = vpop.f32.mrb[0].mxu0
    %v2050 = vadd.f32 0.0, %v2049
    %v2051 = vpop.f32.mrb[0].mxu0
    %2052 = vmatprep.mubr.f32.mxu0 0.0
    %2053 = vmatmul.mubr.f32.gmra.mrb[0].mxu0 %v1970
    %v2054 = vpop.f32.mrb[0].mxu0
    %v2055 = vadd.f32 0.0, %v2054
    %v2056 = vpop.f32.mrb[0].mxu0
    %2057 = vdwg.mxu0
    %v2058 = vmul.f32 %v2045, 0.35355338
    %v2059 = vmul.f32 %v2050, 0.35355338
    %v2060 = vmul.f32 %v2055, 0.35355338
    %v2061 = vsel %vm484, %v2058, -inf
    %2062 = vmax.xlane.f32.xlu0 %v2061
    %v2063 = vpop.xlane.xlu0 %2062
    %v2064 = vsel %vm484, %v2059, -inf
    %2065 = vmax.xlane.f32.xlu0 %v2064
    %v2066 = vpop.xlane.xlu0 %2065
    %v2067 = vsel %vm491, %v2060, -inf
    %2068 = vmax.xlane.f32.xlu0 %v2067
    %v2069 = vpop.xlane.xlu0 %2068
    %v2070 = vsub.f32 %v2058, %v2063
    %v2071 = vsub.f32 %v2059, %v2066
    %v2072 = vsub.f32 %v2060, %v2069
    %v2073 = vmul.f32 %v2070, 1.442695
    %v2074 = vpow.pop %v2073
    %v2075 = vmul.f32 %v2071, 1.442695
    %v2076 = vpow.pop %v2075
    %v2077 = vmul.f32 %v2072, 1.442695
    %v2078 = vpow.pop %v2077
    %v2079 = vsel %vm484, %v2074, 0.0
    %2080 = vadd.xlane.f32.xlu0 %v2079
    %v2081 = vpop.xlane.xlu0 %2080
    %v2082 = vsel %vm484, %v2076, 0.0
    %2083 = vadd.xlane.f32.xlu0 %v2082
    %v2084 = vpop.xlane.xlu0 %2083
    %v2085 = vsel %vm491, %v2078, 0.0
    %2086 = vadd.xlane.f32.xlu0 %v2085
    %v2087 = vpop.xlane.xlu0 %2086
    %v2088 = vrcp.pop %v2081
    %v2089 = vrcp.pop %v2084
    %v2090 = vrcp.pop %v2087
    %v2091 = vmul.f32 %v2074, %v2088
    %v2092 = vmul.f32 %v2076, %v2089
    %v2093 = vmul.f32 %v2078, %v2090
    %2094 = vrot.lane.b32.xlu0 %v1718, 56
    %v2095 = vpop.permute.xlu0 %2094
    %2096 = vrot.lane.b32.xlu0 %v1720, 56
    %v2097 = vpop.permute.xlu0 %2096
    %2098 = vrot.lane.b32.xlu0 %v1719, 56
    %v2099 = vpop.permute.xlu0 %2098
    %v2103 = vsel %vm484, %v2091, 0
    %v2106 = vsel %vm484, %v2092, 0
    %v2109 = vsel %vm484, %v2093, 0
    %v2111 = vsel %vm536, %v2099, 0
    %2113 = vmatprep.subr.mxu0 0.0
    %2114 = vmatpush1.msra.mxu0 %v2095
    %2115 = vmatprep.subr.mxu0 0.0
    %2116 = vmatpush1.msra.mxu0 %v2097
    %2117 = vmatprep.subr.mxu0 0.0
    %2118 = vmatpush1.msra.mxu0 %v2111
    %2119 = vmatprep.subr.mxu0 0.0
    %2120 = vmatpush1.msra.mxu0 0.0
    %2121 = vmatprep.subr.mxu0 0.0
    %2122 = vmatpush1.msra.mxu0 0.0
    %2123 = vmatprep.subr.mxu0 0.0
    %2124 = vmatpush1.msra.mxu0 0.0
    %2125 = vmatprep.subr.mxu0 0.0
    %2126 = vmatpush1.msra.mxu0 0.0
    %2127 = vmatprep.subr.mxu0 0.0
    %2128 = vmatpush1.msra.mxu0 0.0
    %2129 = vmatprep.subr.mxu0 0.0
    %2130 = vmatpush1.msra.mxu0 0.0
    %2131 = vmatprep.subr.mxu0 0.0
    %2132 = vmatpush1.msra.mxu0 0.0
    %2133 = vmatprep.subr.mxu0 0.0
    %2134 = vmatpush1.msra.mxu0 0.0
    %2135 = vmatprep.subr.mxu0 0.0
    %2136 = vmatpush1.msra.mxu0 0.0
    %2137 = vmatprep.subr.mxu0 0.0
    %2138 = vmatpush1.msra.mxu0 0.0
    %2139 = vmatprep.subr.mxu0 0.0
    %2140 = vmatpush1.msra.mxu0 0.0
    %2141 = vmatprep.subr.mxu0 0.0
    %2142 = vmatpush1.msra.mxu0 0.0
    %2143 = vmatprep.subr.mxu0 0.0
    %2144 = vmatpush1.msra.mxu0 0.0
    %2145 = vmatprep.subr.mxu0 0.0
    %2146 = vmatpush1.msra.mxu0 0.0
    %2147 = vmatprep.subr.mxu0 0.0
    %2148 = vmatpush1.msra.mxu0 0.0
    %2149 = vmatprep.subr.mxu0 0.0
    %2150 = vmatpush1.msra.mxu0 0.0
    %2151 = vmatprep.subr.mxu0 0.0
    %2152 = vmatpush1.msra.mxu0 0.0
    %2153 = vmatprep.subr.mxu0 0.0
    %2154 = vmatpush1.msra.mxu0 0.0
    %2155 = vmatprep.subr.mxu0 0.0
    %2156 = vmatpush1.msra.mxu0 0.0
    %2157 = vmatprep.subr.mxu0 0.0
    %2158 = vmatpush1.msra.mxu0 0.0
    %2159 = vmatprep.subr.mxu0 0.0
    %2160 = vmatpush1.msra.mxu0 0.0
    %2161 = vmatprep.subr.mxu0 0.0
    %2162 = vmatpush1.msra.mxu0 0.0
    %2163 = vmatprep.subr.mxu0 0.0
    %2164 = vmatpush1.msra.mxu0 0.0
    %2165 = vmatprep.subr.mxu0 0.0
    %2166 = vmatpush1.msra.mxu0 0.0
    %2167 = vmatprep.subr.mxu0 0.0
    %2168 = vmatpush1.msra.mxu0 0.0
    %2169 = vmatprep.subr.mxu0 0.0
    %2170 = vmatpush1.msra.mxu0 0.0
    %2171 = vmatprep.subr.mxu0 0.0
    %2172 = vmatpush1.msra.mxu0 0.0
    %2173 = vmatprep.subr.mxu0 0.0
    %2174 = vmatpush1.msra.mxu0 0.0
    %2175 = vmatprep.subr.mxu0 0.0
    %2176 = vmatpush1.msra.mxu0 0.0
    %2177 = vmatprep.mubr.f32.mxu0 0.0
    %2178 = vmatmul.mubr.f32.gmra.mrb[0].mxu0 %v2103
    %v2179 = vpop.f32.mrb[0].mxu0
    %v2180 = vadd.f32 0.0, %v2179
    %v2181 = vpop.f32.mrb[0].mxu0
    %2182 = vmatprep.mubr.f32.mxu0 0.0
    %2183 = vmatmul.mubr.f32.gmra.mrb[0].mxu0 %v2106
    %v2184 = vpop.f32.mrb[0].mxu0
    %v2185 = vadd.f32 0.0, %v2184
    %v2186 = vpop.f32.mrb[0].mxu0
    %2187 = vmatprep.mubr.f32.mxu0 0.0
    %2188 = vmatmul.mubr.f32.gmra.mrb[0].mxu0 %v2109
    %v2189 = vpop.f32.mrb[0].mxu0
    %v2190 = vadd.f32 0.0, %v2189
    %v2191 = vpop.f32.mrb[0].mxu0
    %2192 = vdwg.mxu0
    %v2194 = vsel %vm388, %v2180, 0
    %v2197 = vsel %vm388, %v2185, 0
    %v2200 = vsel %vm388, %v2190, 0
    %2202 = vmatprep.subr.mxu0 0.0
    %2203 = vmatpush1.msra.mxu0 %v860
    %2204 = vmatprep.subr.mxu0 0.0
    %2205 = vmatpush1.msra.mxu0 0.0
    %2206 = vmatprep.subr.mxu0 0.0
    %2207 = vmatpush1.msra.mxu0 0.0
    %2208 = vmatprep.subr.mxu0 0.0
    %2209 = vmatpush1.msra.mxu0 0.0
    %2210 = vmatprep.subr.mxu0 0.0
    %2211 = vmatpush1.msra.mxu0 0.0
    %2212 = vmatprep.subr.mxu0 0.0
    %2213 = vmatpush1.msra.mxu0 0.0
    %2214 = vmatprep.subr.mxu0 0.0
    %2215 = vmatpush1.msra.mxu0 0.0
    %2216 = vmatprep.subr.mxu0 0.0
    %2217 = vmatpush1.msra.mxu0 0.0
    %2218 = vmatprep.subr.mxu0 0.0
    %2219 = vmatpush1.msra.mxu0 0.0
    %2220 = vmatprep.subr.mxu0 0.0
    %2221 = vmatpush1.msra.mxu0 0.0
    %2222 = vmatprep.subr.mxu0 0.0
    %2223 = vmatpush1.msra.mxu0 0.0
    %2224 = vmatprep.subr.mxu0 0.0
    %2225 = vmatpush1.msra.mxu0 0.0
    %2226 = vmatprep.subr.mxu0 0.0
    %2227 = vmatpush1.msra.mxu0 0.0
    %2228 = vmatprep.subr.mxu0 0.0
    %2229 = vmatpush1.msra.mxu0 0.0
    %2230 = vmatprep.subr.mxu0 0.0
    %2231 = vmatpush1.msra.mxu0 0.0
    %2232 = vmatprep.subr.mxu0 0.0
    %2233 = vmatpush1.msra.mxu0 0.0
    %2234 = vmatprep.subr.mxu0 0.0
    %2235 = vmatpush1.msra.mxu0 0.0
    %2236 = vmatprep.subr.mxu0 0.0
    %2237 = vmatpush1.msra.mxu0 0.0
    %2238 = vmatprep.subr.mxu0 0.0
    %2239 = vmatpush1.msra.mxu0 0.0
    %2240 = vmatprep.subr.mxu0 0.0
    %2241 = vmatpush1.msra.mxu0 0.0
    %2242 = vmatprep.subr.mxu0 0.0
    %2243 = vmatpush1.msra.mxu0 0.0
    %2244 = vmatprep.subr.mxu0 0.0
    %2245 = vmatpush1.msra.mxu0 0.0
    %2246 = vmatprep.subr.mxu0 0.0
    %2247 = vmatpush1.msra.mxu0 0.0
    %2248 = vmatprep.subr.mxu0 0.0
    %2249 = vmatpush1.msra.mxu0 0.0
    %2250 = vmatprep.subr.mxu0 0.0
    %2251 = vmatpush1.msra.mxu0 0.0
    %2252 = vmatprep.subr.mxu0 0.0
    %2253 = vmatpush1.msra.mxu0 0.0
    %2254 = vmatprep.subr.mxu0 0.0
    %2255 = vmatpush1.msra.mxu0 0.0
    %2256 = vmatprep.subr.mxu0 0.0
    %2257 = vmatpush1.msra.mxu0 0.0
    %2258 = vmatprep.subr.mxu0 0.0
    %2259 = vmatpush1.msra.mxu0 0.0
    %2260 = vmatprep.subr.mxu0 0.0
    %2261 = vmatpush1.msra.mxu0 0.0
    %2262 = vmatprep.subr.mxu0 0.0
    %2263 = vmatpush1.msra.mxu0 0.0
    %2264 = vmatprep.subr.mxu0 0.0
    %2265 = vmatpush1.msra.mxu0 0.0
    %2266 = vmatprep.mubr.f32.mxu0 0.0
    %2267 = vmatmul.mubr.f32.gmra.mrb[0].mxu0 %v2194
    %v2268 = vpop.f32.mrb[0].mxu0
    %v2269 = vadd.f32 0.0, %v2268
    %v2270 = vpop.f32.mrb[0].mxu0
    %2271 = vmatprep.mubr.f32.mxu0 0.0
    %2272 = vmatmul.mubr.f32.gmra.mrb[0].mxu0 %v2197
    %v2273 = vpop.f32.mrb[0].mxu0
    %v2274 = vadd.f32 0.0, %v2273
    %v2275 = vpop.f32.mrb[0].mxu0
    %2276 = vmatprep.mubr.f32.mxu0 0.0
    %2277 = vmatmul.mubr.f32.gmra.mrb[0].mxu0 %v2200
    %v2278 = vpop.f32.mrb[0].mxu0
    %v2279 = vadd.f32 0.0, %v2278
    %v2280 = vpop.f32.mrb[0].mxu0
    %2281 = vdwg.mxu0
    %v2283 = vsel %vm388, %v1941, 0
    %v2286 = vsel %vm388, %v1946, 0
    %v2289 = vsel %vm388, %v1951, 0
    %2291 = vmatprep.subr.mxu0 0.0
    %2292 = vmatpush1.msra.mxu0 %v953
    %2293 = vmatprep.subr.mxu0 0.0
    %2294 = vmatpush1.msra.mxu0 0.0
    %2295 = vmatprep.subr.mxu0 0.0
    %2296 = vmatpush1.msra.mxu0 0.0
    %2297 = vmatprep.subr.mxu0 0.0
    %2298 = vmatpush1.msra.mxu0 0.0
    %2299 = vmatprep.subr.mxu0 0.0
    %2300 = vmatpush1.msra.mxu0 0.0
    %2301 = vmatprep.subr.mxu0 0.0
    %2302 = vmatpush1.msra.mxu0 0.0
    %2303 = vmatprep.subr.mxu0 0.0
    %2304 = vmatpush1.msra.mxu0 0.0
    %2305 = vmatprep.subr.mxu0 0.0
    %2306 = vmatpush1.msra.mxu0 0.0
    %2307 = vmatprep.subr.mxu0 0.0
    %2308 = vmatpush1.msra.mxu0 0.0
    %2309 = vmatprep.subr.mxu0 0.0
    %2310 = vmatpush1.msra.mxu0 0.0
    %2311 = vmatprep.subr.mxu0 0.0
    %2312 = vmatpush1.msra.mxu0 0.0
    %2313 = vmatprep.subr.mxu0 0.0
    %2314 = vmatpush1.msra.mxu0 0.0
    %2315 = vmatprep.subr.mxu0 0.0
    %2316 = vmatpush1.msra.mxu0 0.0
    %2317 = vmatprep.subr.mxu0 0.0
    %2318 = vmatpush1.msra.mxu0 0.0
    %2319 = vmatprep.subr.mxu0 0.0
    %2320 = vmatpush1.msra.mxu0 0.0
    %2321 = vmatprep.subr.mxu0 0.0
    %2322 = vmatpush1.msra.mxu0 0.0
    %2323 = vmatprep.subr.mxu0 0.0
    %2324 = vmatpush1.msra.mxu0 0.0
    %2325 = vmatprep.subr.mxu0 0.0
    %2326 = vmatpush1.msra.mxu0 0.0
    %2327 = vmatprep.subr.mxu0 0.0
    %2328 = vmatpush1.msra.mxu0 0.0
    %2329 = vmatprep.subr.mxu0 0.0
    %2330 = vmatpush1.msra.mxu0 0.0
    %2331 = vmatprep.subr.mxu0 0.0
    %2332 = vmatpush1.msra.mxu0 0.0
    %2333 = vmatprep.subr.mxu0 0.0
    %2334 = vmatpush1.msra.mxu0 0.0
    %2335 = vmatprep.subr.mxu0 0.0
    %2336 = vmatpush1.msra.mxu0 0.0
    %2337 = vmatprep.subr.mxu0 0.0
    %2338 = vmatpush1.msra.mxu0 0.0
    %2339 = vmatprep.subr.mxu0 0.0
    %2340 = vmatpush1.msra.mxu0 0.0
    %2341 = vmatprep.subr.mxu0 0.0
    %2342 = vmatpush1.msra.mxu0 0.0
    %2343 = vmatprep.subr.mxu0 0.0
    %2344 = vmatpush1.msra.mxu0 0.0
    %2345 = vmatprep.subr.mxu0 0.0
    %2346 = vmatpush1.msra.mxu0 0.0
    %2347 = vmatprep.subr.mxu0 0.0
    %2348 = vmatpush1.msra.mxu0 0.0
    %2349 = vmatprep.subr.mxu0 0.0
    %2350 = vmatpush1.msra.mxu0 0.0
    %2351 = vmatprep.subr.mxu0 0.0
    %2352 = vmatpush1.msra.mxu0 0.0
    %2353 = vmatprep.subr.mxu0 0.0
    %2354 = vmatpush1.msra.mxu0 0.0
    %2355 = vmatprep.mubr.f32.mxu0 0.0
    %2356 = vmatmul.mubr.f32.gmra.mrb[0].mxu0 %v2283
    %v2357 = vpop.f32.mrb[0].mxu0
    %v2358 = vadd.f32 %v2269, %v2357
    %v2359 = vpop.f32.mrb[0].mxu0
    %2360 = vmatprep.mubr.f32.mxu0 0.0
    %2361 = vmatmul.mubr.f32.gmra.mrb[0].mxu0 %v2286
    %v2362 = vpop.f32.mrb[0].mxu0
    %v2363 = vadd.f32 %v2274, %v2362
    %v2364 = vpop.f32.mrb[0].mxu0
    %2365 = vmatprep.mubr.f32.mxu0 0.0
    %2366 = vmatmul.mubr.f32.gmra.mrb[0].mxu0 %v2289
    %v2367 = vpop.f32.mrb[0].mxu0
    %v2368 = vadd.f32 %v2279, %v2367
    %v2369 = vpop.f32.mrb[0].mxu0
    %2370 = vdwg.mxu0
    %2371 = vrot.lane.b32.xlu0 %v1718, 112
    %v2372 = vpop.permute.xlu0 %2371
    %2373 = vrot.lane.b32.xlu0 %v1720, 112
    %v2374 = vpop.permute.xlu0 %2373
    %2375 = vrot.lane.b32.xlu0 %v1719, 112
    %v2376 = vpop.permute.xlu0 %2375
    %2377 = vrot.lane.b32.xlu0 %v1718, 80
    %v2378 = vpop.permute.xlu0 %2377
    %2379 = vrot.lane.b32.xlu0 %v1720, 80
    %v2380 = vpop.permute.xlu0 %2379
    %2381 = vrot.lane.b32.xlu0 %v1719, 80
    %v2382 = vpop.permute.xlu0 %2381
    %v2383 = vsel %vm388, %v2372, 0
    %v2385 = vsel %vm388, %v2374, 0
    %v2387 = vsel %vm388, %v2376, 0
    %v2389 = vsel %vm388, %v2378, 0
    %v2391 = vsel %vm388, %v2380, 0
    %v2393 = vsel %vm388, %v2382, 0
    %2395 = vmatprep.subr.mxu0 0.0
    %2396 = vmatpush1.xpose.msra.mxu0 %v2389
    %2397 = vmatprep.subr.mxu0 0.0
    %2398 = vmatpush1.xpose.msra.mxu0 %v2391
    %2399 = vmatprep.subr.mxu0 0.0
    %2400 = vmatpush1.xpose.msra.mxu0 %v2393
    %2401 = vmatprep.subr.mxu0 0.0
    %2402 = vmatpush1.xpose.msra.mxu0 0.0
    %2403 = vmatprep.subr.mxu0 0.0
    %2404 = vmatpush1.xpose.msra.mxu0 0.0
    %2405 = vmatprep.subr.mxu0 0.0
    %2406 = vmatpush1.xpose.msra.mxu0 0.0
    %2407 = vmatprep.subr.mxu0 0.0
    %2408 = vmatpush1.xpose.msra.mxu0 0.0
    %2409 = vmatprep.subr.mxu0 0.0
    %2410 = vmatpush1.xpose.msra.mxu0 0.0
    %2411 = vmatprep.subr.mxu0 0.0
    %2412 = vmatpush1.xpose.msra.mxu0 0.0
    %2413 = vmatprep.subr.mxu0 0.0
    %2414 = vmatpush1.xpose.msra.mxu0 0.0
    %2415 = vmatprep.subr.mxu0 0.0
    %2416 = vmatpush1.xpose.msra.mxu0 0.0
    %2417 = vmatprep.subr.mxu0 0.0
    %2418 = vmatpush1.xpose.msra.mxu0 0.0
    %2419 = vmatprep.subr.mxu0 0.0
    %2420 = vmatpush1.xpose.msra.mxu0 0.0
    %2421 = vmatprep.subr.mxu0 0.0
    %2422 = vmatpush1.xpose.msra.mxu0 0.0
    %2423 = vmatprep.subr.mxu0 0.0
    %2424 = vmatpush1.xpose.msra.mxu0 0.0
    %2425 = vmatprep.subr.mxu0 0.0
    %2426 = vmatpush1.xpose.msra.mxu0 0.0
    %2427 = vmatprep.subr.mxu0 0.0
    %2428 = vmatpush1.xpose.msra.mxu0 0.0
    %2429 = vmatprep.subr.mxu0 0.0
    %2430 = vmatpush1.xpose.msra.mxu0 0.0
    %2431 = vmatprep.subr.mxu0 0.0
    %2432 = vmatpush1.xpose.msra.mxu0 0.0
    %2433 = vmatprep.subr.mxu0 0.0
    %2434 = vmatpush1.xpose.msra.mxu0 0.0
    %2435 = vmatprep.subr.mxu0 0.0
    %2436 = vmatpush1.xpose.msra.mxu0 0.0
    %2437 = vmatprep.subr.mxu0 0.0
    %2438 = vmatpush1.xpose.msra.mxu0 0.0
    %2439 = vmatprep.subr.mxu0 0.0
    %2440 = vmatpush1.xpose.msra.mxu0 0.0
    %2441 = vmatprep.subr.mxu0 0.0
    %2442 = vmatpush1.xpose.msra.mxu0 0.0
    %2443 = vmatprep.subr.mxu0 0.0
    %2444 = vmatpush1.xpose.msra.mxu0 0.0
    %2445 = vmatprep.subr.mxu0 0.0
    %2446 = vmatpush1.xpose.msra.mxu0 0.0
    %2447 = vmatprep.subr.mxu0 0.0
    %2448 = vmatpush1.xpose.msra.mxu0 0.0
    %2449 = vmatprep.subr.mxu0 0.0
    %2450 = vmatpush1.xpose.msra.mxu0 0.0
    %2451 = vmatprep.subr.mxu0 0.0
    %2452 = vmatpush1.xpose.msra.mxu0 0.0
    %2453 = vmatprep.subr.mxu0 0.0
    %2454 = vmatpush1.xpose.msra.mxu0 0.0
    %2455 = vmatprep.subr.mxu0 0.0
    %2456 = vmatpush1.xpose.msra.mxu0 0.0
    %2457 = vmatprep.subr.mxu0 0.0
    %2458 = vmatpush1.xpose.msra.mxu0 0.0
    %2459 = vmatprep.mubr.f32.mxu0 0.0
    %2460 = vmatmul.mubr.f32.gmra.mrb[0].mxu0 %v2383
    %v2461 = vpop.f32.mrb[0].mxu0
    %v2462 = vadd.f32 0.0, %v2461
    %v2463 = vpop.f32.mrb[0].mxu0
    %2464 = vmatprep.mubr.f32.mxu0 0.0
    %2465 = vmatmul.mubr.f32.gmra.mrb[0].mxu0 %v2385
    %v2466 = vpop.f32.mrb[0].mxu0
    %v2467 = vadd.f32 0.0, %v2466
    %v2468 = vpop.f32.mrb[0].mxu0
    %2469 = vmatprep.mubr.f32.mxu0 0.0
    %2470 = vmatmul.mubr.f32.gmra.mrb[0].mxu0 %v2387
    %v2471 = vpop.f32.mrb[0].mxu0
    %v2472 = vadd.f32 0.0, %v2471
    %v2473 = vpop.f32.mrb[0].mxu0
    %2474 = vdwg.mxu0
    %v2475 = vmul.f32 %v2462, 0.35355338
    %v2476 = vmul.f32 %v2467, 0.35355338
    %v2477 = vmul.f32 %v2472, 0.35355338
    %v2478 = vsel %vm484, %v2475, -inf
    %2479 = vmax.xlane.f32.xlu0 %v2478
    %v2480 = vpop.xlane.xlu0 %2479
    %v2481 = vsel %vm484, %v2476, -inf
    %2482 = vmax.xlane.f32.xlu0 %v2481
    %v2483 = vpop.xlane.xlu0 %2482
    %v2484 = vsel %vm491, %v2477, -inf
    %2485 = vmax.xlane.f32.xlu0 %v2484
    %v2486 = vpop.xlane.xlu0 %2485
    %v2487 = vsub.f32 %v2475, %v2480
    %v2488 = vsub.f32 %v2476, %v2483
    %v2489 = vsub.f32 %v2477, %v2486
    %v2490 = vmul.f32 %v2487, 1.442695
    %v2491 = vpow.pop %v2490
    %v2492 = vmul.f32 %v2488, 1.442695
    %v2493 = vpow.pop %v2492
    %v2494 = vmul.f32 %v2489, 1.442695
    %v2495 = vpow.pop %v2494
    %v2496 = vsel %vm484, %v2491, 0.0
    %2497 = vadd.xlane.f32.xlu0 %v2496
    %v2498 = vpop.xlane.xlu0 %2497
    %v2499 = vsel %vm484, %v2493, 0.0
    %2500 = vadd.xlane.f32.xlu0 %v2499
    %v2501 = vpop.xlane.xlu0 %2500
    %v2502 = vsel %vm491, %v2495, 0.0
    %2503 = vadd.xlane.f32.xlu0 %v2502
    %v2504 = vpop.xlane.xlu0 %2503
    %v2505 = vrcp.pop %v2498
    %v2506 = vrcp.pop %v2501
    %v2507 = vrcp.pop %v2504
    %v2508 = vmul.f32 %v2491, %v2505
    %v2509 = vmul.f32 %v2493, %v2506
    %v2510 = vmul.f32 %v2495, %v2507
    %2511 = vrot.lane.b32.xlu0 %v1718, 48
    %v2512 = vpop.permute.xlu0 %2511
    %2513 = vrot.lane.b32.xlu0 %v1720, 48
    %v2514 = vpop.permute.xlu0 %2513
    %2515 = vrot.lane.b32.xlu0 %v1719, 48
    %v2516 = vpop.permute.xlu0 %2515
    %v2520 = vsel %vm484, %v2508, 0
    %v2523 = vsel %vm484, %v2509, 0
    %v2526 = vsel %vm484, %v2510, 0
    %v2528 = vsel %vm536, %v2516, 0
    %2530 = vmatprep.subr.mxu0 0.0
    %2531 = vmatpush1.msra.mxu0 %v2512
    %2532 = vmatprep.subr.mxu0 0.0
    %2533 = vmatpush1.msra.mxu0 %v2514
    %2534 = vmatprep.subr.mxu0 0.0
    %2535 = vmatpush1.msra.mxu0 %v2528
    %2536 = vmatprep.subr.mxu0 0.0
    %2537 = vmatpush1.msra.mxu0 0.0
    %2538 = vmatprep.subr.mxu0 0.0
    %2539 = vmatpush1.msra.mxu0 0.0
    %2540 = vmatprep.subr.mxu0 0.0
    %2541 = vmatpush1.msra.mxu0 0.0
    %2542 = vmatprep.subr.mxu0 0.0
    %2543 = vmatpush1.msra.mxu0 0.0
    %2544 = vmatprep.subr.mxu0 0.0
    %2545 = vmatpush1.msra.mxu0 0.0
    %2546 = vmatprep.subr.mxu0 0.0
    %2547 = vmatpush1.msra.mxu0 0.0
    %2548 = vmatprep.subr.mxu0 0.0
    %2549 = vmatpush1.msra.mxu0 0.0
    %2550 = vmatprep.subr.mxu0 0.0
    %2551 = vmatpush1.msra.mxu0 0.0
    %2552 = vmatprep.subr.mxu0 0.0
    %2553 = vmatpush1.msra.mxu0 0.0
    %2554 = vmatprep.subr.mxu0 0.0
    %2555 = vmatpush1.msra.mxu0 0.0
    %2556 = vmatprep.subr.mxu0 0.0
    %2557 = vmatpush1.msra.mxu0 0.0
    %2558 = vmatprep.subr.mxu0 0.0
    %2559 = vmatpush1.msra.mxu0 0.0
    %2560 = vmatprep.subr.mxu0 0.0
    %2561 = vmatpush1.msra.mxu0 0.0
    %2562 = vmatprep.subr.mxu0 0.0
    %2563 = vmatpush1.msra.mxu0 0.0
    %2564 = vmatprep.subr.mxu0 0.0
    %2565 = vmatpush1.msra.mxu0 0.0
    %2566 = vmatprep.subr.mxu0 0.0
    %2567 = vmatpush1.msra.mxu0 0.0
    %2568 = vmatprep.subr.mxu0 0.0
    %2569 = vmatpush1.msra.mxu0 0.0
    %2570 = vmatprep.subr.mxu0 0.0
    %2571 = vmatpush1.msra.mxu0 0.0
    %2572 = vmatprep.subr.mxu0 0.0
    %2573 = vmatpush1.msra.mxu0 0.0
    %2574 = vmatprep.subr.mxu0 0.0
    %2575 = vmatpush1.msra.mxu0 0.0
    %2576 = vmatprep.subr.mxu0 0.0
    %2577 = vmatpush1.msra.mxu0 0.0
    %2578 = vmatprep.subr.mxu0 0.0
    %2579 = vmatpush1.msra.mxu0 0.0
    %2580 = vmatprep.subr.mxu0 0.0
    %2581 = vmatpush1.msra.mxu0 0.0
    %2582 = vmatprep.subr.mxu0 0.0
    %2583 = vmatpush1.msra.mxu0 0.0
    %2584 = vmatprep.subr.mxu0 0.0
    %2585 = vmatpush1.msra.mxu0 0.0
    %2586 = vmatprep.subr.mxu0 0.0
    %2587 = vmatpush1.msra.mxu0 0.0
    %2588 = vmatprep.subr.mxu0 0.0
    %2589 = vmatpush1.msra.mxu0 0.0
    %2590 = vmatprep.subr.mxu0 0.0
    %2591 = vmatpush1.msra.mxu0 0.0
    %2592 = vmatprep.subr.mxu0 0.0
    %2593 = vmatpush1.msra.mxu0 0.0
    %2594 = vmatprep.mubr.f32.mxu0 0.0
    %2595 = vmatmul.mubr.f32.gmra.mrb[0].mxu0 %v2520
    %v2596 = vpop.f32.mrb[0].mxu0
    %v2597 = vadd.f32 0.0, %v2596
    %v2598 = vpop.f32.mrb[0].mxu0
    %2599 = vmatprep.mubr.f32.mxu0 0.0
    %2600 = vmatmul.mubr.f32.gmra.mrb[0].mxu0 %v2523
    %v2601 = vpop.f32.mrb[0].mxu0
    %v2602 = vadd.f32 0.0, %v2601
    %v2603 = vpop.f32.mrb[0].mxu0
    %2604 = vmatprep.mubr.f32.mxu0 0.0
    %2605 = vmatmul.mubr.f32.gmra.mrb[0].mxu0 %v2526
    %v2606 = vpop.f32.mrb[0].mxu0
    %v2607 = vadd.f32 0.0, %v2606
    %v2608 = vpop.f32.mrb[0].mxu0
    %2609 = vdwg.mxu0
    %v2611 = vsel %vm388, %v2597, 0
    %v2614 = vsel %vm388, %v2602, 0
    %v2617 = vsel %vm388, %v2607, 0
    %2619 = vmatprep.subr.mxu0 0.0
    %2620 = vmatpush1.msra.mxu0 %v1285
    %2621 = vmatprep.subr.mxu0 0.0
    %2622 = vmatpush1.msra.mxu0 0.0
    %2623 = vmatprep.subr.mxu0 0.0
    %2624 = vmatpush1.msra.mxu0 0.0
    %2625 = vmatprep.subr.mxu0 0.0
    %2626 = vmatpush1.msra.mxu0 0.0
    %2627 = vmatprep.subr.mxu0 0.0
    %2628 = vmatpush1.msra.mxu0 0.0
    %2629 = vmatprep.subr.mxu0 0.0
    %2630 = vmatpush1.msra.mxu0 0.0
    %2631 = vmatprep.subr.mxu0 0.0
    %2632 = vmatpush1.msra.mxu0 0.0
    %2633 = vmatprep.subr.mxu0 0.0
    %2634 = vmatpush1.msra.mxu0 0.0
    %2635 = vmatprep.subr.mxu0 0.0
    %2636 = vmatpush1.msra.mxu0 0.0
    %2637 = vmatprep.subr.mxu0 0.0
    %2638 = vmatpush1.msra.mxu0 0.0
    %2639 = vmatprep.subr.mxu0 0.0
    %2640 = vmatpush1.msra.mxu0 0.0
    %2641 = vmatprep.subr.mxu0 0.0
    %2642 = vmatpush1.msra.mxu0 0.0
    %2643 = vmatprep.subr.mxu0 0.0
    %2644 = vmatpush1.msra.mxu0 0.0
    %2645 = vmatprep.subr.mxu0 0.0
    %2646 = vmatpush1.msra.mxu0 0.0
    %2647 = vmatprep.subr.mxu0 0.0
    %2648 = vmatpush1.msra.mxu0 0.0
    %2649 = vmatprep.subr.mxu0 0.0
    %2650 = vmatpush1.msra.mxu0 0.0
    %2651 = vmatprep.subr.mxu0 0.0
    %2652 = vmatpush1.msra.mxu0 0.0
    %2653 = vmatprep.subr.mxu0 0.0
    %2654 = vmatpush1.msra.mxu0 0.0
    %2655 = vmatprep.subr.mxu0 0.0
    %2656 = vmatpush1.msra.mxu0 0.0
    %2657 = vmatprep.subr.mxu0 0.0
    %2658 = vmatpush1.msra.mxu0 0.0
    %2659 = vmatprep.subr.mxu0 0.0
    %2660 = vmatpush1.msra.mxu0 0.0
    %2661 = vmatprep.subr.mxu0 0.0
    %2662 = vmatpush1.msra.mxu0 0.0
    %2663 = vmatprep.subr.mxu0 0.0
    %2664 = vmatpush1.msra.mxu0 0.0
    %2665 = vmatprep.subr.mxu0 0.0
    %2666 = vmatpush1.msra.mxu0 0.0
    %2667 = vmatprep.subr.mxu0 0.0
    %2668 = vmatpush1.msra.mxu0 0.0
    %2669 = vmatprep.subr.mxu0 0.0
    %2670 = vmatpush1.msra.mxu0 0.0
    %2671 = vmatprep.subr.mxu0 0.0
    %2672 = vmatpush1.msra.mxu0 0.0
    %2673 = vmatprep.subr.mxu0 0.0
    %2674 = vmatpush1.msra.mxu0 0.0
    %2675 = vmatprep.subr.mxu0 0.0
    %2676 = vmatpush1.msra.mxu0 0.0
    %2677 = vmatprep.subr.mxu0 0.0
    %2678 = vmatpush1.msra.mxu0 0.0
    %2679 = vmatprep.subr.mxu0 0.0
    %2680 = vmatpush1.msra.mxu0 0.0
    %2681 = vmatprep.subr.mxu0 0.0
    %2682 = vmatpush1.msra.mxu0 0.0
    %2683 = vmatprep.mubr.f32.mxu0 0.0
    %2684 = vmatmul.mubr.f32.gmra.mrb[0].mxu0 %v2611
    %v2685 = vpop.f32.mrb[0].mxu0
    %v2686 = vadd.f32 0.0, %v2685
    %v2687 = vpop.f32.mrb[0].mxu0
    %2688 = vmatprep.mubr.f32.mxu0 0.0
    %2689 = vmatmul.mubr.f32.gmra.mrb[0].mxu0 %v2614
    %v2690 = vpop.f32.mrb[0].mxu0
    %v2691 = vadd.f32 0.0, %v2690
    %v2692 = vpop.f32.mrb[0].mxu0
    %2693 = vmatprep.mubr.f32.mxu0 0.0
    %2694 = vmatmul.mubr.f32.gmra.mrb[0].mxu0 %v2617
    %v2695 = vpop.f32.mrb[0].mxu0
    %v2696 = vadd.f32 0.0, %v2695
    %v2697 = vpop.f32.mrb[0].mxu0
    %2698 = vdwg.mxu0
    %v2699 = vadd.f32 %v2358, %v2686
    %v2700 = vadd.f32 %v2363, %v2691
    %v2701 = vadd.f32 %v2368, %v2696
    %2702 = vrot.lane.b32.xlu0 %v1718, 104
    %v2703 = vpop.permute.xlu0 %2702
    %2704 = vrot.lane.b32.xlu0 %v1720, 104
    %v2705 = vpop.permute.xlu0 %2704
    %2706 = vrot.lane.b32.xlu0 %v1719, 104
    %v2707 = vpop.permute.xlu0 %2706
    %2708 = vrot.lane.b32.xlu0 %v1718, 72
    %v2709 = vpop.permute.xlu0 %2708
    %2710 = vrot.lane.b32.xlu0 %v1720, 72
    %v2711 = vpop.permute.xlu0 %2710
    %2712 = vrot.lane.b32.xlu0 %v1719, 72
    %v2713 = vpop.permute.xlu0 %2712
    %v2714 = vsel %vm388, %v2703, 0
    %v2716 = vsel %vm388, %v2705, 0
    %v2718 = vsel %vm388, %v2707, 0
    %v2720 = vsel %vm388, %v2709, 0
    %v2722 = vsel %vm388, %v2711, 0
    %v2724 = vsel %vm388, %v2713, 0
    %2726 = vmatprep.subr.mxu0 0.0
    %2727 = vmatpush1.xpose.msra.mxu0 %v2720
    %2728 = vmatprep.subr.mxu0 0.0
    %2729 = vmatpush1.xpose.msra.mxu0 %v2722
    %2730 = vmatprep.subr.mxu0 0.0
    %2731 = vmatpush1.xpose.msra.mxu0 %v2724
    %2732 = vmatprep.subr.mxu0 0.0
    %2733 = vmatpush1.xpose.msra.mxu0 0.0
    %2734 = vmatprep.subr.mxu0 0.0
    %2735 = vmatpush1.xpose.msra.mxu0 0.0
    %2736 = vmatprep.subr.mxu0 0.0
    %2737 = vmatpush1.xpose.msra.mxu0 0.0
    %2738 = vmatprep.subr.mxu0 0.0
    %2739 = vmatpush1.xpose.msra.mxu0 0.0
    %2740 = vmatprep.subr.mxu0 0.0
    %2741 = vmatpush1.xpose.msra.mxu0 0.0
    %2742 = vmatprep.subr.mxu0 0.0
    %2743 = vmatpush1.xpose.msra.mxu0 0.0
    %2744 = vmatprep.subr.mxu0 0.0
    %2745 = vmatpush1.xpose.msra.mxu0 0.0
    %2746 = vmatprep.subr.mxu0 0.0
    %2747 = vmatpush1.xpose.msra.mxu0 0.0
    %2748 = vmatprep.subr.mxu0 0.0
    %2749 = vmatpush1.xpose.msra.mxu0 0.0
    %2750 = vmatprep.subr.mxu0 0.0
    %2751 = vmatpush1.xpose.msra.mxu0 0.0
    %2752 = vmatprep.subr.mxu0 0.0
    %2753 = vmatpush1.xpose.msra.mxu0 0.0
    %2754 = vmatprep.subr.mxu0 0.0
    %2755 = vmatpush1.xpose.msra.mxu0 0.0
    %2756 = vmatprep.subr.mxu0 0.0
    %2757 = vmatpush1.xpose.msra.mxu0 0.0
    %2758 = vmatprep.subr.mxu0 0.0
    %2759 = vmatpush1.xpose.msra.mxu0 0.0
    %2760 = vmatprep.subr.mxu0 0.0
    %2761 = vmatpush1.xpose.msra.mxu0 0.0
    %2762 = vmatprep.subr.mxu0 0.0
    %2763 = vmatpush1.xpose.msra.mxu0 0.0
    %2764 = vmatprep.subr.mxu0 0.0
    %2765 = vmatpush1.xpose.msra.mxu0 0.0
    %2766 = vmatprep.subr.mxu0 0.0
    %2767 = vmatpush1.xpose.msra.mxu0 0.0
    %2768 = vmatprep.subr.mxu0 0.0
    %2769 = vmatpush1.xpose.msra.mxu0 0.0
    %2770 = vmatprep.subr.mxu0 0.0
    %2771 = vmatpush1.xpose.msra.mxu0 0.0
    %2772 = vmatprep.subr.mxu0 0.0
    %2773 = vmatpush1.xpose.msra.mxu0 0.0
    %2774 = vmatprep.subr.mxu0 0.0
    %2775 = vmatpush1.xpose.msra.mxu0 0.0
    %2776 = vmatprep.subr.mxu0 0.0
    %2777 = vmatpush1.xpose.msra.mxu0 0.0
    %2778 = vmatprep.subr.mxu0 0.0
    %2779 = vmatpush1.xpose.msra.mxu0 0.0
    %2780 = vmatprep.subr.mxu0 0.0
    %2781 = vmatpush1.xpose.msra.mxu0 0.0
    %2782 = vmatprep.subr.mxu0 0.0
    %2783 = vmatpush1.xpose.msra.mxu0 0.0
    %2784 = vmatprep.subr.mxu0 0.0
    %2785 = vmatpush1.xpose.msra.mxu0 0.0
    %2786 = vmatprep.subr.mxu0 0.0
    %2787 = vmatpush1.xpose.msra.mxu0 0.0
    %2788 = vmatprep.subr.mxu0 0.0
    %2789 = vmatpush1.xpose.msra.mxu0 0.0
    %2790 = vmatprep.mubr.f32.mxu0 0.0
    %2791 = vmatmul.mubr.f32.gmra.mrb[0].mxu0 %v2714
    %v2792 = vpop.f32.mrb[0].mxu0
    %v2793 = vadd.f32 0.0, %v2792
    %v2794 = vpop.f32.mrb[0].mxu0
    %2795 = vmatprep.mubr.f32.mxu0 0.0
    %2796 = vmatmul.mubr.f32.gmra.mrb[0].mxu0 %v2716
    %v2797 = vpop.f32.mrb[0].mxu0
    %v2798 = vadd.f32 0.0, %v2797
    %v2799 = vpop.f32.mrb[0].mxu0
    %2800 = vmatprep.mubr.f32.mxu0 0.0
    %2801 = vmatmul.mubr.f32.gmra.mrb[0].mxu0 %v2718
    %v2802 = vpop.f32.mrb[0].mxu0
    %v2803 = vadd.f32 0.0, %v2802
    %v2804 = vpop.f32.mrb[0].mxu0
    %2805 = vdwg.mxu0
    %v2806 = vmul.f32 %v2793, 0.35355338
    %v2807 = vmul.f32 %v2798, 0.35355338
    %v2808 = vmul.f32 %v2803, 0.35355338
    %v2809 = vsel %vm484, %v2806, -inf
    %2810 = vmax.xlane.f32.xlu0 %v2809
    %v2811 = vpop.xlane.xlu0 %2810
    %v2812 = vsel %vm484, %v2807, -inf
    %2813 = vmax.xlane.f32.xlu0 %v2812
    %v2814 = vpop.xlane.xlu0 %2813
    %v2815 = vsel %vm491, %v2808, -inf
    %2816 = vmax.xlane.f32.xlu0 %v2815
    %v2817 = vpop.xlane.xlu0 %2816
    %v2818 = vsub.f32 %v2806, %v2811
    %v2819 = vsub.f32 %v2807, %v2814
    %v2820 = vsub.f32 %v2808, %v2817
    %v2821 = vmul.f32 %v2818, 1.442695
    %v2822 = vpow.pop %v2821
    %v2823 = vmul.f32 %v2819, 1.442695
    %v2824 = vpow.pop %v2823
    %v2825 = vmul.f32 %v2820, 1.442695
    %v2826 = vpow.pop %v2825
    %v2827 = vsel %vm484, %v2822, 0.0
    %2828 = vadd.xlane.f32.xlu0 %v2827
    %v2829 = vpop.xlane.xlu0 %2828
    %v2830 = vsel %vm484, %v2824, 0.0
    %2831 = vadd.xlane.f32.xlu0 %v2830
    %v2832 = vpop.xlane.xlu0 %2831
    %v2833 = vsel %vm491, %v2826, 0.0
    %2834 = vadd.xlane.f32.xlu0 %v2833
    %v2835 = vpop.xlane.xlu0 %2834
    %v2836 = vrcp.pop %v2829
    %v2837 = vrcp.pop %v2832
    %v2838 = vrcp.pop %v2835
    %v2839 = vmul.f32 %v2822, %v2836
    %v2840 = vmul.f32 %v2824, %v2837
    %v2841 = vmul.f32 %v2826, %v2838
    %2842 = vrot.lane.b32.xlu0 %v1718, 40
    %v2843 = vpop.permute.xlu0 %2842
    %2844 = vrot.lane.b32.xlu0 %v1720, 40
    %v2845 = vpop.permute.xlu0 %2844
    %2846 = vrot.lane.b32.xlu0 %v1719, 40
    %v2847 = vpop.permute.xlu0 %2846
    %v2851 = vsel %vm484, %v2839, 0
    %v2854 = vsel %vm484, %v2840, 0
    %v2857 = vsel %vm484, %v2841, 0
    %v2859 = vsel %vm536, %v2847, 0
    %2861 = vmatprep.subr.mxu0 0.0
    %2862 = vmatpush1.msra.mxu0 %v2843
    %2863 = vmatprep.subr.mxu0 0.0
    %2864 = vmatpush1.msra.mxu0 %v2845
    %2865 = vmatprep.subr.mxu0 0.0
    %2866 = vmatpush1.msra.mxu0 %v2859
    %2867 = vmatprep.subr.mxu0 0.0
    %2868 = vmatpush1.msra.mxu0 0.0
    %2869 = vmatprep.subr.mxu0 0.0
    %2870 = vmatpush1.msra.mxu0 0.0
    %2871 = vmatprep.subr.mxu0 0.0
    %2872 = vmatpush1.msra.mxu0 0.0
    %2873 = vmatprep.subr.mxu0 0.0
    %2874 = vmatpush1.msra.mxu0 0.0
    %2875 = vmatprep.subr.mxu0 0.0
    %2876 = vmatpush1.msra.mxu0 0.0
    %2877 = vmatprep.subr.mxu0 0.0
    %2878 = vmatpush1.msra.mxu0 0.0
    %2879 = vmatprep.subr.mxu0 0.0
    %2880 = vmatpush1.msra.mxu0 0.0
    %2881 = vmatprep.subr.mxu0 0.0
    %2882 = vmatpush1.msra.mxu0 0.0
    %2883 = vmatprep.subr.mxu0 0.0
    %2884 = vmatpush1.msra.mxu0 0.0
    %2885 = vmatprep.subr.mxu0 0.0
    %2886 = vmatpush1.msra.mxu0 0.0
    %2887 = vmatprep.subr.mxu0 0.0
    %2888 = vmatpush1.msra.mxu0 0.0
    %2889 = vmatprep.subr.mxu0 0.0
    %2890 = vmatpush1.msra.mxu0 0.0
    %2891 = vmatprep.subr.mxu0 0.0
    %2892 = vmatpush1.msra.mxu0 0.0
    %2893 = vmatprep.subr.mxu0 0.0
    %2894 = vmatpush1.msra.mxu0 0.0
    %2895 = vmatprep.subr.mxu0 0.0
    %2896 = vmatpush1.msra.mxu0 0.0
    %2897 = vmatprep.subr.mxu0 0.0
    %2898 = vmatpush1.msra.mxu0 0.0
    %2899 = vmatprep.subr.mxu0 0.0
    %2900 = vmatpush1.msra.mxu0 0.0
    %2901 = vmatprep.subr.mxu0 0.0
    %2902 = vmatpush1.msra.mxu0 0.0
    %2903 = vmatprep.subr.mxu0 0.0
    %2904 = vmatpush1.msra.mxu0 0.0
    %2905 = vmatprep.subr.mxu0 0.0
    %2906 = vmatpush1.msra.mxu0 0.0
    %2907 = vmatprep.subr.mxu0 0.0
    %2908 = vmatpush1.msra.mxu0 0.0
    %2909 = vmatprep.subr.mxu0 0.0
    %2910 = vmatpush1.msra.mxu0 0.0
    %2911 = vmatprep.subr.mxu0 0.0
    %2912 = vmatpush1.msra.mxu0 0.0
    %2913 = vmatprep.subr.mxu0 0.0
    %2914 = vmatpush1.msra.mxu0 0.0
    %2915 = vmatprep.subr.mxu0 0.0
    %2916 = vmatpush1.msra.mxu0 0.0
    %2917 = vmatprep.subr.mxu0 0.0
    %2918 = vmatpush1.msra.mxu0 0.0
    %2919 = vmatprep.subr.mxu0 0.0
    %2920 = vmatpush1.msra.mxu0 0.0
    %2921 = vmatprep.subr.mxu0 0.0
    %2922 = vmatpush1.msra.mxu0 0.0
    %2923 = vmatprep.subr.mxu0 0.0
    %2924 = vmatpush1.msra.mxu0 0.0
    %2925 = vmatprep.mubr.f32.mxu0 0.0
    %2926 = vmatmul.mubr.f32.gmra.mrb[0].mxu0 %v2851
    %v2927 = vpop.f32.mrb[0].mxu0
    %v2928 = vadd.f32 0.0, %v2927
    %v2929 = vpop.f32.mrb[0].mxu0
    %2930 = vmatprep.mubr.f32.mxu0 0.0
    %2931 = vmatmul.mubr.f32.gmra.mrb[0].mxu0 %v2854
    %v2932 = vpop.f32.mrb[0].mxu0
    %v2933 = vadd.f32 0.0, %v2932
    %v2934 = vpop.f32.mrb[0].mxu0
    %2935 = vmatprep.mubr.f32.mxu0 0.0
    %2936 = vmatmul.mubr.f32.gmra.mrb[0].mxu0 %v2857
    %v2937 = vpop.f32.mrb[0].mxu0
    %v2938 = vadd.f32 0.0, %v2937
    %v2939 = vpop.f32.mrb[0].mxu0
    %2940 = vdwg.mxu0
    %v2942 = vsel %vm388, %v2928, 0
    %v2945 = vsel %vm388, %v2933, 0
    %v2948 = vsel %vm388, %v2938, 0
    %2950 = vmatprep.subr.mxu0 0.0
    %2951 = vmatpush1.msra.mxu0 %v1620
    %2952 = vmatprep.subr.mxu0 0.0
    %2953 = vmatpush1.msra.mxu0 0.0
    %2954 = vmatprep.subr.mxu0 0.0
    %2955 = vmatpush1.msra.mxu0 0.0
    %2956 = vmatprep.subr.mxu0 0.0
    %2957 = vmatpush1.msra.mxu0 0.0
    %2958 = vmatprep.subr.mxu0 0.0
    %2959 = vmatpush1.msra.mxu0 0.0
    %2960 = vmatprep.subr.mxu0 0.0
    %2961 = vmatpush1.msra.mxu0 0.0
    %2962 = vmatprep.subr.mxu0 0.0
    %2963 = vmatpush1.msra.mxu0 0.0
    %2964 = vmatprep.subr.mxu0 0.0
    %2965 = vmatpush1.msra.mxu0 0.0
    %2966 = vmatprep.subr.mxu0 0.0
    %2967 = vmatpush1.msra.mxu0 0.0
    %2968 = vmatprep.subr.mxu0 0.0
    %2969 = vmatpush1.msra.mxu0 0.0
    %2970 = vmatprep.subr.mxu0 0.0
    %2971 = vmatpush1.msra.mxu0 0.0
    %2972 = vmatprep.subr.mxu0 0.0
    %2973 = vmatpush1.msra.mxu0 0.0
    %2974 = vmatprep.subr.mxu0 0.0
    %2975 = vmatpush1.msra.mxu0 0.0
    %2976 = vmatprep.subr.mxu0 0.0
    %2977 = vmatpush1.msra.mxu0 0.0
    %2978 = vmatprep.subr.mxu0 0.0
    %2979 = vmatpush1.msra.mxu0 0.0
    %2980 = vmatprep.subr.mxu0 0.0
    %2981 = vmatpush1.msra.mxu0 0.0
    %2982 = vmatprep.subr.mxu0 0.0
    %2983 = vmatpush1.msra.mxu0 0.0
    %2984 = vmatprep.subr.mxu0 0.0
    %2985 = vmatpush1.msra.mxu0 0.0
    %2986 = vmatprep.subr.mxu0 0.0
    %2987 = vmatpush1.msra.mxu0 0.0
    %2988 = vmatprep.subr.mxu0 0.0
    %2989 = vmatpush1.msra.mxu0 0.0
    %2990 = vmatprep.subr.mxu0 0.0
    %2991 = vmatpush1.msra.mxu0 0.0
    %2992 = vmatprep.subr.mxu0 0.0
    %2993 = vmatpush1.msra.mxu0 0.0
    %2994 = vmatprep.subr.mxu0 0.0
    %2995 = vmatpush1.msra.mxu0 0.0
    %2996 = vmatprep.subr.mxu0 0.0
    %2997 = vmatpush1.msra.mxu0 0.0
    %2998 = vmatprep.subr.mxu0 0.0
    %2999 = vmatpush1.msra.mxu0 0.0
    %3000 = vmatprep.subr.mxu0 0.0
    %3001 = vmatpush1.msra.mxu0 0.0
    %3002 = vmatprep.subr.mxu0 0.0
    %3003 = vmatpush1.msra.mxu0 0.0
    %3004 = vmatprep.subr.mxu0 0.0
    %3005 = vmatpush1.msra.mxu0 0.0
    %3006 = vmatprep.subr.mxu0 0.0
    %3007 = vmatpush1.msra.mxu0 0.0
    %3008 = vmatprep.subr.mxu0 0.0
    %3009 = vmatpush1.msra.mxu0 0.0
    %3010 = vmatprep.subr.mxu0 0.0
    %3011 = vmatpush1.msra.mxu0 0.0
    %3012 = vmatprep.subr.mxu0 0.0
    %3013 = vmatpush1.msra.mxu0 0.0
    %3014 = vmatprep.mubr.f32.mxu0 0.0
    %3015 = vmatmul.mubr.f32.gmra.mrb[0].mxu0 %v2942
    %v3016 = vpop.f32.mrb[0].mxu0
    %v3017 = vadd.f32 0.0, %v3016
    %v3018 = vpop.f32.mrb[0].mxu0
    %3019 = vmatprep.mubr.f32.mxu0 0.0
    %3020 = vmatmul.mubr.f32.gmra.mrb[0].mxu0 %v2945
    %v3021 = vpop.f32.mrb[0].mxu0
    %v3022 = vadd.f32 0.0, %v3021
    %v3023 = vpop.f32.mrb[0].mxu0
    %3024 = vmatprep.mubr.f32.mxu0 0.0
    %3025 = vmatmul.mubr.f32.gmra.mrb[0].mxu0 %v2948
    %v3026 = vpop.f32.mrb[0].mxu0
    %v3027 = vadd.f32 0.0, %v3026
    %v3028 = vpop.f32.mrb[0].mxu0
    %3029 = vdwg.mxu0
    %v3030 = vadd.f32 %v2699, %v3017
    %v3031 = vadd.f32 %v2700, %v3022
    %v3032 = vadd.f32 %v2701, %v3027
    %v3036 = vrot.slane %v3030, 4
    %v3037 = vrot.slane %v3031, 4
    %v3038 = vsel %vm536, %v3036, %v3037
    %v3039 = vrot.slane %v3032, 4
    %v3040 = vsel %vm536, %v3037, %v3039
    %v3044 = vsel %vm536, %v1713, %v3036
    %v3045 = vadd.f32 %v155, %v1711
    %v3046 = vadd.f32 %v160, %v1712
    %v3047 = vadd.f32 %v165, %v3044
    %v3048 = vadd.f32 %v170, %v3038
    %v3049 = vadd.f32 %v175, %v3040
    %v3050 = vld [vmem:[%s6 + $0xb] sm:$0x1]
    %v3051 = vlaneseq
    %v3052 = vshrl.u32 %v3051, 7
    %v3053 = vsub.s32 0, %v3052
    %v3054 = vrot.slane %v3050, %v3053
    %v3055 = vadd.f32 %v3045, %v3054
    %v3056 = vadd.f32 %v3046, %v3054
    %v3057 = vadd.f32 %v3047, %v3054
    %v3058 = vadd.f32 %v3048, %v3054
    %v3059 = vadd.f32 %v3049, %v3054
    %v3060 = vsel %vm178, %v3055, 0.0
    %3061 = vadd.xlane.f32.xlu0 %v3060
    %v3062 = vpop.xlane.xlu0 %3061
    %v3063 = vsel %vm178, %v3056, 0.0
    %3064 = vadd.xlane.f32.xlu0 %v3063
    %v3065 = vpop.xlane.xlu0 %3064
    %v3066 = vsel %vm178, %v3057, 0.0
    %3067 = vadd.xlane.f32.xlu0 %v3066
    %v3068 = vpop.xlane.xlu0 %3067
    %v3069 = vsel %vm178, %v3058, 0.0
    %3070 = vadd.xlane.f32.xlu0 %v3069
    %v3071 = vpop.xlane.xlu0 %3070
    %v3072 = vsel %vm178, %v3059, 0.0
    %3073 = vadd.xlane.f32.xlu0 %v3072
    %v3074 = vpop.xlane.xlu0 %3073
    %v3075 = vmul.f32 %v3062, %v194
    %v3076 = vmul.f32 %v3065, %v194
    %v3077 = vmul.f32 %v3068, %v194
    %v3078 = vmul.f32 %v3071, %v194
    %v3079 = vmul.f32 %v3074, %v194
    %v3080 = vsub.f32 %v3055, %v3075
    %v3081 = vsub.f32 %v3056, %v3076
    %v3082 = vsub.f32 %v3057, %v3077
    %v3083 = vsub.f32 %v3058, %v3078
    %v3084 = vsub.f32 %v3059, %v3079
    %v3085 = vmul.f32 %v3080, %v3080
    %v3086 = vmul.f32 %v3081, %v3081
    %v3087 = vmul.f32 %v3082, %v3082
    %v3088 = vmul.f32 %v3083, %v3083
    %v3089 = vmul.f32 %v3084, %v3084
    %v3090 = vsel %vm178, %v3085, 0.0
    %3091 = vadd.xlane.f32.xlu0 %v3090
    %v3092 = vpop.xlane.xlu0 %3091
    %v3093 = vsel %vm178, %v3086, 0.0
    %3094 = vadd.xlane.f32.xlu0 %v3093
    %v3095 = vpop.xlane.xlu0 %3094
    %v3096 = vsel %vm178, %v3087, 0.0
    %3097 = vadd.xlane.f32.xlu0 %v3096
    %v3098 = vpop.xlane.xlu0 %3097
    %v3099 = vsel %vm178, %v3088, 0.0
    %3100 = vadd.xlane.f32.xlu0 %v3099
    %v3101 = vpop.xlane.xlu0 %3100
    %v3102 = vsel %vm178, %v3089, 0.0
    %3103 = vadd.xlane.f32.xlu0 %v3102
    %v3104 = vpop.xlane.xlu0 %3103
    %v3105 = vmul.f32 %v3092, %v194
    %v3106 = vmul.f32 %v3095, %v194
    %v3107 = vmul.f32 %v3098, %v194
    %v3108 = vmul.f32 %v3101, %v194
    %v3109 = vmul.f32 %v3104, %v194
    %v3110 = vadd.f32 %v3105, 1e-06
    %v3111 = vadd.f32 %v3106, 1e-06
    %v3112 = vadd.f32 %v3107, 1e-06
    %v3113 = vadd.f32 %v3108, 1e-06
    %v3114 = vadd.f32 %v3109, 1e-06
    %v3115 = vrsqrt.pop %v3110
    %v3116 = vrsqrt.pop %v3111
    %v3117 = vrsqrt.pop %v3112
    %v3118 = vrsqrt.pop %v3113
    %v3119 = vrsqrt.pop %v3114
    %v3120 = vmul.f32 %v3080, %v3115
    %v3121 = vmul.f32 %v3081, %v3116
    %v3122 = vmul.f32 %v3082, %v3117
    %v3123 = vmul.f32 %v3083, %v3118
    %v3124 = vmul.f32 %v3084, %v3119
    %v3125 = vld [vmem:[%s6 + $0x2] sm:$0x1]
    %v3126 = vlaneseq
    %v3127 = vshrl.u32 %v3126, 7
    %v3128 = vsub.s32 0, %v3127
    %v3129 = vrot.slane %v3125, %v3128
    %v3130 = vmul.f32 %v3120, %v3129
    %v3131 = vmul.f32 %v3121, %v3129
    %v3132 = vmul.f32 %v3122, %v3129
    %v3133 = vmul.f32 %v3123, %v3129
    %v3134 = vmul.f32 %v3124, %v3129
    %v3135 = vld [vmem:[%s6 + $0x3] sm:$0x1]
    %v3136 = vlaneseq
    %v3137 = vshrl.u32 %v3136, 7
    %v3138 = vsub.s32 0, %v3137
    %v3139 = vrot.slane %v3135, %v3138
    %v3140 = vadd.f32 %v3130, %v3139
    %v3141 = vadd.f32 %v3131, %v3139
    %v3142 = vadd.f32 %v3132, %v3139
    %v3143 = vadd.f32 %v3133, %v3139
    %v3144 = vadd.f32 %v3134, %v3139
    %v3145 = vld [vmem:[%s4 + $0x8] sm:$0xff]
    %v3146 = vld [vmem:[%s4 + $0x28] sm:$0xff]
    %v3147 = vld [vmem:[%s4 + $0x48] sm:$0xff]
    %v3148 = vld [vmem:[%s4 + $0x68] sm:$0xff]
    %v3149 = vld [vmem:[%s5] sm:$0xff]
    %v3150 = vld [vmem:[%s5 + $0x8] sm:$0xff]
    %v3151 = vld [vmem:[%s5 + $0x10] sm:$0xff]
    %v3152 = vld [vmem:[%s5 + $0x18] sm:$0xff]
    %v3153 = vld [vmem:[%s5 + $0x20] sm:$0xff]
    %v3154 = vld [vmem:[%s5 + $0x28] sm:$0xff]
    %v3155 = vld [vmem:[%s5 + $0x30] sm:$0xff]
    %v3156 = vld [vmem:[%s5 + $0x38] sm:$0xff]
    %v3157 = vld [vmem:[%s6 + $0xc] sm:$0x1]
    %v3158 = vlaneseq
    %v3159 = vshrl.u32 %v3158, 7
    %v3160 = vsub.s32 0, %v3159
    %v3161 = vrot.slane %v3157, %v3160
    %v3163 = vsel %vm178, %v3140, 0
    %v3166 = vsel %vm178, %v3141, 0
    %v3169 = vsel %vm178, %v3142, 0
    %v3172 = vsel %vm178, %v3143, 0
    %v3175 = vsel %vm178, %v3144, 0
    %3177 = vmatprep.subr.mxu0 0.0
    %3178 = vmatpush1.msra.mxu0 %v3145
    %3179 = vmatprep.subr.mxu0 0.0
    %3180 = vmatpush1.msra.mxu0 %v3146
    %3181 = vmatprep.subr.mxu0 0.0
    %3182 = vmatpush1.msra.mxu0 %v3147
    %3183 = vmatprep.subr.mxu0 0.0
    %3184 = vmatpush1.msra.mxu0 %v3148
    %3185 = vmatprep.subr.mxu0 0.0
    %3186 = vmatpush1.msra.mxu0 0.0
    %3187 = vmatprep.subr.mxu0 0.0
    %3188 = vmatpush1.msra.mxu0 0.0
    %3189 = vmatprep.subr.mxu0 0.0
    %3190 = vmatpush1.msra.mxu0 0.0
    %3191 = vmatprep.subr.mxu0 0.0
    %3192 = vmatpush1.msra.mxu0 0.0
    %3193 = vmatprep.subr.mxu0 0.0
    %3194 = vmatpush1.msra.mxu0 0.0
    %3195 = vmatprep.subr.mxu0 0.0
    %3196 = vmatpush1.msra.mxu0 0.0
    %3197 = vmatprep.subr.mxu0 0.0
    %3198 = vmatpush1.msra.mxu0 0.0
    %3199 = vmatprep.subr.mxu0 0.0
    %3200 = vmatpush1.msra.mxu0 0.0
    %3201 = vmatprep.subr.mxu0 0.0
    %3202 = vmatpush1.msra.mxu0 0.0
    %3203 = vmatprep.subr.mxu0 0.0
    %3204 = vmatpush1.msra.mxu0 0.0
    %3205 = vmatprep.subr.mxu0 0.0
    %3206 = vmatpush1.msra.mxu0 0.0
    %3207 = vmatprep.subr.mxu0 0.0
    %3208 = vmatpush1.msra.mxu0 0.0
    %3209 = vmatprep.subr.mxu0 0.0
    %3210 = vmatpush1.msra.mxu0 0.0
    %3211 = vmatprep.subr.mxu0 0.0
    %3212 = vmatpush1.msra.mxu0 0.0
    %3213 = vmatprep.subr.mxu0 0.0
    %3214 = vmatpush1.msra.mxu0 0.0
    %3215 = vmatprep.subr.mxu0 0.0
    %3216 = vmatpush1.msra.mxu0 0.0
    %3217 = vmatprep.subr.mxu0 0.0
    %3218 = vmatpush1.msra.mxu0 0.0
    %3219 = vmatprep.subr.mxu0 0.0
    %3220 = vmatpush1.msra.mxu0 0.0
    %3221 = vmatprep.subr.mxu0 0.0
    %3222 = vmatpush1.msra.mxu0 0.0
    %3223 = vmatprep.subr.mxu0 0.0
    %3224 = vmatpush1.msra.mxu0 0.0
    %3225 = vmatprep.subr.mxu0 0.0
    %3226 = vmatpush1.msra.mxu0 0.0
    %3227 = vmatprep.subr.mxu0 0.0
    %3228 = vmatpush1.msra.mxu0 0.0
    %3229 = vmatprep.subr.mxu0 0.0
    %3230 = vmatpush1.msra.mxu0 0.0
    %3231 = vmatprep.subr.mxu0 0.0
    %3232 = vmatpush1.msra.mxu0 0.0
    %3233 = vmatprep.subr.mxu0 0.0
    %3234 = vmatpush1.msra.mxu0 0.0
    %3235 = vmatprep.subr.mxu0 0.0
    %3236 = vmatpush1.msra.mxu0 0.0
    %3237 = vmatprep.subr.mxu0 0.0
    %3238 = vmatpush1.msra.mxu0 0.0
    %3239 = vmatprep.subr.mxu0 0.0
    %3240 = vmatpush1.msra.mxu0 0.0
    %3241 = vmatprep.mubr.f32.mxu0 0.0
    %3242 = vmatmul.mubr.f32.gmra.mrb[0].mxu0 %v3163
    %v3243 = vpop.f32.mrb[0].mxu0
    %v3244 = vadd.f32 %v3161, %v3243
    %v3245 = vpop.f32.mrb[0].mxu0
    %3246 = vmatprep.mubr.f32.mxu0 0.0
    %3247 = vmatmul.mubr.f32.gmra.mrb[0].mxu0 %v3166
    %v3248 = vpop.f32.mrb[0].mxu0
    %v3249 = vadd.f32 %v3161, %v3248
    %v3250 = vpop.f32.mrb[0].mxu0
    %3251 = vmatprep.mubr.f32.mxu0 0.0
    %3252 = vmatmul.mubr.f32.gmra.mrb[0].mxu0 %v3169
    %v3253 = vpop.f32.mrb[0].mxu0
    %v3254 = vadd.f32 %v3161, %v3253
    %v3255 = vpop.f32.mrb[0].mxu0
    %3256 = vmatprep.mubr.f32.mxu0 0.0
    %3257 = vmatmul.mubr.f32.gmra.mrb[0].mxu0 %v3172
    %v3258 = vpop.f32.mrb[0].mxu0
    %v3259 = vadd.f32 %v3161, %v3258
    %v3260 = vpop.f32.mrb[0].mxu0
    %3261 = vmatprep.mubr.f32.mxu0 0.0
    %3262 = vmatmul.mubr.f32.gmra.mrb[0].mxu0 %v3175
    %v3263 = vpop.f32.mrb[0].mxu0
    %v3264 = vadd.f32 %v3161, %v3263
    %v3265 = vpop.f32.mrb[0].mxu0
    %3266 = vdwg.mxu0
    %v3267 = vmul.f32 %v3244, 0.5
    %v3268 = vmul.f32 %v3249, 0.5
    %v3269 = vmul.f32 %v3254, 0.5
    %v3270 = vmul.f32 %v3259, 0.5
    %v3271 = vmul.f32 %v3264, 0.5
    %v3272 = vmul.f32 %v3244, 0.70710677
    %v3273 = vmul.f32 %v3249, 0.70710677
    %v3274 = vmul.f32 %v3254, 0.70710677
    %v3275 = vmul.f32 %v3259, 0.70710677
    %v3276 = vmul.f32 %v3264, 0.70710677
    %v3277 = verf.f32.pop %v3272
    %v3278 = verf.f32.pop %v3273
    %v3279 = verf.f32.pop %v3274
    %v3280 = verf.f32.pop %v3275
    %v3281 = verf.f32.pop %v3276
    %v3282 = vadd.f32 %v3277, 1.0
    %v3283 = vadd.f32 %v3278, 1.0
    %v3284 = vadd.f32 %v3279, 1.0
    %v3285 = vadd.f32 %v3280, 1.0
    %v3286 = vadd.f32 %v3281, 1.0
    %v3287 = vmul.f32 %v3267, %v3282
    %v3288 = vmul.f32 %v3268, %v3283
    %v3289 = vmul.f32 %v3269, %v3284
    %v3290 = vmul.f32 %v3270, %v3285
    %v3291 = vmul.f32 %v3271, %v3286
    %v3292 = vld [vmem:[%s6 + $0xd] sm:$0x1]
    %v3293 = vlaneseq
    %v3294 = vshrl.u32 %v3293, 7
    %v3295 = vsub.s32 0, %v3294
    %v3296 = vrot.slane %v3292, %v3295
    %vm3297 = vcmask 523264
    %v3299 = vsel %vm3297, %v3287, 0
    %v3302 = vsel %vm3297, %v3288, 0
    %v3305 = vsel %vm3297, %v3289, 0
    %v3308 = vsel %vm3297, %v3290, 0
    %v3311 = vsel %vm3297, %v3291, 0
    %3313 = vmatprep.subr.mxu0 0.0
    %3314 = vmatpush1.msra.mxu0 %v3149
    %3315 = vmatprep.subr.mxu0 0.0
    %3316 = vmatpush1.msra.mxu0 %v3150
    %3317 = vmatprep.subr.mxu0 0.0
    %3318 = vmatpush1.msra.mxu0 %v3151
    %3319 = vmatprep.subr.mxu0 0.0
    %3320 = vmatpush1.msra.mxu0 %v3152
    %3321 = vmatprep.subr.mxu0 0.0
    %3322 = vmatpush1.msra.mxu0 %v3153
    %3323 = vmatprep.subr.mxu0 0.0
    %3324 = vmatpush1.msra.mxu0 %v3154
    %3325 = vmatprep.subr.mxu0 0.0
    %3326 = vmatpush1.msra.mxu0 %v3155
    %3327 = vmatprep.subr.mxu0 0.0
    %3328 = vmatpush1.msra.mxu0 %v3156
    %3329 = vmatprep.subr.mxu0 0.0
    %3330 = vmatpush1.msra.mxu0 0.0
    %3331 = vmatprep.subr.mxu0 0.0
    %3332 = vmatpush1.msra.mxu0 0.0
    %3333 = vmatprep.subr.mxu0 0.0
    %3334 = vmatpush1.msra.mxu0 0.0
    %3335 = vmatprep.subr.mxu0 0.0
    %3336 = vmatpush1.msra.mxu0 0.0
    %3337 = vmatprep.subr.mxu0 0.0
    %3338 = vmatpush1.msra.mxu0 0.0
    %3339 = vmatprep.subr.mxu0 0.0
    %3340 = vmatpush1.msra.mxu0 0.0
    %3341 = vmatprep.subr.mxu0 0.0
    %3342 = vmatpush1.msra.mxu0 0.0
    %3343 = vmatprep.subr.mxu0 0.0
    %3344 = vmatpush1.msra.mxu0 0.0
    %3345 = vmatprep.subr.mxu0 0.0
    %3346 = vmatpush1.msra.mxu0 0.0
    %3347 = vmatprep.subr.mxu0 0.0
    %3348 = vmatpush1.msra.mxu0 0.0
    %3349 = vmatprep.subr.mxu0 0.0
    %3350 = vmatpush1.msra.mxu0 0.0
    %3351 = vmatprep.subr.mxu0 0.0
    %3352 = vmatpush1.msra.mxu0 0.0
    %3353 = vmatprep.subr.mxu0 0.0
    %3354 = vmatpush1.msra.mxu0 0.0
    %3355 = vmatprep.subr.mxu0 0.0
    %3356 = vmatpush1.msra.mxu0 0.0
    %3357 = vmatprep.subr.mxu0 0.0
    %3358 = vmatpush1.msra.mxu0 0.0
    %3359 = vmatprep.subr.mxu0 0.0
    %3360 = vmatpush1.msra.mxu0 0.0
    %3361 = vmatprep.subr.mxu0 0.0
    %3362 = vmatpush1.msra.mxu0 0.0
    %3363 = vmatprep.subr.mxu0 0.0
    %3364 = vmatpush1.msra.mxu0 0.0
    %3365 = vmatprep.subr.mxu0 0.0
    %3366 = vmatpush1.msra.mxu0 0.0
    %3367 = vmatprep.subr.mxu0 0.0
    %3368 = vmatpush1.msra.mxu0 0.0
    %3369 = vmatprep.subr.mxu0 0.0
    %3370 = vmatpush1.msra.mxu0 0.0
    %3371 = vmatprep.subr.mxu0 0.0
    %3372 = vmatpush1.msra.mxu0 0.0
    %3373 = vmatprep.subr.mxu0 0.0
    %3374 = vmatpush1.msra.mxu0 0.0
    %3375 = vmatprep.subr.mxu0 0.0
    %3376 = vmatpush1.msra.mxu0 0.0
    %3377 = vmatprep.mubr.f32.mxu0 0.0
    %3378 = vmatmul.mubr.f32.gmra.mrb[0].mxu0 %v3299
    %v3379 = vpop.f32.mrb[0].mxu0
    %v3380 = vadd.f32 %v3296, %v3379
    %v3381 = vpop.f32.mrb[0].mxu0
    %3382 = vmatprep.mubr.f32.mxu0 0.0
    %3383 = vmatmul.mubr.f32.gmra.mrb[0].mxu0 %v3302
    %v3384 = vpop.f32.mrb[0].mxu0
    %v3385 = vadd.f32 %v3296, %v3384
    %v3386 = vpop.f32.mrb[0].mxu0
    %3387 = vmatprep.mubr.f32.mxu0 0.0
    %3388 = vmatmul.mubr.f32.gmra.mrb[0].mxu0 %v3305
    %v3389 = vpop.f32.mrb[0].mxu0
    %v3390 = vadd.f32 %v3296, %v3389
    %v3391 = vpop.f32.mrb[0].mxu0
    %3392 = vmatprep.mubr.f32.mxu0 0.0
    %3393 = vmatmul.mubr.f32.gmra.mrb[0].mxu0 %v3308
    %v3394 = vpop.f32.mrb[0].mxu0
    %v3395 = vadd.f32 %v3296, %v3394
    %v3396 = vpop.f32.mrb[0].mxu0
    %3397 = vmatprep.mubr.f32.mxu0 0.0
    %3398 = vmatmul.mubr.f32.gmra.mrb[0].mxu0 %v3311
    %v3399 = vpop.f32.mrb[0].mxu0
    %v3400 = vadd.f32 %v3296, %v3399
    %v3401 = vpop.f32.mrb[0].mxu0
    %3402 = vdwg.mxu0
    %v3403 = vadd.f32 %v3055, %v3380
    %v3404 = vadd.f32 %v3056, %v3385
    %v3405 = vadd.f32 %v3057, %v3390
    %v3406 = vadd.f32 %v3058, %v3395
    %v3407 = vadd.f32 %v3059, %v3400
    %v3408 = vsel %vm178, %v3403, 0.0
    %3409 = vadd.xlane.f32.xlu0 %v3408
    %v3410 = vpop.xlane.xlu0 %3409
    %v3411 = vsel %vm178, %v3404, 0.0
    %3412 = vadd.xlane.f32.xlu0 %v3411
    %v3413 = vpop.xlane.xlu0 %3412
    %v3414 = vsel %vm178, %v3405, 0.0
    %3415 = vadd.xlane.f32.xlu0 %v3414
    %v3416 = vpop.xlane.xlu0 %3415
    %v3417 = vsel %vm178, %v3406, 0.0
    %3418 = vadd.xlane.f32.xlu0 %v3417
    %v3419 = vpop.xlane.xlu0 %3418
    %v3420 = vsel %vm178, %v3407, 0.0
    %3421 = vadd.xlane.f32.xlu0 %v3420
    %v3422 = vpop.xlane.xlu0 %3421
    %v3423 = vmul.f32 %v3410, %v194
    %v3424 = vmul.f32 %v3413, %v194
    %v3425 = vmul.f32 %v3416, %v194
    %v3426 = vmul.f32 %v3419, %v194
    %v3427 = vmul.f32 %v3422, %v194
    %v3428 = vsub.f32 %v3403, %v3423
    %v3429 = vsub.f32 %v3404, %v3424
    %v3430 = vsub.f32 %v3405, %v3425
    %v3431 = vsub.f32 %v3406, %v3426
    %v3432 = vsub.f32 %v3407, %v3427
    %v3433 = vmul.f32 %v3428, %v3428
    %v3434 = vmul.f32 %v3429, %v3429
    %v3435 = vmul.f32 %v3430, %v3430
    %v3436 = vmul.f32 %v3431, %v3431
    %v3437 = vmul.f32 %v3432, %v3432
    %v3438 = vsel %vm178, %v3433, 0.0
    %3439 = vadd.xlane.f32.xlu0 %v3438
    %v3440 = vpop.xlane.xlu0 %3439
    %v3441 = vsel %vm178, %v3434, 0.0
    %3442 = vadd.xlane.f32.xlu0 %v3441
    %v3443 = vpop.xlane.xlu0 %3442
    %v3444 = vsel %vm178, %v3435, 0.0
    %3445 = vadd.xlane.f32.xlu0 %v3444
    %v3446 = vpop.xlane.xlu0 %3445
    %v3447 = vsel %vm178, %v3436, 0.0
    %3448 = vadd.xlane.f32.xlu0 %v3447
    %v3449 = vpop.xlane.xlu0 %3448
    %v3450 = vsel %vm178, %v3437, 0.0
    %3451 = vadd.xlane.f32.xlu0 %v3450
    %v3452 = vpop.xlane.xlu0 %3451
    %v3453 = vmul.f32 %v3440, %v194
    %v3454 = vmul.f32 %v3443, %v194
    %v3455 = vmul.f32 %v3446, %v194
    %v3456 = vmul.f32 %v3449, %v194
    %v3457 = vmul.f32 %v3452, %v194
    %v3458 = vadd.f32 %v3453, 1e-06
    %v3459 = vadd.f32 %v3454, 1e-06
    %v3460 = vadd.f32 %v3455, 1e-06
    %v3461 = vadd.f32 %v3456, 1e-06
    %v3462 = vadd.f32 %v3457, 1e-06
    %v3463 = vrsqrt.pop %v3458
    %v3464 = vrsqrt.pop %v3459
    %v3465 = vrsqrt.pop %v3460
    %v3466 = vrsqrt.pop %v3461
    %v3467 = vrsqrt.pop %v3462
    %v3468 = vmul.f32 %v3428, %v3463
    %v3469 = vmul.f32 %v3429, %v3464
    %v3470 = vmul.f32 %v3430, %v3465
    %v3471 = vmul.f32 %v3431, %v3466
    %v3472 = vmul.f32 %v3432, %v3467
    %v3473 = vld [vmem:[%s6 + $0x4] sm:$0x1]
    %v3474 = vlaneseq
    %v3475 = vshrl.u32 %v3474, 7
    %v3476 = vsub.s32 0, %v3475
    %v3477 = vrot.slane %v3473, %v3476
    %v3478 = vmul.f32 %v3468, %v3477
    %v3479 = vmul.f32 %v3469, %v3477
    %v3480 = vmul.f32 %v3470, %v3477
    %v3481 = vmul.f32 %v3471, %v3477
    %v3482 = vmul.f32 %v3472, %v3477
    %v3483 = vld [vmem:[%s6 + $0x5] sm:$0x1]
    %v3484 = vlaneseq
    %v3485 = vshrl.u32 %v3484, 7
    %v3486 = vsub.s32 0, %v3485
    %v3487 = vrot.slane %v3483, %v3486
    %v3488 = vadd.f32 %v3478, %v3487
    %v3489 = vadd.f32 %v3479, %v3487
    %v3490 = vadd.f32 %v3480, %v3487
    %v3491 = vadd.f32 %v3481, %v3487
    %v3492 = vadd.f32 %v3482, %v3487
    %v3493 = vld [vmem:[%s4 + $0x10] sm:$0xff]
    %v3494 = vld [vmem:[%s4 + $0x30] sm:$0xff]
    %v3495 = vld [vmem:[%s4 + $0x50] sm:$0xff]
    %v3496 = vld [vmem:[%s4 + $0x70] sm:$0xff]
    %v3498 = vsel %vm178, %v3488, 0
    %v3501 = vsel %vm178, %v3489, 0
    %v3504 = vsel %vm178, %v3490, 0
    %v3507 = vsel %vm178, %v3491, 0
    %v3510 = vsel %vm178, %v3492, 0
    %3512 = vmatprep.subr.mxu0 0.0
    %3513 = vmatpush1.msra.mxu0 %v3493
    %3514 = vmatprep.subr.mxu0 0.0
    %3515 = vmatpush1.msra.mxu0 %v3494
    %3516 = vmatprep.subr.mxu0 0.0
    %3517 = vmatpush1.msra.mxu0 %v3495
    %3518 = vmatprep.subr.mxu0 0.0
    %3519 = vmatpush1.msra.mxu0 %v3496
    %3520 = vmatprep.subr.mxu0 0.0
    %3521 = vmatpush1.msra.mxu0 0.0
    %3522 = vmatprep.subr.mxu0 0.0
    %3523 = vmatpush1.msra.mxu0 0.0
    %3524 = vmatprep.subr.mxu0 0.0
    %3525 = vmatpush1.msra.mxu0 0.0
    %3526 = vmatprep.subr.mxu0 0.0
    %3527 = vmatpush1.msra.mxu0 0.0
    %3528 = vmatprep.subr.mxu0 0.0
    %3529 = vmatpush1.msra.mxu0 0.0
    %3530 = vmatprep.subr.mxu0 0.0
    %3531 = vmatpush1.msra.mxu0 0.0
    %3532 = vmatprep.subr.mxu0 0.0
    %3533 = vmatpush1.msra.mxu0 0.0
    %3534 = vmatprep.subr.mxu0 0.0
    %3535 = vmatpush1.msra.mxu0 0.0
    %3536 = vmatprep.subr.mxu0 0.0
    %3537 = vmatpush1.msra.mxu0 0.0
    %3538 = vmatprep.subr.mxu0 0.0
    %3539 = vmatpush1.msra.mxu0 0.0
    %3540 = vmatprep.subr.mxu0 0.0
    %3541 = vmatpush1.msra.mxu0 0.0
    %3542 = vmatprep.subr.mxu0 0.0
    %3543 = vmatpush1.msra.mxu0 0.0
    %3544 = vmatprep.subr.mxu0 0.0
    %3545 = vmatpush1.msra.mxu0 0.0
    %3546 = vmatprep.subr.mxu0 0.0
    %3547 = vmatpush1.msra.mxu0 0.0
    %3548 = vmatprep.subr.mxu0 0.0
    %3549 = vmatpush1.msra.mxu0 0.0
    %3550 = vmatprep.subr.mxu0 0.0
    %3551 = vmatpush1.msra.mxu0 0.0
    %3552 = vmatprep.subr.mxu0 0.0
    %3553 = vmatpush1.msra.mxu0 0.0
    %3554 = vmatprep.subr.mxu0 0.0
    %3555 = vmatpush1.msra.mxu0 0.0
    %3556 = vmatprep.subr.mxu0 0.0
    %3557 = vmatpush1.msra.mxu0 0.0
    %3558 = vmatprep.subr.mxu0 0.0
    %3559 = vmatpush1.msra.mxu0 0.0
    %3560 = vmatprep.subr.mxu0 0.0
    %3561 = vmatpush1.msra.mxu0 0.0
    %3562 = vmatprep.subr.mxu0 0.0
    %3563 = vmatpush1.msra.mxu0 0.0
    %3564 = vmatprep.subr.mxu0 0.0
    %3565 = vmatpush1.msra.mxu0 0.0
    %3566 = vmatprep.subr.mxu0 0.0
    %3567 = vmatpush1.msra.mxu0 0.0
    %3568 = vmatprep.subr.mxu0 0.0
    %3569 = vmatpush1.msra.mxu0 0.0
    %3570 = vmatprep.subr.mxu0 0.0
    %3571 = vmatpush1.msra.mxu0 0.0
    %3572 = vmatprep.subr.mxu0 0.0
    %3573 = vmatpush1.msra.mxu0 0.0
    %3574 = vmatprep.subr.mxu0 0.0
    %3575 = vmatpush1.msra.mxu0 0.0
    %3576 = vmatprep.mubr.f32.mxu0 0.0
    %3577 = vmatmul.mubr.f32.gmra.mrb[0].mxu0 %v3498
    %v3578 = vpop.f32.mrb[0].mxu0
    %v3579 = vadd.f32 0.0, %v3578
    %v3580 = vpop.f32.mrb[0].mxu0
    %3581 = vmatprep.mubr.f32.mxu0 0.0
    %3582 = vmatmul.mubr.f32.gmra.mrb[0].mxu0 %v3501
    %v3583 = vpop.f32.mrb[0].mxu0
    %v3584 = vadd.f32 0.0, %v3583
    %v3585 = vpop.f32.mrb[0].mxu0
    %3586 = vmatprep.mubr.f32.mxu0 0.0
    %3587 = vmatmul.mubr.f32.gmra.mrb[0].mxu0 %v3504
    %v3588 = vpop.f32.mrb[0].mxu0
    %v3589 = vadd.f32 0.0, %v3588
    %v3590 = vpop.f32.mrb[0].mxu0
    %3591 = vmatprep.mubr.f32.mxu0 0.0
    %3592 = vmatmul.mubr.f32.gmra.mrb[0].mxu0 %v3507
    %v3593 = vpop.f32.mrb[0].mxu0
    %v3594 = vadd.f32 0.0, %v3593
    %v3595 = vpop.f32.mrb[0].mxu0
    %3596 = vmatprep.mubr.f32.mxu0 0.0
    %3597 = vmatmul.mubr.f32.gmra.mrb[0].mxu0 %v3510
    %v3598 = vpop.f32.mrb[0].mxu0
    %v3599 = vadd.f32 0.0, %v3598
    %v3600 = vpop.f32.mrb[0].mxu0
    %3601 = vdwg.mxu0
    %vm3602 = vcmp.gt.f32.partialorder %v67, 0.0
    %vm3603 = vcmp.gt.f32.partialorder %v68, 0.0
    %vm3604 = vcmp.gt.f32.partialorder %v69, 0.0
    %vm3605 = vcmp.gt.f32.partialorder %v70, 0.0
    %vm3606 = vcmp.gt.f32.partialorder %v71, 0.0
    %3612 = vrot.lane.b32.xlu0 %v3579, 32
    %v3613 = vpop.permute.xlu0 %3612
    %3614 = vrot.lane.b32.xlu0 %v3584, 32
    %v3615 = vpop.permute.xlu0 %3614
    %3616 = vrot.lane.b32.xlu0 %v3589, 32
    %v3617 = vpop.permute.xlu0 %3616
    %3618 = vrot.lane.b32.xlu0 %v3594, 32
    %v3619 = vpop.permute.xlu0 %3618
    %3620 = vrot.lane.b32.xlu0 %v3599, 32
    %v3621 = vpop.permute.xlu0 %3620
    %3627 = vrot.lane.b32.xlu0 %v3579, 96
    %v3628 = vpop.permute.xlu0 %3627
    %3629 = vrot.lane.b32.xlu0 %v3584, 96
    %v3630 = vpop.permute.xlu0 %3629
    %3631 = vrot.lane.b32.xlu0 %v3589, 96
    %v3632 = vpop.permute.xlu0 %3631
    %3633 = vrot.lane.b32.xlu0 %v3594, 96
    %v3634 = vpop.permute.xlu0 %3633
    %3635 = vrot.lane.b32.xlu0 %v3599, 96
    %v3636 = vpop.permute.xlu0 %3635
    %v3642 = vsel %vm3602, %v3613, %v3628
    %v3643 = vsel %vm3603, %v3615, %v3630
    %v3644 = vsel %vm3604, %v3617, %v3632
    %v3645 = vsel %vm3605, %v3619, %v3634
    %v3646 = vsel %vm3606, %v3621, %v3636
    %3647 = vrot.lane.b32.xlu0 %v3579, 64
    %v3648 = vpop.permute.xlu0 %3647
    %3649 = vrot.lane.b32.xlu0 %v3584, 64
    %v3650 = vpop.permute.xlu0 %3649
    %3651 = vrot.lane.b32.xlu0 %v3589, 64
    %v3652 = vpop.permute.xlu0 %3651
    %3653 = vrot.lane.b32.xlu0 %v3594, 64
    %v3654 = vpop.permute.xlu0 %3653
    %3655 = vrot.lane.b32.xlu0 %v3599, 64
    %v3656 = vpop.permute.xlu0 %3655
    %v3662 = vsel %vm3602, %v3579, %v3648
    %v3663 = vsel %vm3603, %v3584, %v3650
    %v3664 = vsel %vm3604, %v3589, %v3652
    %v3665 = vsel %vm3605, %v3594, %v3654
    %v3666 = vsel %vm3606, %v3599, %v3656
    %v3667 = vld [vmem:[%s3] sm:$0xff]
    %v3668 = vld [vmem:[%s3 + $0x8] sm:$0xff]
    %v3669 = vld [vmem:[%s3 + $0x10] sm:$0xff]
    %v3670 = vld [vmem:[%s3 + $0x18] sm:$0xff]
    %v3671 = vld [vmem:[%s3 + $0x20] sm:$0xff]
    %3677 = vrot.lane.b32.xlu0 %v3662, 96
    %v3678 = vpop.permute.xlu0 %3677
    %3679 = vrot.lane.b32.xlu0 %v3663, 96
    %v3680 = vpop.permute.xlu0 %3679
    %3681 = vrot.lane.b32.xlu0 %v3664, 96
    %v3682 = vpop.permute.xlu0 %3681
    %3683 = vrot.lane.b32.xlu0 %v3665, 96
    %v3684 = vpop.permute.xlu0 %3683
    %3685 = vrot.lane.b32.xlu0 %v3666, 96
    %v3686 = vpop.permute.xlu0 %3685
    %vm3692 = vcmask 326656
    %v3694 = vsel %vm3692, %v3667, 0
    %v3697 = vsel %vm3692, %v3668, 0
    %v3700 = vsel %vm3692, %v3669, 0
    %v3703 = vsel %vm3692, %v3670, 0
    %v3706 = vsel %vm3692, %v3671, 0
    %3708 = vmatprep.subr.mxu0 0.0
    %3709 = vmatpush1.msra.mxu0 %v3678
    %3710 = vmatprep.subr.mxu0 0.0
    %3711 = vmatpush1.msra.mxu0 %v3680
    %3712 = vmatprep.subr.mxu0 0.0
    %3713 = vmatpush1.msra.mxu0 %v3682
    %3714 = vmatprep.subr.mxu0 0.0
    %3715 = vmatpush1.msra.mxu0 %v3684
    %3716 = vmatprep.subr.mxu0 0.0
    %3717 = vmatpush1.msra.mxu0 %v3686
    %3718 = vmatprep.subr.mxu0 0.0
    %3719 = vmatpush1.msra.mxu0 0.0
    %3720 = vmatprep.subr.mxu0 0.0
    %3721 = vmatpush1.msra.mxu0 0.0
    %3722 = vmatprep.subr.mxu0 0.0
    %3723 = vmatpush1.msra.mxu0 0.0
    %3724 = vmatprep.subr.mxu0 0.0
    %3725 = vmatpush1.msra.mxu0 0.0
    %3726 = vmatprep.subr.mxu0 0.0
    %3727 = vmatpush1.msra.mxu0 0.0
    %3728 = vmatprep.subr.mxu0 0.0
    %3729 = vmatpush1.msra.mxu0 0.0
    %3730 = vmatprep.subr.mxu0 0.0
    %3731 = vmatpush1.msra.mxu0 0.0
    %3732 = vmatprep.subr.mxu0 0.0
    %3733 = vmatpush1.msra.mxu0 0.0
    %3734 = vmatprep.subr.mxu0 0.0
    %3735 = vmatpush1.msra.mxu0 0.0
    %3736 = vmatprep.subr.mxu0 0.0
    %3737 = vmatpush1.msra.mxu0 0.0
    %3738 = vmatprep.subr.mxu0 0.0
    %3739 = vmatpush1.msra.mxu0 0.0
    %3740 = vmatprep.subr.mxu0 0.0
    %3741 = vmatpush1.msra.mxu0 0.0
    %3742 = vmatprep.subr.mxu0 0.0
    %3743 = vmatpush1.msra.mxu0 0.0
    %3744 = vmatprep.subr.mxu0 0.0
    %3745 = vmatpush1.msra.mxu0 0.0
    %3746 = vmatprep.subr.mxu0 0.0
    %3747 = vmatpush1.msra.mxu0 0.0
    %3748 = vmatprep.subr.mxu0 0.0
    %3749 = vmatpush1.msra.mxu0 0.0
    %3750 = vmatprep.subr.mxu0 0.0
    %3751 = vmatpush1.msra.mxu0 0.0
    %3752 = vmatprep.subr.mxu0 0.0
    %3753 = vmatpush1.msra.mxu0 0.0
    %3754 = vmatprep.subr.mxu0 0.0
    %3755 = vmatpush1.msra.mxu0 0.0
    %3756 = vmatprep.subr.mxu0 0.0
    %3757 = vmatpush1.msra.mxu0 0.0
    %3758 = vmatprep.subr.mxu0 0.0
    %3759 = vmatpush1.msra.mxu0 0.0
    %3760 = vmatprep.subr.mxu0 0.0
    %3761 = vmatpush1.msra.mxu0 0.0
    %3762 = vmatprep.subr.mxu0 0.0
    %3763 = vmatpush1.msra.mxu0 0.0
    %3764 = vmatprep.subr.mxu0 0.0
    %3765 = vmatpush1.msra.mxu0 0.0
    %3766 = vmatprep.subr.mxu0 0.0
    %3767 = vmatpush1.msra.mxu0 0.0
    %3768 = vmatprep.subr.mxu0 0.0
    %3769 = vmatpush1.msra.mxu0 0.0
    %3770 = vmatprep.subr.mxu0 0.0
    %3771 = vmatpush1.msra.mxu0 0.0
    %3772 = vmatprep.mubr.f32.mxu0 0.0
    %3773 = vmatmul.mubr.f32.gmra.mrb[0].mxu0 %v3694
    %v3774 = vpop.f32.mrb[0].mxu0
    %v3775 = vadd.f32 0.0, %v3774
    %v3776 = vpop.f32.mrb[0].mxu0
    %3777 = vmatprep.mubr.f32.mxu0 0.0
    %3778 = vmatmul.mubr.f32.gmra.mrb[0].mxu0 %v3697
    %v3779 = vpop.f32.mrb[0].mxu0
    %v3780 = vadd.f32 0.0, %v3779
    %v3781 = vpop.f32.mrb[0].mxu0
    %3782 = vmatprep.mubr.f32.mxu0 0.0
    %3783 = vmatmul.mubr.f32.gmra.mrb[0].mxu0 %v3700
    %v3784 = vpop.f32.mrb[0].mxu0
    %v3785 = vadd.f32 0.0, %v3784
    %v3786 = vpop.f32.mrb[0].mxu0
    %3787 = vmatprep.mubr.f32.mxu0 0.0
    %3788 = vmatmul.mubr.f32.gmra.mrb[0].mxu0 %v3703
    %v3789 = vpop.f32.mrb[0].mxu0
    %v3790 = vadd.f32 0.0, %v3789
    %v3791 = vpop.f32.mrb[0].mxu0
    %3792 = vmatprep.mubr.f32.mxu0 0.0
    %3793 = vmatmul.mubr.f32.gmra.mrb[0].mxu0 %v3706
    %v3794 = vpop.f32.mrb[0].mxu0
    %v3795 = vadd.f32 0.0, %v3794
    %v3796 = vpop.f32.mrb[0].mxu0
    %3797 = vdwg.mxu0
    %3803 = vrot.lane.b32.xlu0 %v3775, 32
    %v3804 = vpop.permute.xlu0 %3803
    %3805 = vrot.lane.b32.xlu0 %v3780, 32
    %v3806 = vpop.permute.xlu0 %3805
    %3807 = vrot.lane.b32.xlu0 %v3785, 32
    %v3808 = vpop.permute.xlu0 %3807
    %3809 = vrot.lane.b32.xlu0 %v3790, 32
    %v3810 = vpop.permute.xlu0 %3809
    %3811 = vrot.lane.b32.xlu0 %v3795, 32
    %v3812 = vpop.permute.xlu0 %3811
    %v3818 = vadd.f32 %v3642, %v3804
    %v3819 = vadd.f32 %v3643, %v3806
    %v3820 = vadd.f32 %v3644, %v3808
    %v3821 = vadd.f32 %v3645, %v3810
    %v3822 = vadd.f32 %v3646, %v3812
    %3828 = vrot.lane.b32.xlu0 %v3818, 96
    %v3829 = vpop.permute.xlu0 %3828
    %3830 = vrot.lane.b32.xlu0 %v3819, 96
    %v3831 = vpop.permute.xlu0 %3830
    %3832 = vrot.lane.b32.xlu0 %v3820, 96
    %v3833 = vpop.permute.xlu0 %3832
    %3834 = vrot.lane.b32.xlu0 %v3821, 96
    %v3835 = vpop.permute.xlu0 %3834
    %3836 = vrot.lane.b32.xlu0 %v3822, 96
    %v3837 = vpop.permute.xlu0 %3836
    %v3843 = vsel %vm178, %v3829, 0.0
    %3844 = vadd.xlane.f32.xlu0 %v3843
    %v3845 = vpop.xlane.xlu0 %3844
    %v3846 = vsel %vm178, %v3831, 0.0
    %3847 = vadd.xlane.f32.xlu0 %v3846
    %v3848 = vpop.xlane.xlu0 %3847
    %v3849 = vsel %vm178, %v3833, 0.0
    %3850 = vadd.xlane.f32.xlu0 %v3849
    %v3851 = vpop.xlane.xlu0 %3850
    %v3852 = vsel %vm178, %v3835, 0.0
    %3853 = vadd.xlane.f32.xlu0 %v3852
    %v3854 = vpop.xlane.xlu0 %3853
    %v3855 = vsel %vm178, %v3837, 0.0
    %3856 = vadd.xlane.f32.xlu0 %v3855
    %v3857 = vpop.xlane.xlu0 %3856
    %v3858 = vmul.f32 %v3845, %v194
    %v3859 = vmul.f32 %v3848, %v194
    %v3860 = vmul.f32 %v3851, %v194
    %v3861 = vmul.f32 %v3854, %v194
    %v3862 = vmul.f32 %v3857, %v194
    %v3863 = vsub.f32 %v3818, %v3858
    %v3864 = vsub.f32 %v3819, %v3859
    %v3865 = vsub.f32 %v3820, %v3860
    %v3866 = vsub.f32 %v3821, %v3861
    %v3867 = vsub.f32 %v3822, %v3862
    %v3868 = vmul.f32 %v3863, %v3863
    %v3869 = vmul.f32 %v3864, %v3864
    %v3870 = vmul.f32 %v3865, %v3865
    %v3871 = vmul.f32 %v3866, %v3866
    %v3872 = vmul.f32 %v3867, %v3867
    %3878 = vrot.lane.b32.xlu0 %v3868, 96
    %v3879 = vpop.permute.xlu0 %3878
    %3880 = vrot.lane.b32.xlu0 %v3869, 96
    %v3881 = vpop.permute.xlu0 %3880
    %3882 = vrot.lane.b32.xlu0 %v3870, 96
    %v3883 = vpop.permute.xlu0 %3882
    %3884 = vrot.lane.b32.xlu0 %v3871, 96
    %v3885 = vpop.permute.xlu0 %3884
    %3886 = vrot.lane.b32.xlu0 %v3872, 96
    %v3887 = vpop.permute.xlu0 %3886
    %v3893 = vsel %vm178, %v3879, 0.0
    %3894 = vadd.xlane.f32.xlu0 %v3893
    %v3895 = vpop.xlane.xlu0 %3894
    %v3896 = vsel %vm178, %v3881, 0.0
    %3897 = vadd.xlane.f32.xlu0 %v3896
    %v3898 = vpop.xlane.xlu0 %3897
    %v3899 = vsel %vm178, %v3883, 0.0
    %3900 = vadd.xlane.f32.xlu0 %v3899
    %v3901 = vpop.xlane.xlu0 %3900
    %v3902 = vsel %vm178, %v3885, 0.0
    %3903 = vadd.xlane.f32.xlu0 %v3902
    %v3904 = vpop.xlane.xlu0 %3903
    %v3905 = vsel %vm178, %v3887, 0.0
    %3906 = vadd.xlane.f32.xlu0 %v3905
    %v3907 = vpop.xlane.xlu0 %3906
    %v3908 = vmul.f32 %v3895, %v194
    %v3909 = vmul.f32 %v3898, %v194
    %v3910 = vmul.f32 %v3901, %v194
    %v3911 = vmul.f32 %v3904, %v194
    %v3912 = vmul.f32 %v3907, %v194
    %v3913 = vadd.f32 %v3908, 1e-06
    %v3914 = vadd.f32 %v3909, 1e-06
    %v3915 = vadd.f32 %v3910, 1e-06
    %v3916 = vadd.f32 %v3911, 1e-06
    %v3917 = vadd.f32 %v3912, 1e-06
    %v3918 = vrsqrt.pop %v3913
    %v3919 = vrsqrt.pop %v3914
    %v3920 = vrsqrt.pop %v3915
    %v3921 = vrsqrt.pop %v3916
    %v3922 = vrsqrt.pop %v3917
    %v3923 = vmul.f32 %v3863, %v3918
    %v3924 = vmul.f32 %v3864, %v3919
    %v3925 = vmul.f32 %v3865, %v3920
    %v3926 = vmul.f32 %v3866, %v3921
    %v3927 = vmul.f32 %v3867, %v3922
    %v3928 = vld [vmem:[%s6 + $0x6] sm:$0x1]
    %v3929 = vlaneseq
    %v3930 = vshrl.u32 %v3929, 7
    %v3931 = vsub.s32 0, %v3930
    %v3932 = vrot.slane %v3928, %v3931
    %3934 = vrot.lane.b32.xlu0 %v3932, 32
    %v3935 = vpop.permute.xlu0 %3934
    %v3937 = vmul.f32 %v3923, %v3935
    %v3938 = vmul.f32 %v3924, %v3935
    %v3939 = vmul.f32 %v3925, %v3935
    %v3940 = vmul.f32 %v3926, %v3935
    %v3941 = vmul.f32 %v3927, %v3935
    %v3942 = vld [vmem:[%s6 + $0x7] sm:$0x1]
    %v3943 = vlaneseq
    %v3944 = vshrl.u32 %v3943, 7
    %v3945 = vsub.s32 0, %v3944
    %v3946 = vrot.slane %v3942, %v3945
    %3948 = vrot.lane.b32.xlu0 %v3946, 32
    %v3949 = vpop.permute.xlu0 %3948
    %v3951 = vadd.f32 %v3937, %v3949
    %v3952 = vadd.f32 %v3938, %v3949
    %v3953 = vadd.f32 %v3939, %v3949
    %v3954 = vadd.f32 %v3940, %v3949
    %v3955 = vadd.f32 %v3941, %v3949
    %v3956 = vld [vmem:[%s6 + $0xe] sm:$0x1]
    %v3957 = vlaneseq
    %v3958 = vshrl.u32 %v3957, 7
    %v3959 = vsub.s32 0, %v3958
    %v3960 = vrot.slane %v3956, %v3959
    %3966 = vrot.lane.b32.xlu0 %v3951, 96
    %v3967 = vpop.permute.xlu0 %3966
    %3968 = vrot.lane.b32.xlu0 %v3952, 96
    %v3969 = vpop.permute.xlu0 %3968
    %3970 = vrot.lane.b32.xlu0 %v3953, 96
    %v3971 = vpop.permute.xlu0 %3970
    %3972 = vrot.lane.b32.xlu0 %v3954, 96
    %v3973 = vpop.permute.xlu0 %3972
    %3974 = vrot.lane.b32.xlu0 %v3955, 96
    %v3975 = vpop.permute.xlu0 %3974
    %3980 = vrot.lane.b32.xlu0 %v3145, 64
    %v3981 = vpop.permute.xlu0 %3980
    %3982 = vrot.lane.b32.xlu0 %v3146, 64
    %v3983 = vpop.permute.xlu0 %3982
    %3984 = vrot.lane.b32.xlu0 %v3147, 64
    %v3985 = vpop.permute.xlu0 %3984
    %3986 = vrot.lane.b32.xlu0 %v3148, 64
    %v3987 = vpop.permute.xlu0 %3986
    %v3992 = vsel %vm178, %v3967, 0
    %v3994 = vsel %vm178, %v3969, 0
    %v3996 = vsel %vm178, %v3971, 0
    %v3998 = vsel %vm178, %v3973, 0
    %v4000 = vsel %vm178, %v3975, 0
    %4002 = vmatprep.subr.mxu0 0.0
    %4003 = vmatpush1.msra.mxu0 %v3981
    %4004 = vmatprep.subr.mxu0 0.0
    %4005 = vmatpush1.msra.mxu0 %v3983
    %4006 = vmatprep.subr.mxu0 0.0
    %4007 = vmatpush1.msra.mxu0 %v3985
    %4008 = vmatprep.subr.mxu0 0.0
    %4009 = vmatpush1.msra.mxu0 %v3987
    %4010 = vmatprep.subr.mxu0 0.0
    %4011 = vmatpush1.msra.mxu0 0.0
    %4012 = vmatprep.subr.mxu0 0.0
    %4013 = vmatpush1.msra.mxu0 0.0
    %4014 = vmatprep.subr.mxu0 0.0
    %4015 = vmatpush1.msra.mxu0 0.0
    %4016 = vmatprep.subr.mxu0 0.0
    %4017 = vmatpush1.msra.mxu0 0.0
    %4018 = vmatprep.subr.mxu0 0.0
    %4019 = vmatpush1.msra.mxu0 0.0
    %4020 = vmatprep.subr.mxu0 0.0
    %4021 = vmatpush1.msra.mxu0 0.0
    %4022 = vmatprep.subr.mxu0 0.0
    %4023 = vmatpush1.msra.mxu0 0.0
    %4024 = vmatprep.subr.mxu0 0.0
    %4025 = vmatpush1.msra.mxu0 0.0
    %4026 = vmatprep.subr.mxu0 0.0
    %4027 = vmatpush1.msra.mxu0 0.0
    %4028 = vmatprep.subr.mxu0 0.0
    %4029 = vmatpush1.msra.mxu0 0.0
    %4030 = vmatprep.subr.mxu0 0.0
    %4031 = vmatpush1.msra.mxu0 0.0
    %4032 = vmatprep.subr.mxu0 0.0
    %4033 = vmatpush1.msra.mxu0 0.0
    %4034 = vmatprep.subr.mxu0 0.0
    %4035 = vmatpush1.msra.mxu0 0.0
    %4036 = vmatprep.subr.mxu0 0.0
    %4037 = vmatpush1.msra.mxu0 0.0
    %4038 = vmatprep.subr.mxu0 0.0
    %4039 = vmatpush1.msra.mxu0 0.0
    %4040 = vmatprep.subr.mxu0 0.0
    %4041 = vmatpush1.msra.mxu0 0.0
    %4042 = vmatprep.subr.mxu0 0.0
    %4043 = vmatpush1.msra.mxu0 0.0
    %4044 = vmatprep.subr.mxu0 0.0
    %4045 = vmatpush1.msra.mxu0 0.0
    %4046 = vmatprep.subr.mxu0 0.0
    %4047 = vmatpush1.msra.mxu0 0.0
    %4048 = vmatprep.subr.mxu0 0.0
    %4049 = vmatpush1.msra.mxu0 0.0
    %4050 = vmatprep.subr.mxu0 0.0
    %4051 = vmatpush1.msra.mxu0 0.0
    %4052 = vmatprep.subr.mxu0 0.0
    %4053 = vmatpush1.msra.mxu0 0.0
    %4054 = vmatprep.subr.mxu0 0.0
    %4055 = vmatpush1.msra.mxu0 0.0
    %4056 = vmatprep.subr.mxu0 0.0
    %4057 = vmatpush1.msra.mxu0 0.0
    %4058 = vmatprep.subr.mxu0 0.0
    %4059 = vmatpush1.msra.mxu0 0.0
    %4060 = vmatprep.subr.mxu0 0.0
    %4061 = vmatpush1.msra.mxu0 0.0
    %4062 = vmatprep.subr.mxu0 0.0
    %4063 = vmatpush1.msra.mxu0 0.0
    %4064 = vmatprep.subr.mxu0 0.0
    %4065 = vmatpush1.msra.mxu0 0.0
    %4066 = vmatprep.mubr.f32.mxu0 0.0
    %4067 = vmatmul.mubr.f32.gmra.mrb[0].mxu0 %v3992
    %v4068 = vpop.f32.mrb[0].mxu0
    %v4069 = vadd.f32 %v3960, %v4068
    %v4070 = vpop.f32.mrb[0].mxu0
    %4071 = vmatprep.mubr.f32.mxu0 0.0
    %4072 = vmatmul.mubr.f32.gmra.mrb[0].mxu0 %v3994
    %v4073 = vpop.f32.mrb[0].mxu0
    %v4074 = vadd.f32 %v3960, %v4073
    %v4075 = vpop.f32.mrb[0].mxu0
    %4076 = vmatprep.mubr.f32.mxu0 0.0
    %4077 = vmatmul.mubr.f32.gmra.mrb[0].mxu0 %v3996
    %v4078 = vpop.f32.mrb[0].mxu0
    %v4079 = vadd.f32 %v3960, %v4078
    %v4080 = vpop.f32.mrb[0].mxu0
    %4081 = vmatprep.mubr.f32.mxu0 0.0
    %4082 = vmatmul.mubr.f32.gmra.mrb[0].mxu0 %v3998
    %v4083 = vpop.f32.mrb[0].mxu0
    %v4084 = vadd.f32 %v3960, %v4083
    %v4085 = vpop.f32.mrb[0].mxu0
    %4086 = vmatprep.mubr.f32.mxu0 0.0
    %4087 = vmatmul.mubr.f32.gmra.mrb[0].mxu0 %v4000
    %v4088 = vpop.f32.mrb[0].mxu0
    %v4089 = vadd.f32 %v3960, %v4088
    %v4090 = vpop.f32.mrb[0].mxu0
    %4091 = vdwg.mxu0
    %v4092 = vmul.f32 %v4069, 0.5
    %v4093 = vmul.f32 %v4074, 0.5
    %v4094 = vmul.f32 %v4079, 0.5
    %v4095 = vmul.f32 %v4084, 0.5
    %v4096 = vmul.f32 %v4089, 0.5
    %v4097 = vmul.f32 %v4069, 0.70710677
    %v4098 = vmul.f32 %v4074, 0.70710677
    %v4099 = vmul.f32 %v4079, 0.70710677
    %v4100 = vmul.f32 %v4084, 0.70710677
    %v4101 = vmul.f32 %v4089, 0.70710677
    %v4102 = verf.f32.pop %v4097
    %v4103 = verf.f32.pop %v4098
    %v4104 = verf.f32.pop %v4099
    %v4105 = verf.f32.pop %v4100
    %v4106 = verf.f32.pop %v4101
    %v4107 = vadd.f32 %v4102, 1.0
    %v4108 = vadd.f32 %v4103, 1.0
    %v4109 = vadd.f32 %v4104, 1.0
    %v4110 = vadd.f32 %v4105, 1.0
    %v4111 = vadd.f32 %v4106, 1.0
    %v4112 = vmul.f32 %v4092, %v4107
    %v4113 = vmul.f32 %v4093, %v4108
    %v4114 = vmul.f32 %v4094, %v4109
    %v4115 = vmul.f32 %v4095, %v4110
    %v4116 = vmul.f32 %v4096, %v4111
    %v4117 = vld [vmem:[%s6 + $0xf] sm:$0x1]
    %v4118 = vlaneseq
    %v4119 = vshrl.u32 %v4118, 7
    %v4120 = vsub.s32 0, %v4119
    %v4121 = vrot.slane %v4117, %v4120
    %4130 = vrot.lane.b32.xlu0 %v3149, 96
    %v4131 = vpop.permute.xlu0 %4130
    %4132 = vrot.lane.b32.xlu0 %v3150, 96
    %v4133 = vpop.permute.xlu0 %4132
    %4134 = vrot.lane.b32.xlu0 %v3151, 96
    %v4135 = vpop.permute.xlu0 %4134
    %4136 = vrot.lane.b32.xlu0 %v3152, 96
    %v4137 = vpop.permute.xlu0 %4136
    %4138 = vrot.lane.b32.xlu0 %v3153, 96
    %v4139 = vpop.permute.xlu0 %4138
    %4140 = vrot.lane.b32.xlu0 %v3154, 96
    %v4141 = vpop.permute.xlu0 %4140
    %4142 = vrot.lane.b32.xlu0 %v3155, 96
    %v4143 = vpop.permute.xlu0 %4142
    %4144 = vrot.lane.b32.xlu0 %v3156, 96
    %v4145 = vpop.permute.xlu0 %4144
    %v4155 = vsel %vm3297, %v4112, 0
    %v4158 = vsel %vm3297, %v4113, 0
    %v4161 = vsel %vm3297, %v4114, 0
    %v4164 = vsel %vm3297, %v4115, 0
    %v4167 = vsel %vm3297, %v4116, 0
    %4169 = vmatprep.subr.mxu0 0.0
    %4170 = vmatpush1.msra.mxu0 %v4131
    %4171 = vmatprep.subr.mxu0 0.0
    %4172 = vmatpush1.msra.mxu0 %v4133
    %4173 = vmatprep.subr.mxu0 0.0
    %4174 = vmatpush1.msra.mxu0 %v4135
    %4175 = vmatprep.subr.mxu0 0.0
    %4176 = vmatpush1.msra.mxu0 %v4137
    %4177 = vmatprep.subr.mxu0 0.0
    %4178 = vmatpush1.msra.mxu0 %v4139
    %4179 = vmatprep.subr.mxu0 0.0
    %4180 = vmatpush1.msra.mxu0 %v4141
    %4181 = vmatprep.subr.mxu0 0.0
    %4182 = vmatpush1.msra.mxu0 %v4143
    %4183 = vmatprep.subr.mxu0 0.0
    %4184 = vmatpush1.msra.mxu0 %v4145
    %4185 = vmatprep.subr.mxu0 0.0
    %4186 = vmatpush1.msra.mxu0 0.0
    %4187 = vmatprep.subr.mxu0 0.0
    %4188 = vmatpush1.msra.mxu0 0.0
    %4189 = vmatprep.subr.mxu0 0.0
    %4190 = vmatpush1.msra.mxu0 0.0
    %4191 = vmatprep.subr.mxu0 0.0
    %4192 = vmatpush1.msra.mxu0 0.0
    %4193 = vmatprep.subr.mxu0 0.0
    %4194 = vmatpush1.msra.mxu0 0.0
    %4195 = vmatprep.subr.mxu0 0.0
    %4196 = vmatpush1.msra.mxu0 0.0
    %4197 = vmatprep.subr.mxu0 0.0
    %4198 = vmatpush1.msra.mxu0 0.0
    %4199 = vmatprep.subr.mxu0 0.0
    %4200 = vmatpush1.msra.mxu0 0.0
    %4201 = vmatprep.subr.mxu0 0.0
    %4202 = vmatpush1.msra.mxu0 0.0
    %4203 = vmatprep.subr.mxu0 0.0
    %4204 = vmatpush1.msra.mxu0 0.0
    %4205 = vmatprep.subr.mxu0 0.0
    %4206 = vmatpush1.msra.mxu0 0.0
    %4207 = vmatprep.subr.mxu0 0.0
    %4208 = vmatpush1.msra.mxu0 0.0
    %4209 = vmatprep.subr.mxu0 0.0
    %4210 = vmatpush1.msra.mxu0 0.0
    %4211 = vmatprep.subr.mxu0 0.0
    %4212 = vmatpush1.msra.mxu0 0.0
    %4213 = vmatprep.subr.mxu0 0.0
    %4214 = vmatpush1.msra.mxu0 0.0
    %4215 = vmatprep.subr.mxu0 0.0
    %4216 = vmatpush1.msra.mxu0 0.0
    %4217 = vmatprep.subr.mxu0 0.0
    %4218 = vmatpush1.msra.mxu0 0.0
    %4219 = vmatprep.subr.mxu0 0.0
    %4220 = vmatpush1.msra.mxu0 0.0
    %4221 = vmatprep.subr.mxu0 0.0
    %4222 = vmatpush1.msra.mxu0 0.0
    %4223 = vmatprep.subr.mxu0 0.0
    %4224 = vmatpush1.msra.mxu0 0.0
    %4225 = vmatprep.subr.mxu0 0.0
    %4226 = vmatpush1.msra.mxu0 0.0
    %4227 = vmatprep.subr.mxu0 0.0
    %4228 = vmatpush1.msra.mxu0 0.0
    %4229 = vmatprep.subr.mxu0 0.0
    %4230 = vmatpush1.msra.mxu0 0.0
    %4231 = vmatprep.subr.mxu0 0.0
    %4232 = vmatpush1.msra.mxu0 0.0
    %4233 = vmatprep.mubr.f32.mxu0 0.0
    %4234 = vmatmul.mubr.f32.gmra.mrb[0].mxu0 %v4155
    %v4235 = vpop.f32.mrb[0].mxu0
    %v4236 = vadd.f32 %v4121, %v4235
    %v4237 = vpop.f32.mrb[0].mxu0
    %4238 = vmatprep.mubr.f32.mxu0 0.0
    %4239 = vmatmul.mubr.f32.gmra.mrb[0].mxu0 %v4158
    %v4240 = vpop.f32.mrb[0].mxu0
    %v4241 = vadd.f32 %v4121, %v4240
    %v4242 = vpop.f32.mrb[0].mxu0
    %4243 = vmatprep.mubr.f32.mxu0 0.0
    %4244 = vmatmul.mubr.f32.gmra.mrb[0].mxu0 %v4161
    %v4245 = vpop.f32.mrb[0].mxu0
    %v4246 = vadd.f32 %v4121, %v4245
    %v4247 = vpop.f32.mrb[0].mxu0
    %4248 = vmatprep.mubr.f32.mxu0 0.0
    %4249 = vmatmul.mubr.f32.gmra.mrb[0].mxu0 %v4164
    %v4250 = vpop.f32.mrb[0].mxu0
    %v4251 = vadd.f32 %v4121, %v4250
    %v4252 = vpop.f32.mrb[0].mxu0
    %4253 = vmatprep.mubr.f32.mxu0 0.0
    %4254 = vmatmul.mubr.f32.gmra.mrb[0].mxu0 %v4167
    %v4255 = vpop.f32.mrb[0].mxu0
    %v4256 = vadd.f32 %v4121, %v4255
    %v4257 = vpop.f32.mrb[0].mxu0
    %4258 = vdwg.mxu0
    %v4259 = vadd.f32 %v3403, %v4236
    %v4260 = vadd.f32 %v3404, %v4241
    %v4261 = vadd.f32 %v3405, %v4246
    %v4262 = vadd.f32 %v3406, %v4251
    %v4263 = vadd.f32 %v3407, %v4256
    %v4264 = vsel %vm178, %v4259, 0.0
    %4265 = vadd.xlane.f32.xlu0 %v4264
    %v4266 = vpop.xlane.xlu0 %4265
    %v4267 = vsel %vm178, %v4260, 0.0
    %4268 = vadd.xlane.f32.xlu0 %v4267
    %v4269 = vpop.xlane.xlu0 %4268
    %v4270 = vsel %vm178, %v4261, 0.0
    %4271 = vadd.xlane.f32.xlu0 %v4270
    %v4272 = vpop.xlane.xlu0 %4271
    %v4273 = vsel %vm178, %v4262, 0.0
    %4274 = vadd.xlane.f32.xlu0 %v4273
    %v4275 = vpop.xlane.xlu0 %4274
    %v4276 = vsel %vm178, %v4263, 0.0
    %4277 = vadd.xlane.f32.xlu0 %v4276
    %v4278 = vpop.xlane.xlu0 %4277
    %v4279 = vmul.f32 %v4266, %v194
    %v4280 = vmul.f32 %v4269, %v194
    %v4281 = vmul.f32 %v4272, %v194
    %v4282 = vmul.f32 %v4275, %v194
    %v4283 = vmul.f32 %v4278, %v194
    %v4284 = vsub.f32 %v4259, %v4279
    %v4285 = vsub.f32 %v4260, %v4280
    %v4286 = vsub.f32 %v4261, %v4281
    %v4287 = vsub.f32 %v4262, %v4282
    %v4288 = vsub.f32 %v4263, %v4283
    %v4289 = vmul.f32 %v4284, %v4284
    %v4290 = vmul.f32 %v4285, %v4285
    %v4291 = vmul.f32 %v4286, %v4286
    %v4292 = vmul.f32 %v4287, %v4287
    %v4293 = vmul.f32 %v4288, %v4288
    %v4294 = vsel %vm178, %v4289, 0.0
    %4295 = vadd.xlane.f32.xlu0 %v4294
    %v4296 = vpop.xlane.xlu0 %4295
    %v4297 = vsel %vm178, %v4290, 0.0
    %4298 = vadd.xlane.f32.xlu0 %v4297
    %v4299 = vpop.xlane.xlu0 %4298
    %v4300 = vsel %vm178, %v4291, 0.0
    %4301 = vadd.xlane.f32.xlu0 %v4300
    %v4302 = vpop.xlane.xlu0 %4301
    %v4303 = vsel %vm178, %v4292, 0.0
    %4304 = vadd.xlane.f32.xlu0 %v4303
    %v4305 = vpop.xlane.xlu0 %4304
    %v4306 = vsel %vm178, %v4293, 0.0
    %4307 = vadd.xlane.f32.xlu0 %v4306
    %v4308 = vpop.xlane.xlu0 %4307
    %v4309 = vmul.f32 %v4296, %v194
    %v4310 = vmul.f32 %v4299, %v194
    %v4311 = vmul.f32 %v4302, %v194
    %v4312 = vmul.f32 %v4305, %v194
    %v4313 = vmul.f32 %v4308, %v194
    %v4314 = vadd.f32 %v4309, 1e-06
    %v4315 = vadd.f32 %v4310, 1e-06
    %v4316 = vadd.f32 %v4311, 1e-06
    %v4317 = vadd.f32 %v4312, 1e-06
    %v4318 = vadd.f32 %v4313, 1e-06
    %v4319 = vrsqrt.pop %v4314
    %v4320 = vrsqrt.pop %v4315
    %v4321 = vrsqrt.pop %v4316
    %v4322 = vrsqrt.pop %v4317
    %v4323 = vrsqrt.pop %v4318
    %v4324 = vmul.f32 %v4284, %v4319
    %v4325 = vmul.f32 %v4285, %v4320
    %v4326 = vmul.f32 %v4286, %v4321
    %v4327 = vmul.f32 %v4287, %v4322
    %v4328 = vmul.f32 %v4288, %v4323
    %v4329 = vld [vmem:[%s6 + $0x8] sm:$0x1]
    %v4330 = vlaneseq
    %v4331 = vshrl.u32 %v4330, 7
    %v4332 = vsub.s32 0, %v4331
    %v4333 = vrot.slane %v4329, %v4332
    %v4334 = vmul.f32 %v4324, %v4333
    %v4335 = vmul.f32 %v4325, %v4333
    %v4336 = vmul.f32 %v4326, %v4333
    %v4337 = vmul.f32 %v4327, %v4333
    %v4338 = vmul.f32 %v4328, %v4333
    %v4339 = vld [vmem:[%s6 + $0x9] sm:$0x1]
    %v4340 = vlaneseq
    %v4341 = vshrl.u32 %v4340, 7
    %v4342 = vsub.s32 0, %v4341
    %v4343 = vrot.slane %v4339, %v4342
    %v4344 = vadd.f32 %v4334, %v4343
    %v4345 = vadd.f32 %v4335, %v4343
    %v4346 = vadd.f32 %v4336, %v4343
    %v4347 = vadd.f32 %v4337, %v4343
    %v4348 = vadd.f32 %v4338, %v4343
    %v4349 = vld [vmem:[%s6 + $0x11] sm:$0xf]
    %v4350 = vld [vmem:[%s4 + $0x18] sm:$0xff]
    %v4351 = vld [vmem:[%s4 + $0x38] sm:$0xff]
    %v4352 = vld [vmem:[%s4 + $0x58] sm:$0xff]
    %v4353 = vld [vmem:[%s4 + $0x78] sm:$0xff]
    %v4354 = vld [vmem:[%s6 + $0x10] sm:$0x1]
    %v4356 = vsel %vm484, %v4349, 0
    %v4359 = vsel %vm536, %v4346, 0
    %4361 = vmatprep.subr.mxu0 0.0
    %4362 = vmatpush1.msra.mxu0 %v4344
    %4363 = vmatprep.subr.mxu0 0.0
    %4364 = vmatpush1.msra.mxu0 %v4345
    %4365 = vmatprep.subr.mxu0 0.0
    %4366 = vmatpush1.msra.mxu0 %v4359
    %4367 = vmatprep.subr.mxu0 0.0
    %4368 = vmatpush1.msra.mxu0 0.0
    %4369 = vmatprep.subr.mxu0 0.0
    %4370 = vmatpush1.msra.mxu0 0.0
    %4371 = vmatprep.subr.mxu0 0.0
    %4372 = vmatpush1.msra.mxu0 0.0
    %4373 = vmatprep.subr.mxu0 0.0
    %4374 = vmatpush1.msra.mxu0 0.0
    %4375 = vmatprep.subr.mxu0 0.0
    %4376 = vmatpush1.msra.mxu0 0.0
    %4377 = vmatprep.subr.mxu0 0.0
    %4378 = vmatpush1.msra.mxu0 0.0
    %4379 = vmatprep.subr.mxu0 0.0
    %4380 = vmatpush1.msra.mxu0 0.0
    %4381 = vmatprep.subr.mxu0 0.0
    %4382 = vmatpush1.msra.mxu0 0.0
    %4383 = vmatprep.subr.mxu0 0.0
    %4384 = vmatpush1.msra.mxu0 0.0
    %4385 = vmatprep.subr.mxu0 0.0
    %4386 = vmatpush1.msra.mxu0 0.0
    %4387 = vmatprep.subr.mxu0 0.0
    %4388 = vmatpush1.msra.mxu0 0.0
    %4389 = vmatprep.subr.mxu0 0.0
    %4390 = vmatpush1.msra.mxu0 0.0
    %4391 = vmatprep.subr.mxu0 0.0
    %4392 = vmatpush1.msra.mxu0 0.0
    %4393 = vmatprep.subr.mxu0 0.0
    %4394 = vmatpush1.msra.mxu0 0.0
    %4395 = vmatprep.subr.mxu0 0.0
    %4396 = vmatpush1.msra.mxu0 0.0
    %4397 = vmatprep.subr.mxu0 0.0
    %4398 = vmatpush1.msra.mxu0 0.0
    %4399 = vmatprep.subr.mxu0 0.0
    %4400 = vmatpush1.msra.mxu0 0.0
    %4401 = vmatprep.subr.mxu0 0.0
    %4402 = vmatpush1.msra.mxu0 0.0
    %4403 = vmatprep.subr.mxu0 0.0
    %4404 = vmatpush1.msra.mxu0 0.0
    %4405 = vmatprep.subr.mxu0 0.0
    %4406 = vmatpush1.msra.mxu0 0.0
    %4407 = vmatprep.subr.mxu0 0.0
    %4408 = vmatpush1.msra.mxu0 0.0
    %4409 = vmatprep.subr.mxu0 0.0
    %4410 = vmatpush1.msra.mxu0 0.0
    %4411 = vmatprep.subr.mxu0 0.0
    %4412 = vmatpush1.msra.mxu0 0.0
    %4413 = vmatprep.subr.mxu0 0.0
    %4414 = vmatpush1.msra.mxu0 0.0
    %4415 = vmatprep.subr.mxu0 0.0
    %4416 = vmatpush1.msra.mxu0 0.0
    %4417 = vmatprep.subr.mxu0 0.0
    %4418 = vmatpush1.msra.mxu0 0.0
    %4419 = vmatprep.subr.mxu0 0.0
    %4420 = vmatpush1.msra.mxu0 0.0
    %4421 = vmatprep.subr.mxu0 0.0
    %4422 = vmatpush1.msra.mxu0 0.0
    %4423 = vmatprep.subr.mxu0 0.0
    %4424 = vmatpush1.msra.mxu0 0.0
    %4425 = vmatprep.mubr.f32.mxu0 0.0
    %4426 = vmatmul.mubr.f32.gmra.mrb[0].mxu0 %v4356
    %v4427 = vpop.f32.mrb[0].mxu0
    %v4428 = vadd.f32 0.0, %v4427
    %v4429 = vpop.f32.mrb[0].mxu0
    %4430 = vdwg.mxu0
    %v4432 = vsel %vm178, %v4428, 0
    %4434 = vmatprep.subr.mxu0 0.0
    %4435 = vmatpush1.msra.mxu0 %v4350
    %4436 = vmatprep.subr.mxu0 0.0
    %4437 = vmatpush1.msra.mxu0 %v4351
    %4438 = vmatprep.subr.mxu0 0.0
    %4439 = vmatpush1.msra.mxu0 %v4352
    %4440 = vmatprep.subr.mxu0 0.0
    %4441 = vmatpush1.msra.mxu0 %v4353
    %4442 = vmatprep.subr.mxu0 0.0
    %4443 = vmatpush1.msra.mxu0 0.0
    %4444 = vmatprep.subr.mxu0 0.0
    %4445 = vmatpush1.msra.mxu0 0.0
    %4446 = vmatprep.subr.mxu0 0.0
    %4447 = vmatpush1.msra.mxu0 0.0
    %4448 = vmatprep.subr.mxu0 0.0
    %4449 = vmatpush1.msra.mxu0 0.0
    %4450 = vmatprep.subr.mxu0 0.0
    %4451 = vmatpush1.msra.mxu0 0.0
    %4452 = vmatprep.subr.mxu0 0.0
    %4453 = vmatpush1.msra.mxu0 0.0
    %4454 = vmatprep.subr.mxu0 0.0
    %4455 = vmatpush1.msra.mxu0 0.0
    %4456 = vmatprep.subr.mxu0 0.0
    %4457 = vmatpush1.msra.mxu0 0.0
    %4458 = vmatprep.subr.mxu0 0.0
    %4459 = vmatpush1.msra.mxu0 0.0
    %4460 = vmatprep.subr.mxu0 0.0
    %4461 = vmatpush1.msra.mxu0 0.0
    %4462 = vmatprep.subr.mxu0 0.0
    %4463 = vmatpush1.msra.mxu0 0.0
    %4464 = vmatprep.subr.mxu0 0.0
    %4465 = vmatpush1.msra.mxu0 0.0
    %4466 = vmatprep.subr.mxu0 0.0
    %4467 = vmatpush1.msra.mxu0 0.0
    %4468 = vmatprep.subr.mxu0 0.0
    %4469 = vmatpush1.msra.mxu0 0.0
    %4470 = vmatprep.subr.mxu0 0.0
    %4471 = vmatpush1.msra.mxu0 0.0
    %4472 = vmatprep.subr.mxu0 0.0
    %4473 = vmatpush1.msra.mxu0 0.0
    %4474 = vmatprep.subr.mxu0 0.0
    %4475 = vmatpush1.msra.mxu0 0.0
    %4476 = vmatprep.subr.mxu0 0.0
    %4477 = vmatpush1.msra.mxu0 0.0
    %4478 = vmatprep.subr.mxu0 0.0
    %4479 = vmatpush1.msra.mxu0 0.0
    %4480 = vmatprep.subr.mxu0 0.0
    %4481 = vmatpush1.msra.mxu0 0.0
    %4482 = vmatprep.subr.mxu0 0.0
    %4483 = vmatpush1.msra.mxu0 0.0
    %4484 = vmatprep.subr.mxu0 0.0
    %4485 = vmatpush1.msra.mxu0 0.0
    %4486 = vmatprep.subr.mxu0 0.0
    %4487 = vmatpush1.msra.mxu0 0.0
    %4488 = vmatprep.subr.mxu0 0.0
    %4489 = vmatpush1.msra.mxu0 0.0
    %4490 = vmatprep.subr.mxu0 0.0
    %4491 = vmatpush1.msra.mxu0 0.0
    %4492 = vmatprep.subr.mxu0 0.0
    %4493 = vmatpush1.msra.mxu0 0.0
    %4494 = vmatprep.subr.mxu0 0.0
    %4495 = vmatpush1.msra.mxu0 0.0
    %4496 = vmatprep.subr.mxu0 0.0
    %4497 = vmatpush1.msra.mxu0 0.0
    %4498 = vmatprep.mubr.f32.mxu0 0.0
    %4499 = vmatmul.mubr.f32.gmra.mrb[0].mxu0 %v4432
    %v4500 = vpop.f32.mrb[0].mxu0
    %v4501 = vadd.f32 0.0, %v4500
    %v4502 = vpop.f32.mrb[0].mxu0
    %4503 = vdwg.mxu0
    %v4504 = vadd.f32 %v4354, %v4501
    %v4505 = vrot.slane %v4428, 1
    %4510 = vrot.lane.b32.xlu0 %v4350, 118
    %v4511 = vpop.permute.xlu0 %4510
    %4512 = vrot.lane.b32.xlu0 %v4351, 118
    %v4513 = vpop.permute.xlu0 %4512
    %4514 = vrot.lane.b32.xlu0 %v4352, 118
    %v4515 = vpop.permute.xlu0 %4514
    %4516 = vrot.lane.b32.xlu0 %v4353, 118
    %v4517 = vpop.permute.xlu0 %4516
    %v4522 = vsel %vm178, %v4505, 0
    %4524 = vmatprep.subr.mxu0 0.0
    %4525 = vmatpush1.msra.mxu0 %v4511
    %4526 = vmatprep.subr.mxu0 0.0
    %4527 = vmatpush1.msra.mxu0 %v4513
    %4528 = vmatprep.subr.mxu0 0.0
    %4529 = vmatpush1.msra.mxu0 %v4515
    %4530 = vmatprep.subr.mxu0 0.0
    %4531 = vmatpush1.msra.mxu0 %v4517
    %4532 = vmatprep.subr.mxu0 0.0
    %4533 = vmatpush1.msra.mxu0 0.0
    %4534 = vmatprep.subr.mxu0 0.0
    %4535 = vmatpush1.msra.mxu0 0.0
    %4536 = vmatprep.subr.mxu0 0.0
    %4537 = vmatpush1.msra.mxu0 0.0
    %4538 = vmatprep.subr.mxu0 0.0
    %4539 = vmatpush1.msra.mxu0 0.0
    %4540 = vmatprep.subr.mxu0 0.0
    %4541 = vmatpush1.msra.mxu0 0.0
    %4542 = vmatprep.subr.mxu0 0.0
    %4543 = vmatpush1.msra.mxu0 0.0
    %4544 = vmatprep.subr.mxu0 0.0
    %4545 = vmatpush1.msra.mxu0 0.0
    %4546 = vmatprep.subr.mxu0 0.0
    %4547 = vmatpush1.msra.mxu0 0.0
    %4548 = vmatprep.subr.mxu0 0.0
    %4549 = vmatpush1.msra.mxu0 0.0
    %4550 = vmatprep.subr.mxu0 0.0
    %4551 = vmatpush1.msra.mxu0 0.0
    %4552 = vmatprep.subr.mxu0 0.0
    %4553 = vmatpush1.msra.mxu0 0.0
    %4554 = vmatprep.subr.mxu0 0.0
    %4555 = vmatpush1.msra.mxu0 0.0
    %4556 = vmatprep.subr.mxu0 0.0
    %4557 = vmatpush1.msra.mxu0 0.0
    %4558 = vmatprep.subr.mxu0 0.0
    %4559 = vmatpush1.msra.mxu0 0.0
    %4560 = vmatprep.subr.mxu0 0.0
    %4561 = vmatpush1.msra.mxu0 0.0
    %4562 = vmatprep.subr.mxu0 0.0
    %4563 = vmatpush1.msra.mxu0 0.0
    %4564 = vmatprep.subr.mxu0 0.0
    %4565 = vmatpush1.msra.mxu0 0.0
    %4566 = vmatprep.subr.mxu0 0.0
    %4567 = vmatpush1.msra.mxu0 0.0
    %4568 = vmatprep.subr.mxu0 0.0
    %4569 = vmatpush1.msra.mxu0 0.0
    %4570 = vmatprep.subr.mxu0 0.0
    %4571 = vmatpush1.msra.mxu0 0.0
    %4572 = vmatprep.subr.mxu0 0.0
    %4573 = vmatpush1.msra.mxu0 0.0
    %4574 = vmatprep.subr.mxu0 0.0
    %4575 = vmatpush1.msra.mxu0 0.0
    %4576 = vmatprep.subr.mxu0 0.0
    %4577 = vmatpush1.msra.mxu0 0.0
    %4578 = vmatprep.subr.mxu0 0.0
    %4579 = vmatpush1.msra.mxu0 0.0
    %4580 = vmatprep.subr.mxu0 0.0
    %4581 = vmatpush1.msra.mxu0 0.0
    %4582 = vmatprep.subr.mxu0 0.0
    %4583 = vmatpush1.msra.mxu0 0.0
    %4584 = vmatprep.subr.mxu0 0.0
    %4585 = vmatpush1.msra.mxu0 0.0
    %4586 = vmatprep.subr.mxu0 0.0
    %4587 = vmatpush1.msra.mxu0 0.0
    %4588 = vmatprep.mubr.f32.mxu0 0.0
    %4589 = vmatmul.mubr.f32.gmra.mrb[0].mxu0 %v4522
    %v4590 = vpop.f32.mrb[0].mxu0
    %v4591 = vadd.f32 0.0, %v4590
    %v4592 = vpop.f32.mrb[0].mxu0
    %4593 = vdwg.mxu0
    %v4594 = vadd.f32 %v4504, %v4591
    %v4595 = vrot.slane %v4428, 2
    %4596 = vrot.lane.b32.xlu0 %v4350, 108
    %v4597 = vpop.permute.xlu0 %4596
    %4598 = vrot.lane.b32.xlu0 %v4351, 108
    %v4599 = vpop.permute.xlu0 %4598
    %4600 = vrot.lane.b32.xlu0 %v4352, 108
    %v4601 = vpop.permute.xlu0 %4600
    %4602 = vrot.lane.b32.xlu0 %v4353, 108
    %v4603 = vpop.permute.xlu0 %4602
    %v4608 = vsel %vm178, %v4595, 0
    %4610 = vmatprep.subr.mxu0 0.0
    %4611 = vmatpush1.msra.mxu0 %v4597
    %4612 = vmatprep.subr.mxu0 0.0
    %4613 = vmatpush1.msra.mxu0 %v4599
    %4614 = vmatprep.subr.mxu0 0.0
    %4615 = vmatpush1.msra.mxu0 %v4601
    %4616 = vmatprep.subr.mxu0 0.0
    %4617 = vmatpush1.msra.mxu0 %v4603
    %4618 = vmatprep.subr.mxu0 0.0
    %4619 = vmatpush1.msra.mxu0 0.0
    %4620 = vmatprep.subr.mxu0 0.0
    %4621 = vmatpush1.msra.mxu0 0.0
    %4622 = vmatprep.subr.mxu0 0.0
    %4623 = vmatpush1.msra.mxu0 0.0
    %4624 = vmatprep.subr.mxu0 0.0
    %4625 = vmatpush1.msra.mxu0 0.0
    %4626 = vmatprep.subr.mxu0 0.0
    %4627 = vmatpush1.msra.mxu0 0.0
    %4628 = vmatprep.subr.mxu0 0.0
    %4629 = vmatpush1.msra.mxu0 0.0
    %4630 = vmatprep.subr.mxu0 0.0
    %4631 = vmatpush1.msra.mxu0 0.0
    %4632 = vmatprep.subr.mxu0 0.0
    %4633 = vmatpush1.msra.mxu0 0.0
    %4634 = vmatprep.subr.mxu0 0.0
    %4635 = vmatpush1.msra.mxu0 0.0
    %4636 = vmatprep.subr.mxu0 0.0
    %4637 = vmatpush1.msra.mxu0 0.0
    %4638 = vmatprep.subr.mxu0 0.0
    %4639 = vmatpush1.msra.mxu0 0.0
    %4640 = vmatprep.subr.mxu0 0.0
    %4641 = vmatpush1.msra.mxu0 0.0
    %4642 = vmatprep.subr.mxu0 0.0
    %4643 = vmatpush1.msra.mxu0 0.0
    %4644 = vmatprep.subr.mxu0 0.0
    %4645 = vmatpush1.msra.mxu0 0.0
    %4646 = vmatprep.subr.mxu0 0.0
    %4647 = vmatpush1.msra.mxu0 0.0
    %4648 = vmatprep.subr.mxu0 0.0
    %4649 = vmatpush1.msra.mxu0 0.0
    %4650 = vmatprep.subr.mxu0 0.0
    %4651 = vmatpush1.msra.mxu0 0.0
    %4652 = vmatprep.subr.mxu0 0.0
    %4653 = vmatpush1.msra.mxu0 0.0
    %4654 = vmatprep.subr.mxu0 0.0
    %4655 = vmatpush1.msra.mxu0 0.0
    %4656 = vmatprep.subr.mxu0 0.0
    %4657 = vmatpush1.msra.mxu0 0.0
    %4658 = vmatprep.subr.mxu0 0.0
    %4659 = vmatpush1.msra.mxu0 0.0
    %4660 = vmatprep.subr.mxu0 0.0
    %4661 = vmatpush1.msra.mxu0 0.0
    %4662 = vmatprep.subr.mxu0 0.0
    %4663 = vmatpush1.msra.mxu0 0.0
    %4664 = vmatprep.subr.mxu0 0.0
    %4665 = vmatpush1.msra.mxu0 0.0
    %4666 = vmatprep.subr.mxu0 0.0
    %4667 = vmatpush1.msra.mxu0 0.0
    %4668 = vmatprep.subr.mxu0 0.0
    %4669 = vmatpush1.msra.mxu0 0.0
    %4670 = vmatprep.subr.mxu0 0.0
    %4671 = vmatpush1.msra.mxu0 0.0
    %4672 = vmatprep.subr.mxu0 0.0
    %4673 = vmatpush1.msra.mxu0 0.0
    %4674 = vmatprep.mubr.f32.mxu0 0.0
    %4675 = vmatmul.mubr.f32.gmra.mrb[0].mxu0 %v4608
    %v4676 = vpop.f32.mrb[0].mxu0
    %v4677 = vadd.f32 0.0, %v4676
    %v4678 = vpop.f32.mrb[0].mxu0
    %4679 = vdwg.mxu0
    %v4680 = vadd.f32 %v4594, %v4677
    %v4681 = vrot.slane %v4428, 3
    %4682 = vrot.lane.b32.xlu0 %v4350, 98
    %v4683 = vpop.permute.xlu0 %4682
    %4684 = vrot.lane.b32.xlu0 %v4351, 98
    %v4685 = vpop.permute.xlu0 %4684
    %4686 = vrot.lane.b32.xlu0 %v4352, 98
    %v4687 = vpop.permute.xlu0 %4686
    %4688 = vrot.lane.b32.xlu0 %v4353, 98
    %v4689 = vpop.permute.xlu0 %4688
    %v4694 = vsel %vm178, %v4681, 0
    %4696 = vmatprep.subr.mxu0 0.0
    %4697 = vmatpush1.msra.mxu0 %v4683
    %4698 = vmatprep.subr.mxu0 0.0
    %4699 = vmatpush1.msra.mxu0 %v4685
    %4700 = vmatprep.subr.mxu0 0.0
    %4701 = vmatpush1.msra.mxu0 %v4687
    %4702 = vmatprep.subr.mxu0 0.0
    %4703 = vmatpush1.msra.mxu0 %v4689
    %4704 = vmatprep.subr.mxu0 0.0
    %4705 = vmatpush1.msra.mxu0 0.0
    %4706 = vmatprep.subr.mxu0 0.0
    %4707 = vmatpush1.msra.mxu0 0.0
    %4708 = vmatprep.subr.mxu0 0.0
    %4709 = vmatpush1.msra.mxu0 0.0
    %4710 = vmatprep.subr.mxu0 0.0
    %4711 = vmatpush1.msra.mxu0 0.0
    %4712 = vmatprep.subr.mxu0 0.0
    %4713 = vmatpush1.msra.mxu0 0.0
    %4714 = vmatprep.subr.mxu0 0.0
    %4715 = vmatpush1.msra.mxu0 0.0
    %4716 = vmatprep.subr.mxu0 0.0
    %4717 = vmatpush1.msra.mxu0 0.0
    %4718 = vmatprep.subr.mxu0 0.0
    %4719 = vmatpush1.msra.mxu0 0.0
    %4720 = vmatprep.subr.mxu0 0.0
    %4721 = vmatpush1.msra.mxu0 0.0
    %4722 = vmatprep.subr.mxu0 0.0
    %4723 = vmatpush1.msra.mxu0 0.0
    %4724 = vmatprep.subr.mxu0 0.0
    %4725 = vmatpush1.msra.mxu0 0.0
    %4726 = vmatprep.subr.mxu0 0.0
    %4727 = vmatpush1.msra.mxu0 0.0
    %4728 = vmatprep.subr.mxu0 0.0
    %4729 = vmatpush1.msra.mxu0 0.0
    %4730 = vmatprep.subr.mxu0 0.0
    %4731 = vmatpush1.msra.mxu0 0.0
    %4732 = vmatprep.subr.mxu0 0.0
    %4733 = vmatpush1.msra.mxu0 0.0
    %4734 = vmatprep.subr.mxu0 0.0
    %4735 = vmatpush1.msra.mxu0 0.0
    %4736 = vmatprep.subr.mxu0 0.0
    %4737 = vmatpush1.msra.mxu0 0.0
    %4738 = vmatprep.subr.mxu0 0.0
    %4739 = vmatpush1.msra.mxu0 0.0
    %4740 = vmatprep.subr.mxu0 0.0
    %4741 = vmatpush1.msra.mxu0 0.0
    %4742 = vmatprep.subr.mxu0 0.0
    %4743 = vmatpush1.msra.mxu0 0.0
    %4744 = vmatprep.subr.mxu0 0.0
    %4745 = vmatpush1.msra.mxu0 0.0
    %4746 = vmatprep.subr.mxu0 0.0
    %4747 = vmatpush1.msra.mxu0 0.0
    %4748 = vmatprep.subr.mxu0 0.0
    %4749 = vmatpush1.msra.mxu0 0.0
    %4750 = vmatprep.subr.mxu0 0.0
    %4751 = vmatpush1.msra.mxu0 0.0
    %4752 = vmatprep.subr.mxu0 0.0
    %4753 = vmatpush1.msra.mxu0 0.0
    %4754 = vmatprep.subr.mxu0 0.0
    %4755 = vmatpush1.msra.mxu0 0.0
    %4756 = vmatprep.subr.mxu0 0.0
    %4757 = vmatpush1.msra.mxu0 0.0
    %4758 = vmatprep.subr.mxu0 0.0
    %4759 = vmatpush1.msra.mxu0 0.0
    %4760 = vmatprep.mubr.f32.mxu0 0.0
    %4761 = vmatmul.mubr.f32.gmra.mrb[0].mxu0 %v4694
    %v4762 = vpop.f32.mrb[0].mxu0
    %v4763 = vadd.f32 0.0, %v4762
    %v4764 = vpop.f32.mrb[0].mxu0
    %4765 = vdwg.mxu0
    %v4766 = vadd.f32 %v4680, %v4763
    %v4769 = vrot.slane %v4346, 4
    %v4770 = vrot.slane %v4347, 4
    %v4771 = vsel %vm536, %v4769, %v4770
    %v4772 = vrot.slane %v4348, 4
    %v4773 = vsel %vm536, %v4770, %v4772
    %v4776 = vsel %vm536, %v4772, 0
    %4778 = vmatprep.subr.mxu0 0.0
    %4779 = vmatpush1.msra.mxu0 %v4771
    %4780 = vmatprep.subr.mxu0 0.0
    %4781 = vmatpush1.msra.mxu0 %v4773
    %4782 = vmatprep.subr.mxu0 0.0
    %4783 = vmatpush1.msra.mxu0 %v4776
    %4784 = vmatprep.subr.mxu0 0.0
    %4785 = vmatpush1.msra.mxu0 0.0
    %4786 = vmatprep.subr.mxu0 0.0
    %4787 = vmatpush1.msra.mxu0 0.0
    %4788 = vmatprep.subr.mxu0 0.0
    %4789 = vmatpush1.msra.mxu0 0.0
    %4790 = vmatprep.subr.mxu0 0.0
    %4791 = vmatpush1.msra.mxu0 0.0
    %4792 = vmatprep.subr.mxu0 0.0
    %4793 = vmatpush1.msra.mxu0 0.0
    %4794 = vmatprep.subr.mxu0 0.0
    %4795 = vmatpush1.msra.mxu0 0.0
    %4796 = vmatprep.subr.mxu0 0.0
    %4797 = vmatpush1.msra.mxu0 0.0
    %4798 = vmatprep.subr.mxu0 0.0
    %4799 = vmatpush1.msra.mxu0 0.0
    %4800 = vmatprep.subr.mxu0 0.0
    %4801 = vmatpush1.msra.mxu0 0.0
    %4802 = vmatprep.subr.mxu0 0.0
    %4803 = vmatpush1.msra.mxu0 0.0
    %4804 = vmatprep.subr.mxu0 0.0
    %4805 = vmatpush1.msra.mxu0 0.0
    %4806 = vmatprep.subr.mxu0 0.0
    %4807 = vmatpush1.msra.mxu0 0.0
    %4808 = vmatprep.subr.mxu0 0.0
    %4809 = vmatpush1.msra.mxu0 0.0
    %4810 = vmatprep.subr.mxu0 0.0
    %4811 = vmatpush1.msra.mxu0 0.0
    %4812 = vmatprep.subr.mxu0 0.0
    %4813 = vmatpush1.msra.mxu0 0.0
    %4814 = vmatprep.subr.mxu0 0.0
    %4815 = vmatpush1.msra.mxu0 0.0
    %4816 = vmatprep.subr.mxu0 0.0
    %4817 = vmatpush1.msra.mxu0 0.0
    %4818 = vmatprep.subr.mxu0 0.0
    %4819 = vmatpush1.msra.mxu0 0.0
    %4820 = vmatprep.subr.mxu0 0.0
    %4821 = vmatpush1.msra.mxu0 0.0
    %4822 = vmatprep.subr.mxu0 0.0
    %4823 = vmatpush1.msra.mxu0 0.0
    %4824 = vmatprep.subr.mxu0 0.0
    %4825 = vmatpush1.msra.mxu0 0.0
    %4826 = vmatprep.subr.mxu0 0.0
    %4827 = vmatpush1.msra.mxu0 0.0
    %4828 = vmatprep.subr.mxu0 0.0
    %4829 = vmatpush1.msra.mxu0 0.0
    %4830 = vmatprep.subr.mxu0 0.0
    %4831 = vmatpush1.msra.mxu0 0.0
    %4832 = vmatprep.subr.mxu0 0.0
    %4833 = vmatpush1.msra.mxu0 0.0
    %4834 = vmatprep.subr.mxu0 0.0
    %4835 = vmatpush1.msra.mxu0 0.0
    %4836 = vmatprep.subr.mxu0 0.0
    %4837 = vmatpush1.msra.mxu0 0.0
    %4838 = vmatprep.subr.mxu0 0.0
    %4839 = vmatpush1.msra.mxu0 0.0
    %4840 = vmatprep.subr.mxu0 0.0
    %4841 = vmatpush1.msra.mxu0 0.0
    %4842 = vmatprep.mubr.f32.mxu0 0.0
    %4843 = vmatmul.mubr.f32.gmra.mrb[0].mxu0 %v4356
    %v4844 = vpop.f32.mrb[0].mxu0
    %v4845 = vadd.f32 0.0, %v4844
    %v4846 = vpop.f32.mrb[0].mxu0
    %4847 = vdwg.mxu0
    %v4849 = vsel %vm178, %v4845, 0
    %4851 = vmatprep.subr.mxu0 0.0
    %4852 = vmatpush1.msra.mxu0 %v4350
    %4853 = vmatprep.subr.mxu0 0.0
    %4854 = vmatpush1.msra.mxu0 %v4351
    %4855 = vmatprep.subr.mxu0 0.0
    %4856 = vmatpush1.msra.mxu0 %v4352
    %4857 = vmatprep.subr.mxu0 0.0
    %4858 = vmatpush1.msra.mxu0 %v4353
    %4859 = vmatprep.subr.mxu0 0.0
    %4860 = vmatpush1.msra.mxu0 0.0
    %4861 = vmatprep.subr.mxu0 0.0
    %4862 = vmatpush1.msra.mxu0 0.0
    %4863 = vmatprep.subr.mxu0 0.0
    %4864 = vmatpush1.msra.mxu0 0.0
    %4865 = vmatprep.subr.mxu0 0.0
    %4866 = vmatpush1.msra.mxu0 0.0
    %4867 = vmatprep.subr.mxu0 0.0
    %4868 = vmatpush1.msra.mxu0 0.0
    %4869 = vmatprep.subr.mxu0 0.0
    %4870 = vmatpush1.msra.mxu0 0.0
    %4871 = vmatprep.subr.mxu0 0.0
    %4872 = vmatpush1.msra.mxu0 0.0
    %4873 = vmatprep.subr.mxu0 0.0
    %4874 = vmatpush1.msra.mxu0 0.0
    %4875 = vmatprep.subr.mxu0 0.0
    %4876 = vmatpush1.msra.mxu0 0.0
    %4877 = vmatprep.subr.mxu0 0.0
    %4878 = vmatpush1.msra.mxu0 0.0
    %4879 = vmatprep.subr.mxu0 0.0
    %4880 = vmatpush1.msra.mxu0 0.0
    %4881 = vmatprep.subr.mxu0 0.0
    %4882 = vmatpush1.msra.mxu0 0.0
    %4883 = vmatprep.subr.mxu0 0.0
    %4884 = vmatpush1.msra.mxu0 0.0
    %4885 = vmatprep.subr.mxu0 0.0
    %4886 = vmatpush1.msra.mxu0 0.0
    %4887 = vmatprep.subr.mxu0 0.0
    %4888 = vmatpush1.msra.mxu0 0.0
    %4889 = vmatprep.subr.mxu0 0.0
    %4890 = vmatpush1.msra.mxu0 0.0
    %4891 = vmatprep.subr.mxu0 0.0
    %4892 = vmatpush1.msra.mxu0 0.0
    %4893 = vmatprep.subr.mxu0 0.0
    %4894 = vmatpush1.msra.mxu0 0.0
    %4895 = vmatprep.subr.mxu0 0.0
    %4896 = vmatpush1.msra.mxu0 0.0
    %4897 = vmatprep.subr.mxu0 0.0
    %4898 = vmatpush1.msra.mxu0 0.0
    %4899 = vmatprep.subr.mxu0 0.0
    %4900 = vmatpush1.msra.mxu0 0.0
    %4901 = vmatprep.subr.mxu0 0.0
    %4902 = vmatpush1.msra.mxu0 0.0
    %4903 = vmatprep.subr.mxu0 0.0
    %4904 = vmatpush1.msra.mxu0 0.0
    %4905 = vmatprep.subr.mxu0 0.0
    %4906 = vmatpush1.msra.mxu0 0.0
    %4907 = vmatprep.subr.mxu0 0.0
    %4908 = vmatpush1.msra.mxu0 0.0
    %4909 = vmatprep.subr.mxu0 0.0
    %4910 = vmatpush1.msra.mxu0 0.0
    %4911 = vmatprep.subr.mxu0 0.0
    %4912 = vmatpush1.msra.mxu0 0.0
    %4913 = vmatprep.subr.mxu0 0.0
    %4914 = vmatpush1.msra.mxu0 0.0
    %4915 = vmatprep.mubr.f32.mxu0 0.0
    %4916 = vmatmul.mubr.f32.gmra.mrb[0].mxu0 %v4849
    %v4917 = vpop.f32.mrb[0].mxu0
    %v4918 = vadd.f32 0.0, %v4917
    %v4919 = vpop.f32.mrb[0].mxu0
    %4920 = vdwg.mxu0
    %v4921 = vadd.f32 %v4354, %v4918
    %v4922 = vrot.slane %v4845, 1
    %v4923 = vsel %vm178, %v4922, 0
    %4925 = vmatprep.subr.mxu0 0.0
    %4926 = vmatpush1.msra.mxu0 %v4511
    %4927 = vmatprep.subr.mxu0 0.0
    %4928 = vmatpush1.msra.mxu0 %v4513
    %4929 = vmatprep.subr.mxu0 0.0
    %4930 = vmatpush1.msra.mxu0 %v4515
    %4931 = vmatprep.subr.mxu0 0.0
    %4932 = vmatpush1.msra.mxu0 %v4517
    %4933 = vmatprep.subr.mxu0 0.0
    %4934 = vmatpush1.msra.mxu0 0.0
    %4935 = vmatprep.subr.mxu0 0.0
    %4936 = vmatpush1.msra.mxu0 0.0
    %4937 = vmatprep.subr.mxu0 0.0
    %4938 = vmatpush1.msra.mxu0 0.0
    %4939 = vmatprep.subr.mxu0 0.0
    %4940 = vmatpush1.msra.mxu0 0.0
    %4941 = vmatprep.subr.mxu0 0.0
    %4942 = vmatpush1.msra.mxu0 0.0
    %4943 = vmatprep.subr.mxu0 0.0
    %4944 = vmatpush1.msra.mxu0 0.0
    %4945 = vmatprep.subr.mxu0 0.0
    %4946 = vmatpush1.msra.mxu0 0.0
    %4947 = vmatprep.subr.mxu0 0.0
    %4948 = vmatpush1.msra.mxu0 0.0
    %4949 = vmatprep.subr.mxu0 0.0
    %4950 = vmatpush1.msra.mxu0 0.0
    %4951 = vmatprep.subr.mxu0 0.0
    %4952 = vmatpush1.msra.mxu0 0.0
    %4953 = vmatprep.subr.mxu0 0.0
    %4954 = vmatpush1.msra.mxu0 0.0
    %4955 = vmatprep.subr.mxu0 0.0
    %4956 = vmatpush1.msra.mxu0 0.0
    %4957 = vmatprep.subr.mxu0 0.0
    %4958 = vmatpush1.msra.mxu0 0.0
    %4959 = vmatprep.subr.mxu0 0.0
    %4960 = vmatpush1.msra.mxu0 0.0
    %4961 = vmatprep.subr.mxu0 0.0
    %4962 = vmatpush1.msra.mxu0 0.0
    %4963 = vmatprep.subr.mxu0 0.0
    %4964 = vmatpush1.msra.mxu0 0.0
    %4965 = vmatprep.subr.mxu0 0.0
    %4966 = vmatpush1.msra.mxu0 0.0
    %4967 = vmatprep.subr.mxu0 0.0
    %4968 = vmatpush1.msra.mxu0 0.0
    %4969 = vmatprep.subr.mxu0 0.0
    %4970 = vmatpush1.msra.mxu0 0.0
    %4971 = vmatprep.subr.mxu0 0.0
    %4972 = vmatpush1.msra.mxu0 0.0
    %4973 = vmatprep.subr.mxu0 0.0
    %4974 = vmatpush1.msra.mxu0 0.0
    %4975 = vmatprep.subr.mxu0 0.0
    %4976 = vmatpush1.msra.mxu0 0.0
    %4977 = vmatprep.subr.mxu0 0.0
    %4978 = vmatpush1.msra.mxu0 0.0
    %4979 = vmatprep.subr.mxu0 0.0
    %4980 = vmatpush1.msra.mxu0 0.0
    %4981 = vmatprep.subr.mxu0 0.0
    %4982 = vmatpush1.msra.mxu0 0.0
    %4983 = vmatprep.subr.mxu0 0.0
    %4984 = vmatpush1.msra.mxu0 0.0
    %4985 = vmatprep.subr.mxu0 0.0
    %4986 = vmatpush1.msra.mxu0 0.0
    %4987 = vmatprep.subr.mxu0 0.0
    %4988 = vmatpush1.msra.mxu0 0.0
    %4989 = vmatprep.mubr.f32.mxu0 0.0
    %4990 = vmatmul.mubr.f32.gmra.mrb[0].mxu0 %v4923
    %v4991 = vpop.f32.mrb[0].mxu0
    %v4992 = vadd.f32 0.0, %v4991
    %v4993 = vpop.f32.mrb[0].mxu0
    %4994 = vdwg.mxu0
    %v4995 = vadd.f32 %v4921, %v4992
    %v4996 = vrot.slane %v4845, 2
    %v4997 = vsel %vm178, %v4996, 0
    %4999 = vmatprep.subr.mxu0 0.0
    %5000 = vmatpush1.msra.mxu0 %v4597
    %5001 = vmatprep.subr.mxu0 0.0
    %5002 = vmatpush1.msra.mxu0 %v4599
    %5003 = vmatprep.subr.mxu0 0.0
    %5004 = vmatpush1.msra.mxu0 %v4601
    %5005 = vmatprep.subr.mxu0 0.0
    %5006 = vmatpush1.msra.mxu0 %v4603
    %5007 = vmatprep.subr.mxu0 0.0
    %5008 = vmatpush1.msra.mxu0 0.0
    %5009 = vmatprep.subr.mxu0 0.0
    %5010 = vmatpush1.msra.mxu0 0.0
    %5011 = vmatprep.subr.mxu0 0.0
    %5012 = vmatpush1.msra.mxu0 0.0
    %5013 = vmatprep.subr.mxu0 0.0
    %5014 = vmatpush1.msra.mxu0 0.0
    %5015 = vmatprep.subr.mxu0 0.0
    %5016 = vmatpush1.msra.mxu0 0.0
    %5017 = vmatprep.subr.mxu0 0.0
    %5018 = vmatpush1.msra.mxu0 0.0
    %5019 = vmatprep.subr.mxu0 0.0
    %5020 = vmatpush1.msra.mxu0 0.0
    %5021 = vmatprep.subr.mxu0 0.0
    %5022 = vmatpush1.msra.mxu0 0.0
    %5023 = vmatprep.subr.mxu0 0.0
    %5024 = vmatpush1.msra.mxu0 0.0
    %5025 = vmatprep.subr.mxu0 0.0
    %5026 = vmatpush1.msra.mxu0 0.0
    %5027 = vmatprep.subr.mxu0 0.0
    %5028 = vmatpush1.msra.mxu0 0.0
    %5029 = vmatprep.subr.mxu0 0.0
    %5030 = vmatpush1.msra.mxu0 0.0
    %5031 = vmatprep.subr.mxu0 0.0
    %5032 = vmatpush1.msra.mxu0 0.0
    %5033 = vmatprep.subr.mxu0 0.0
    %5034 = vmatpush1.msra.mxu0 0.0
    %5035 = vmatprep.subr.mxu0 0.0
    %5036 = vmatpush1.msra.mxu0 0.0
    %5037 = vmatprep.subr.mxu0 0.0
    %5038 = vmatpush1.msra.mxu0 0.0
    %5039 = vmatprep.subr.mxu0 0.0
    %5040 = vmatpush1.msra.mxu0 0.0
    %5041 = vmatprep.subr.mxu0 0.0
    %5042 = vmatpush1.msra.mxu0 0.0
    %5043 = vmatprep.subr.mxu0 0.0
    %5044 = vmatpush1.msra.mxu0 0.0
    %5045 = vmatprep.subr.mxu0 0.0
    %5046 = vmatpush1.msra.mxu0 0.0
    %5047 = vmatprep.subr.mxu0 0.0
    %5048 = vmatpush1.msra.mxu0 0.0
    %5049 = vmatprep.subr.mxu0 0.0
    %5050 = vmatpush1.msra.mxu0 0.0
    %5051 = vmatprep.subr.mxu0 0.0
    %5052 = vmatpush1.msra.mxu0 0.0
    %5053 = vmatprep.subr.mxu0 0.0
    %5054 = vmatpush1.msra.mxu0 0.0
    %5055 = vmatprep.subr.mxu0 0.0
    %5056 = vmatpush1.msra.mxu0 0.0
    %5057 = vmatprep.subr.mxu0 0.0
    %5058 = vmatpush1.msra.mxu0 0.0
    %5059 = vmatprep.subr.mxu0 0.0
    %5060 = vmatpush1.msra.mxu0 0.0
    %5061 = vmatprep.subr.mxu0 0.0
    %5062 = vmatpush1.msra.mxu0 0.0
    %5063 = vmatprep.mubr.f32.mxu0 0.0
    %5064 = vmatmul.mubr.f32.gmra.mrb[0].mxu0 %v4997
    %v5065 = vpop.f32.mrb[0].mxu0
    %v5066 = vadd.f32 0.0, %v5065
    %v5067 = vpop.f32.mrb[0].mxu0
    %5068 = vdwg.mxu0
    %v5069 = vadd.f32 %v4995, %v5066
    %v5070 = vrot.slane %v4845, 3
    %v5071 = vsel %vm178, %v5070, 0
    %5073 = vmatprep.subr.mxu0 0.0
    %5074 = vmatpush1.msra.mxu0 %v4683
    %5075 = vmatprep.subr.mxu0 0.0
    %5076 = vmatpush1.msra.mxu0 %v4685
    %5077 = vmatprep.subr.mxu0 0.0
    %5078 = vmatpush1.msra.mxu0 %v4687
    %5079 = vmatprep.subr.mxu0 0.0
    %5080 = vmatpush1.msra.mxu0 %v4689
    %5081 = vmatprep.subr.mxu0 0.0
    %5082 = vmatpush1.msra.mxu0 0.0
    %5083 = vmatprep.subr.mxu0 0.0
    %5084 = vmatpush1.msra.mxu0 0.0
    %5085 = vmatprep.subr.mxu0 0.0
    %5086 = vmatpush1.msra.mxu0 0.0
    %5087 = vmatprep.subr.mxu0 0.0
    %5088 = vmatpush1.msra.mxu0 0.0
    %5089 = vmatprep.subr.mxu0 0.0
    %5090 = vmatpush1.msra.mxu0 0.0
    %5091 = vmatprep.subr.mxu0 0.0
    %5092 = vmatpush1.msra.mxu0 0.0
    %5093 = vmatprep.subr.mxu0 0.0
    %5094 = vmatpush1.msra.mxu0 0.0
    %5095 = vmatprep.subr.mxu0 0.0
    %5096 = vmatpush1.msra.mxu0 0.0
    %5097 = vmatprep.subr.mxu0 0.0
    %5098 = vmatpush1.msra.mxu0 0.0
    %5099 = vmatprep.subr.mxu0 0.0
    %5100 = vmatpush1.msra.mxu0 0.0
    %5101 = vmatprep.subr.mxu0 0.0
    %5102 = vmatpush1.msra.mxu0 0.0
    %5103 = vmatprep.subr.mxu0 0.0
    %5104 = vmatpush1.msra.mxu0 0.0
    %5105 = vmatprep.subr.mxu0 0.0
    %5106 = vmatpush1.msra.mxu0 0.0
    %5107 = vmatprep.subr.mxu0 0.0
    %5108 = vmatpush1.msra.mxu0 0.0
    %5109 = vmatprep.subr.mxu0 0.0
    %5110 = vmatpush1.msra.mxu0 0.0
    %5111 = vmatprep.subr.mxu0 0.0
    %5112 = vmatpush1.msra.mxu0 0.0
    %5113 = vmatprep.subr.mxu0 0.0
    %5114 = vmatpush1.msra.mxu0 0.0
    %5115 = vmatprep.subr.mxu0 0.0
    %5116 = vmatpush1.msra.mxu0 0.0
    %5117 = vmatprep.subr.mxu0 0.0
    %5118 = vmatpush1.msra.mxu0 0.0
    %5119 = vmatprep.subr.mxu0 0.0
    %5120 = vmatpush1.msra.mxu0 0.0
    %5121 = vmatprep.subr.mxu0 0.0
    %5122 = vmatpush1.msra.mxu0 0.0
    %5123 = vmatprep.subr.mxu0 0.0
    %5124 = vmatpush1.msra.mxu0 0.0
    %5125 = vmatprep.subr.mxu0 0.0
    %5126 = vmatpush1.msra.mxu0 0.0
    %5127 = vmatprep.subr.mxu0 0.0
    %5128 = vmatpush1.msra.mxu0 0.0
    %5129 = vmatprep.subr.mxu0 0.0
    %5130 = vmatpush1.msra.mxu0 0.0
    %5131 = vmatprep.subr.mxu0 0.0
    %5132 = vmatpush1.msra.mxu0 0.0
    %5133 = vmatprep.subr.mxu0 0.0
    %5134 = vmatpush1.msra.mxu0 0.0
    %5135 = vmatprep.subr.mxu0 0.0
    %5136 = vmatpush1.msra.mxu0 0.0
    %5137 = vmatprep.mubr.f32.mxu0 0.0
    %5138 = vmatmul.mubr.f32.gmra.mrb[0].mxu0 %v5071
    %v5139 = vpop.f32.mrb[0].mxu0
    %v5140 = vadd.f32 0.0, %v5139
    %v5141 = vpop.f32.mrb[0].mxu0
    %5142 = vdwg.mxu0
    %v5143 = vadd.f32 %v5069, %v5140
    %v5145 = vrot.slane %v5143, 7
    %vm5147 = vcmask 1040384
    %v5148 = vsel %vm5147, %v4766, %v5145
    %vm5149 = vcmask 74752
    %5150 = vst.msk [vmem:[#allocation2] sm:$0x3] %vm5149, %v5148
    // Predicated region
    $region30: #{vit_forward.1} parent=1 // pred_check
      _
    $region31: #{vit_forward.1} parent=1 // pred_check_branch
      %5152 = sbr.rel (0) target = $region33
    $region32: #{vit_forward.1} parent=1 // pred_region
      %s5154 = ssub.s32 32, 32
      %5155 = vsyncadd [#allocation3], %s5154
      %s5157 = sshll.u32 [#allocation2], 4
      %s5158 = int_to_ptr.vmem [resolvable:$true] %s5157
      %5160 = dma.vmem_to_hbm [thread:$0]  %s5158, 32, %s7, [#allocation3]
    $region33: #{vit_forward.1} parent=1 // pred_fallthru
      _
    // Predicated region
    $region34: #{vit_forward.1} parent=1 // pred_check
      _
    $region35: #{vit_forward.1} parent=1 // pred_check_branch
      %5162 = sbr.rel (0) target = $region37
    $region36: #{vit_forward.1} parent=1 // pred_region
      %5163 = dma.done [#allocation3], 32
    $region37: #{vit_forward.1} parent=1 // pred_fallthru
      _
    %5164 = vsyncpa [#allocation3], 1

</llo_original>
